<compile_context>
chip_gen: v7x
topology: tpu7x:2x2x1
jax: 0.10.0
libtpu: 0.0.40
codegen_flags: <defaults>
</compile_context>

<pallas_src>
import functools

import jax
import jax.numpy as jnp
from jax import lax
from jax.experimental import pallas as pl
from jax.experimental.pallas import tpu as pltpu

_LANES = 128
_CHUNK_R = 512                       # inner-loop chunk: (512,128) f32 temps = 256 KiB
_MAX_TILE_R = 8192                   # rows per grid step (upper bound)
_IN_BUF_BUDGET = 16 * 1024 * 1024    # double-buffered input-block byte budget


def _round_up(x, m):
    return ((x + m - 1) // m) * m


def _num_row_slices():
    """Leading 'parallel' grid axis size.  Defaults to 2 so both TensorCores
    are engaged on v7x; probes the device for a core count when such an
    attribute exists (harmless single skipped step on single-core v5e/v6e)."""
    try:
        dev = jax.devices()[0]
        for attr in ("num_cores", "core_count"):
            v = getattr(dev, attr, None)
            if isinstance(v, int) and v >= 1:
                return max(1, min(2, v))
    except Exception:
        pass
    return 2


def _make_wbce_kernel(rows, tile_r, chunk_r, bps, total_blocks):
    """Accumulate [pos_cnt, neg_cnt, sum(bce|pos), sum(bce|neg)] as (8,128)
    vector partials into a per-slice (1,4,8,128) accumulator block."""
    n_chunks = tile_r // chunk_r
    needs_tail_mask = (rows % tile_r) != 0
    n_unmasked = total_blocks - 1 if needs_tail_mask else total_blocks

    def kernel(x_ref, t_ref, acc_ref):
        i = pl.program_id(1)
        w = pl.program_id(0) * bps + i            # linear row-block id

        @pl.when(i == 0)
        def _init():
            acc_ref[...] = jnp.zeros_like(acc_ref)

        def accumulate(masked):
            row_base = w * tile_r
            zero = jnp.float32(0.0)
            one = jnp.float32(1.0)

            def fold(v):
                # (chunk_r,128) -> (8,128): groups of 8 sublanes are whole
                # vregs, so this is VALU-only vreg-wise adds (no XLU).
                return jnp.sum(v.reshape(chunk_r // 8, 8, _LANES), axis=0)

            def chunk_body(c, carry):
                cp, cn, sp, sn = carry
                r0 = pl.multiple_of(c * chunk_r, chunk_r)
                x = x_ref[pl.ds(r0, chunk_r), :].astype(jnp.float32)
                t = t_ref[pl.ds(r0, chunk_r), :]
                pos = t == 1
                neg = t == 0
                if masked:
                    # Mask garbage rows in the overhanging edge block; the
                    # selects below then kill any NaN/Inf from garbage logits.
                    rid = (lax.broadcasted_iota(jnp.int32, (chunk_r, _LANES), 0)
                           + (row_base + r0))
                    valid = rid < rows
                    pos = jnp.logical_and(pos, valid)
                    neg = jnp.logical_and(neg, valid)
                # Numerically stable BCE-with-logits:
                #   max(x,0) - x*t + log1p(exp(-|x|))
                # Only targets in {0,1} ever get summed, and for those t == pos.
                bce = (jnp.maximum(x, 0.0) - jnp.where(pos, x, zero)
                       + jnp.log1p(jnp.exp(-jnp.abs(x))))
                cp = cp + fold(jnp.where(pos, one, zero))
                cn = cn + fold(jnp.where(neg, one, zero))
                sp = sp + fold(jnp.where(pos, bce, zero))
                sn = sn + fold(jnp.where(neg, bce, zero))
                return cp, cn, sp, sn

            init = (jnp.zeros((8, _LANES), jnp.float32),) * 4
            cp, cn, sp, sn = lax.fori_loop(0, n_chunks, chunk_body, init)
            # NOTE: f32 accumulation -> counts exact up to ~2^24 elems/slice.
            acc_ref[0, 0] += cp
            acc_ref[0, 1] += cn
            acc_ref[0, 2] += sp
            acc_ref[0, 3] += sn

        # Interior blocks are fully backed by real (or 128-pad, target==2)
        # data -> no masking in the steady state.
        @pl.when(w < n_unmasked)
        def _interior():
            accumulate(False)

        if needs_tail_mask:
            @pl.when(w == total_blocks - 1)
            def _tail():
                accumulate(True)

        # Work items with w >= total_blocks are clamped duplicates of the last
        # block (see index_map); they fall through without accumulating.

    return kernel


@functools.partial(jax.jit, static_argnames=("coeff_bce",))
def boundary_loss(bd_pre, bd_gt, coeff_bce=20.0):
    """JAX/Pallas equivalent of BondaryLoss.forward(bd_pre, bd_gt).

    Accepts narrow input dtypes (e.g. bf16 logits, int8 targets); all math is
    done in f32 inside VMEM."""
    n, c, h, w_ = bd_pre.shape

    # NCHW -> NHWC -> flat for the logits; targets flattened in native order —
    # this mirrors the PyTorch module exactly (it permutes bd_pre but not
    # bd_gt).  For the common boundary-map case (c == 1) the permute is an
    # element-order no-op, so skip the materializing transpose.
    if c == 1:
        log_p = bd_pre.reshape(-1)
    else:
        log_p = jnp.transpose(bd_pre, (0, 2, 3, 1)).reshape(-1)
    tgt = bd_gt.reshape(-1)                  # keep native dtype: no host upcast

    num_elems = log_p.shape[0]               # denominator of the 'mean'

    # Lane alignment only: pad to a multiple of 128 iff required (rare odd
    # H*W); padded targets get 2 (neither class) so they carry zero weight.
    # TODO(synk): a fully copy-free path for 128-unaligned sizes needs a 1-D
    # BlockSpec + element masking; not worth it for this rare case.
    if num_elems % _LANES:
        pad = _LANES - num_elems % _LANES
        log_p = jnp.pad(log_p, (0, pad))
        tgt = jnp.pad(tgt, (0, pad), constant_values=2)
    rows = log_p.shape[0] // _LANES

    x2 = log_p.reshape(rows, _LANES)         # free reshapes (no copy)
    t2 = tgt.reshape(rows, _LANES)

    # Pick a large streaming tile (multiple of the inner chunk) such that the
    # double-buffered input blocks stay within a fixed VMEM budget on every
    # TPU generation (v7x only has 64 MiB physical VMEM per core).
    bytes_per_row = _LANES * (x2.dtype.itemsize + t2.dtype.itemsize)
    cap_rows = _IN_BUF_BUDGET // (2 * bytes_per_row)
    cap_rows = max(_CHUNK_R, (cap_rows // _CHUNK_R) * _CHUNK_R)
    tile_r = min(_MAX_TILE_R, cap_rows, _round_up(rows, _CHUNK_R))
    total_blocks = pl.cdiv(rows, tile_r)

    num_slices = min(_num_row_slices(), total_blocks)
    bps = pl.cdiv(total_blocks, num_slices)  # row-blocks per parallel slice
    grid = (num_slices, bps)

    def in_map(p, i):
        # Clamp so overhanging work items never issue out-of-range block DMAs;
        # their contribution is skipped inside the kernel.
        return (jnp.minimum(p * bps + i, total_blocks - 1), 0)

    kernel = _make_wbce_kernel(rows, tile_r, _CHUNK_R if tile_r >= _CHUNK_R else tile_r,
                               bps, total_blocks)

    dbl_buf_bytes = 2 * tile_r * _LANES * (x2.dtype.itemsize + t2.dtype.itemsize)
    vmem_limit = int(min(100 * 1024 * 1024, dbl_buf_bytes + (12 << 20)))
    out_bytes = num_slices * 4 * 8 * _LANES * 4

    acc = pl.pallas_call(
        kernel,
        out_shape=jax.ShapeDtypeStruct((num_slices, 4, 8, _LANES), jnp.float32),
        grid_spec=pltpu.PrefetchScalarGridSpec(
            num_scalar_prefetch=0,
            grid=grid,
            in_specs=[
                pl.BlockSpec((tile_r, _LANES), in_map),
                pl.BlockSpec((tile_r, _LANES), in_map),
            ],
            out_specs=pl.BlockSpec((1, 4, 8, _LANES), lambda p, i: (p, 0, 0, 0)),
        ),
        compiler_params=pltpu.CompilerParams(
            dimension_semantics=("parallel", "arbitrary"),
            vmem_limit_bytes=vmem_limit),
        cost_estimate=pl.CostEstimate(
            flops=16 * num_elems,
            transcendentals=2 * num_elems,
            bytes_accessed=(x2.size * x2.dtype.itemsize
                            + t2.size * t2.dtype.itemsize + out_bytes)),
    )(x2, t2)

    # Tiny finalize in host glue: cross-lane/scalar reduce of the partials.
    pos_num = jnp.sum(acc[:, 0])
    neg_num = jnp.sum(acc[:, 1])
    s_pos = jnp.sum(acc[:, 2])
    s_neg = jnp.sum(acc[:, 3])
    sum_num = pos_num + neg_num

    # loss = mean(weight * bce); weight = neg/sum on pos, pos/sum on neg, else 0.
    # (Like the PyTorch module, this yields NaN if there are no 0/1 targets.)
    weighted_sum = (neg_num / sum_num) * s_pos + (pos_num / sum_num) * s_neg
    return coeff_bce * weighted_sum / jnp.float32(num_elems)


def _reference_boundary_loss(bd_pre, bd_gt, coeff_bce=20.0):
    """Pure-JAX reference mirroring the PyTorch weighted_bce semantics."""
    log_p = jnp.transpose(bd_pre, (0, 2, 3, 1)).reshape(-1).astype(jnp.float32)
    t = bd_gt.reshape(-1).astype(jnp.float32)
    pos = t == 1.0
    neg = t == 0.0
    pos_num = jnp.sum(pos.astype(jnp.float32))
    neg_num = jnp.sum(neg.astype(jnp.float32))
    sum_num = pos_num + neg_num
    weight = jnp.where(pos, neg_num / sum_num,
                       jnp.where(neg, pos_num / sum_num, 0.0))
    bce = jnp.maximum(log_p, 0.0) - log_p * t + jnp.log1p(jnp.exp(-jnp.abs(log_p)))
    return coeff_bce * jnp.mean(weight * bce)


if __name__ == "__main__":
    key = jax.random.PRNGKey(0)

    checks = [
        (2, 1, 16, 16),     # tiny boundary map (C == 1), 128-aligned, no pad
        (2, 4, 16, 16),     # multi-channel path (exercises the NHWC permute)
        (1, 1, 15, 17),     # 255 elems -> exercises the rare 128-pad path
        (1, 1, 480, 640),   # single large block, chunked inner loop + tail mask
        (2, 1, 640, 960),   # multi-block: both parallel slices + masked tail
    ]
    for idx, (n, c, h, w) in enumerate(checks):
        k_pre, k_gt = jax.random.split(jax.random.fold_in(key, idx))
        bd_pre = jax.random.normal(k_pre, (n, c, h, w), dtype=jnp.float32)
        # Targets in {0, 1, 2}: 0/1 are the classes, 2 acts as "ignore" (weight 0).
        bd_gt = jax.random.randint(k_gt, (n, c, h, w), 0, 3).astype(jnp.float32)

        loss = jax.block_until_ready(boundary_loss(bd_pre, bd_gt, coeff_bce=20.0))
        ref = jax.block_until_ready(_reference_boundary_loss(bd_pre, bd_gt, 20.0))
        assert jnp.allclose(loss, ref, rtol=2e-5, atol=1e-6), (idx, loss, ref)

    # Narrow-dtype path: bf16 logits + int8 targets (3 B/elem HBM traffic).
    k_pre, k_gt = jax.random.split(jax.random.fold_in(key, 99))
    bd_pre = jax.random.normal(k_pre, (1, 1, 64, 96), dtype=jnp.float32)
    bd_gt = jax.random.randint(k_gt, (1, 1, 64, 96), 0, 3)
    loss = jax.block_until_ready(
        boundary_loss(bd_pre.astype(jnp.bfloat16), bd_gt.astype(jnp.int8)))
    ref = jax.block_until_ready(_reference_boundary_loss(
        bd_pre.astype(jnp.bfloat16).astype(jnp.float32),
        bd_gt.astype(jnp.float32), 20.0))
    assert jnp.allclose(loss, ref, rtol=2e-5, atol=1e-6), (loss, ref)

    print("KERNEL_OK")
</pallas_src>

<mosaic_0001>
module attributes {stable_mosaic.version = 11 : i64} {
  func.func @kernel(%arg0: i32, %arg1: i32, %arg2: memref<512x128xf32, #tpu.memory_space<vmem>>, %arg3: memref<512x128xf32, #tpu.memory_space<vmem>>, %arg4: memref<1x4x8x128xf32, #tpu.memory_space<vmem>>) attributes {dimension_semantics = [#tpu.dimension_semantics<parallel>, #tpu.dimension_semantics<arbitrary>], iteration_bounds = array<i64: 1, 1>, scalar_prefetch = 0 : i64, scratch_operands = 0 : i64, tpu.core_type = #tpu.core_type<tc>, window_params = [{transform_indices = @transform_0, window_bounds = array<i64: 512, 128>}, {transform_indices = @transform_1, window_bounds = array<i64: 512, 128>}, {transform_indices = @transform_2, window_bounds = array<i64: 1, 4, 8, 128>}]} {
    %c1_i32 = arith.constant 1 : i32
    %0 = arith.muli %arg0, %c1_i32 : i32
    %1 = arith.addi %0, %arg1 : i32
    %c0_i32 = arith.constant 0 : i32
    %2 = arith.cmpi eq, %arg1, %c0_i32 : i32
    %3 = arith.extui %2 : i1 to i32
    %c0_i32_0 = arith.constant 0 : i32
    %4 = arith.cmpi ne, %3, %c0_i32_0 : i32
    scf.if %4 {
      %cst = arith.constant 0.000000e+00 : f32
      %11 = vector.broadcast %cst : f32 to vector<1x4x8x128xf32>
      %c0 = arith.constant 0 : index
      %c0_5 = arith.constant 0 : index
      %c0_6 = arith.constant 0 : index
      %c0_7 = arith.constant 0 : index
      %12 = vector.load %arg4[%c0, %c0_5, %c0_6, %c0_7] : memref<1x4x8x128xf32, #tpu.memory_space<vmem>>, vector<1x4x8x128xf32>
      tpu.vector_store %arg4[%c0, %c0_5, %c0_6, %c0_7], %11 {strides = array<i32>} : memref<1x4x8x128xf32, #tpu.memory_space<vmem>>, vector<1x4x8x128xf32>,
    } else {
    }
    %c0_i32_1 = arith.constant 0 : i32
    %5 = arith.cmpi slt, %1, %c0_i32_1 : i32
    %6 = arith.extui %5 : i1 to i32
    %c0_i32_2 = arith.constant 0 : i32
    %7 = arith.cmpi ne, %6, %c0_i32_2 : i32
    scf.if %7 {
      %cst = arith.constant 0.000000e+00 : f32
      %11 = vector.broadcast %cst : f32 to vector<8x128xf32>
      %cst_5 = arith.constant 0.000000e+00 : f32
      %cst_6 = arith.constant 1.000000e+00 : f32
      %c0_i32_7 = arith.constant 0 : i32
      %c512_i32 = arith.constant 512 : i32
      %12 = arith.muli %c0_i32_7, %c512_i32 : i32
      %13 = tpu.assume_multiple %12, 512 : i32
      %14 = arith.index_cast %13 : i32 to index
      %c0 = arith.constant 0 : index
      %15 = vector.load %arg2[%14, %c0] : memref<512x128xf32, #tpu.memory_space<vmem>>, vector<512x128xf32>
      %16 = arith.index_cast %13 : i32 to index
      %c0_8 = arith.constant 0 : index
      %17 = vector.load %arg3[%16, %c0_8] : memref<512x128xf32, #tpu.memory_space<vmem>>, vector<512x128xf32>
      %cst_9 = arith.constant 1.000000e+00 : f32
      %18 = vector.broadcast %cst_9 : f32 to vector<512x128xf32>
      %19 = arith.cmpf oeq, %17, %18 : vector<512x128xf32>
      %cst_10 = arith.constant 0.000000e+00 : f32
      %20 = vector.broadcast %cst_10 : f32 to vector<512x128xf32>
      %21 = arith.cmpf oeq, %17, %20 : vector<512x128xf32>
      %cst_11 = arith.constant 0.000000e+00 : f32
      %22 = vector.broadcast %cst_11 : f32 to vector<512x128xf32>
      %23 = arith.maximumf %15, %22 : vector<512x128xf32>
      %24 = vector.broadcast %cst_5 : f32 to vector<512x128xf32>
      %25 = arith.select %19, %15, %24 : vector<512x128xi1>, vector<512x128xf32>
      %26 = arith.subf %23, %25 : vector<512x128xf32>
      %27 = math.absf %15 : vector<512x128xf32>
      %cst_12 = arith.constant 0.000000e+00 : f32
      %28 = vector.broadcast %cst_12 : f32 to vector<512x128xf32>
      %29 = arith.subf %28, %27 : vector<512x128xf32>
      %30 = math.exp %29 : vector<512x128xf32>
      %31 = math.log1p %30 : vector<512x128xf32>
      %32 = arith.addf %26, %31 : vector<512x128xf32>
      %33 = vector.broadcast %cst_6 : f32 to vector<512x128xf32>
      %34 = vector.broadcast %cst_5 : f32 to vector<512x128xf32>
      %35 = arith.select %19, %33, %34 : vector<512x128xi1>, vector<512x128xf32>
      %36 = vector.shape_cast %35 : vector<512x128xf32> to vector<64x8x128xf32>
      %cst_13 = arith.constant dense<0.000000e+00> : vector<8x128xf32>
      %37 = vector.multi_reduction <add>, %36, %cst_13 [0] : vector<64x8x128xf32> to vector<8x128xf32>
      %38 = arith.addf %11, %37 : vector<8x128xf32>
      %39 = vector.broadcast %cst_6 : f32 to vector<512x128xf32>
      %40 = vector.broadcast %cst_5 : f32 to vector<512x128xf32>
      %41 = arith.select %21, %39, %40 : vector<512x128xi1>, vector<512x128xf32>
      %42 = vector.shape_cast %41 : vector<512x128xf32> to vector<64x8x128xf32>
      %cst_14 = arith.constant dense<0.000000e+00> : vector<8x128xf32>
      %43 = vector.multi_reduction <add>, %42, %cst_14 [0] : vector<64x8x128xf32> to vector<8x128xf32>
      %44 = arith.addf %11, %43 : vector<8x128xf32>
      %45 = vector.broadcast %cst_5 : f32 to vector<512x128xf32>
      %46 = arith.select %19, %32, %45 : vector<512x128xi1>, vector<512x128xf32>
      %47 = vector.shape_cast %46 : vector<512x128xf32> to vector<64x8x128xf32>
      %cst_15 = arith.constant dense<0.000000e+00> : vector<8x128xf32>
      %48 = vector.multi_reduction <add>, %47, %cst_15 [0] : vector<64x8x128xf32> to vector<8x128xf32>
      %49 = arith.addf %11, %48 : vector<8x128xf32>
      %50 = vector.broadcast %cst_5 : f32 to vector<512x128xf32>
      %51 = arith.select %21, %32, %50 : vector<512x128xi1>, vector<512x128xf32>
      %52 = vector.shape_cast %51 : vector<512x128xf32> to vector<64x8x128xf32>
      %cst_16 = arith.constant dense<0.000000e+00> : vector<8x128xf32>
      %53 = vector.multi_reduction <add>, %52, %cst_16 [0] : vector<64x8x128xf32> to vector<8x128xf32>
      %54 = arith.addf %11, %53 : vector<8x128xf32>
      %c1_i32_17 = arith.constant 1 : i32
      %c0_18 = arith.constant 0 : index
      %c0_19 = arith.constant 0 : index
      %c0_20 = arith.constant 0 : index
      %c0_21 = arith.constant 0 : index
      %55 = vector.load %arg4[%c0_18, %c0_19, %c0_20, %c0_21] : memref<1x4x8x128xf32, #tpu.memory_space<vmem>>, vector<1x1x8x128xf32>
      %56 = vector.shape_cast %55 : vector<1x1x8x128xf32> to vector<8x128xf32>
      %57 = arith.addf %56, %38 : vector<8x128xf32>
      %c0_22 = arith.constant 0 : index
      %c0_23 = arith.constant 0 : index
      %c0_24 = arith.constant 0 : index
      %c0_25 = arith.constant 0 : index
      %58 = vector.load %arg4[%c0_22, %c0_23, %c0_24, %c0_25] : memref<1x4x8x128xf32, #tpu.memory_space<vmem>>, vector<1x1x8x128xf32>
      %59 = vector.shape_cast %58 : vector<1x1x8x128xf32> to vector<8x128xf32>
      %60 = vector.shape_cast %57 : vector<8x128xf32> to vector<1x1x8x128xf32>
      tpu.vector_store %arg4[%c0_22, %c0_23, %c0_24, %c0_25], %60 {strides = array<i32>} : memref<1x4x8x128xf32, #tpu.memory_space<vmem>>, vector<1x1x8x128xf32>,
      %c0_26 = arith.constant 0 : index
      %c1 = arith.constant 1 : index
      %c0_27 = arith.constant 0 : index
      %c0_28 = arith.constant 0 : index
      %61 = vector.load %arg4[%c0_26, %c1, %c0_27, %c0_28] : memref<1x4x8x128xf32, #tpu.memory_space<vmem>>, vector<1x1x8x128xf32>
      %62 = vector.shape_cast %61 : vector<1x1x8x128xf32> to vector<8x128xf32>
      %63 = arith.addf %62, %44 : vector<8x128xf32>
      %c0_29 = arith.constant 0 : index
      %c1_30 = arith.constant 1 : index
      %c0_31 = arith.constant 0 : index
      %c0_32 = arith.constant 0 : index
      %64 = vector.load %arg4[%c0_29, %c1_30, %c0_31, %c0_32] : memref<1x4x8x128xf32, #tpu.memory_space<vmem>>, vector<1x1x8x128xf32>
      %65 = vector.shape_cast %64 : vector<1x1x8x128xf32> to vector<8x128xf32>
      %66 = vector.shape_cast %63 : vector<8x128xf32> to vector<1x1x8x128xf32>
      tpu.vector_store %arg4[%c0_29, %c1_30, %c0_31, %c0_32], %66 {strides = array<i32>} : memref<1x4x8x128xf32, #tpu.memory_space<vmem>>, vector<1x1x8x128xf32>,
      %c0_33 = arith.constant 0 : index
      %c2 = arith.constant 2 : index
      %c0_34 = arith.constant 0 : index
      %c0_35 = arith.constant 0 : index
      %67 = vector.load %arg4[%c0_33, %c2, %c0_34, %c0_35] : memref<1x4x8x128xf32, #tpu.memory_space<vmem>>, vector<1x1x8x128xf32>
      %68 = vector.shape_cast %67 : vector<1x1x8x128xf32> to vector<8x128xf32>
      %69 = arith.addf %68, %49 : vector<8x128xf32>
      %c0_36 = arith.constant 0 : index
      %c2_37 = arith.constant 2 : index
      %c0_38 = arith.constant 0 : index
      %c0_39 = arith.constant 0 : index
      %70 = vector.load %arg4[%c0_36, %c2_37, %c0_38, %c0_39] : memref<1x4x8x128xf32, #tpu.memory_space<vmem>>, vector<1x1x8x128xf32>
      %71 = vector.shape_cast %70 : vector<1x1x8x128xf32> to vector<8x128xf32>
      %72 = vector.shape_cast %69 : vector<8x128xf32> to vector<1x1x8x128xf32>
      tpu.vector_store %arg4[%c0_36, %c2_37, %c0_38, %c0_39], %72 {strides = array<i32>} : memref<1x4x8x128xf32, #tpu.memory_space<vmem>>, vector<1x1x8x128xf32>,
      %c0_40 = arith.constant 0 : index
      %c3 = arith.constant 3 : index
      %c0_41 = arith.constant 0 : index
      %c0_42 = arith.constant 0 : index
      %73 = vector.load %arg4[%c0_40, %c3, %c0_41, %c0_42] : memref<1x4x8x128xf32, #tpu.memory_space<vmem>>, vector<1x1x8x128xf32>
      %74 = vector.shape_cast %73 : vector<1x1x8x128xf32> to vector<8x128xf32>
      %75 = arith.addf %74, %54 : vector<8x128xf32>
      %c0_43 = arith.constant 0 : index
      %c3_44 = arith.constant 3 : index
      %c0_45 = arith.constant 0 : index
      %c0_46 = arith.constant 0 : index
      %76 = vector.load %arg4[%c0_43, %c3_44, %c0_45, %c0_46] : memref<1x4x8x128xf32, #tpu.memory_space<vmem>>, vector<1x1x8x128xf32>
      %77 = vector.shape_cast %76 : vector<1x1x8x128xf32> to vector<8x128xf32>
      %78 = vector.shape_cast %75 : vector<8x128xf32> to vector<1x1x8x128xf32>
      tpu.vector_store %arg4[%c0_43, %c3_44, %c0_45, %c0_46], %78 {strides = array<i32>} : memref<1x4x8x128xf32, #tpu.memory_space<vmem>>, vector<1x1x8x128xf32>,
    } else {
    }
    %c0_i32_3 = arith.constant 0 : i32
    %8 = arith.cmpi eq, %1, %c0_i32_3 : i32
    %9 = arith.extui %8 : i1 to i32
    %c0_i32_4 = arith.constant 0 : i32
    %10 = arith.cmpi ne, %9, %c0_i32_4 : i32
    scf.if %10 {
      %c512_i32 = arith.constant 512 : i32
      %11 = arith.muli %1, %c512_i32 : i32
      %cst = arith.constant 0.000000e+00 : f32
      %12 = vector.broadcast %cst : f32 to vector<8x128xf32>
      %cst_5 = arith.constant 0.000000e+00 : f32
      %cst_6 = arith.constant 1.000000e+00 : f32
      %c0_i32_7 = arith.constant 0 : i32
      %c512_i32_8 = arith.constant 512 : i32
      %13 = arith.muli %c0_i32_7, %c512_i32_8 : i32
      %14 = tpu.assume_multiple %13, 512 : i32
      %15 = arith.index_cast %14 : i32 to index
      %c0 = arith.constant 0 : index
      %16 = vector.load %arg2[%15, %c0] : memref<512x128xf32, #tpu.memory_space<vmem>>, vector<512x128xf32>
      %17 = arith.index_cast %14 : i32 to index
      %c0_9 = arith.constant 0 : index
      %18 = vector.load %arg3[%17, %c0_9] : memref<512x128xf32, #tpu.memory_space<vmem>>, vector<512x128xf32>
      %cst_10 = arith.constant 1.000000e+00 : f32
      %19 = vector.broadcast %cst_10 : f32 to vector<512x128xf32>
      %20 = arith.cmpf oeq, %18, %19 : vector<512x128xf32>
      %cst_11 = arith.constant 0.000000e+00 : f32
      %21 = vector.broadcast %cst_11 : f32 to vector<512x128xf32>
      %22 = arith.cmpf oeq, %18, %21 : vector<512x128xf32>
      %23 = tpu.iota {dimensions = array<i32: 0>} : vector<512x128xi32>
      %24 = arith.addi %11, %14 : i32
      %25 = vector.broadcast %24 : i32 to vector<512x128xi32>
      %26 = arith.addi %23, %25 : vector<512x128xi32>
      %c4_i32 = arith.constant 4 : i32
      %27 = vector.broadcast %c4_i32 : i32 to vector<512x128xi32>
      %28 = arith.cmpi slt, %26, %27 : vector<512x128xi32>
      %29 = arith.andi %20, %28 : vector<512x128xi1>
      %30 = arith.andi %22, %28 : vector<512x128xi1>
      %cst_12 = arith.constant 0.000000e+00 : f32
      %31 = vector.broadcast %cst_12 : f32 to vector<512x128xf32>
      %32 = arith.maximumf %16, %31 : vector<512x128xf32>
      %33 = vector.broadcast %cst_5 : f32 to vector<512x128xf32>
      %34 = arith.select %29, %16, %33 : vector<512x128xi1>, vector<512x128xf32>
      %35 = arith.subf %32, %34 : vector<512x128xf32>
      %36 = math.absf %16 : vector<512x128xf32>
      %cst_13 = arith.constant 0.000000e+00 : f32
      %37 = vector.broadcast %cst_13 : f32 to vector<512x128xf32>
      %38 = arith.subf %37, %36 : vector<512x128xf32>
      %39 = math.exp %38 : vector<512x128xf32>
      %40 = math.log1p %39 : vector<512x128xf32>
      %41 = arith.addf %35, %40 : vector<512x128xf32>
      %42 = vector.broadcast %cst_6 : f32 to vector<512x128xf32>
      %43 = vector.broadcast %cst_5 : f32 to vector<512x128xf32>
      %44 = arith.select %29, %42, %43 : vector<512x128xi1>, vector<512x128xf32>
      %45 = vector.shape_cast %44 : vector<512x128xf32> to vector<64x8x128xf32>
      %cst_14 = arith.constant dense<0.000000e+00> : vector<8x128xf32>
      %46 = vector.multi_reduction <add>, %45, %cst_14 [0] : vector<64x8x128xf32> to vector<8x128xf32>
      %47 = arith.addf %12, %46 : vector<8x128xf32>
      %48 = vector.broadcast %cst_6 : f32 to vector<512x128xf32>
      %49 = vector.broadcast %cst_5 : f32 to vector<512x128xf32>
      %50 = arith.select %30, %48, %49 : vector<512x128xi1>, vector<512x128xf32>
      %51 = vector.shape_cast %50 : vector<512x128xf32> to vector<64x8x128xf32>
      %cst_15 = arith.constant dense<0.000000e+00> : vector<8x128xf32>
      %52 = vector.multi_reduction <add>, %51, %cst_15 [0] : vector<64x8x128xf32> to vector<8x128xf32>
      %53 = arith.addf %12, %52 : vector<8x128xf32>
      %54 = vector.broadcast %cst_5 : f32 to vector<512x128xf32>
      %55 = arith.select %29, %41, %54 : vector<512x128xi1>, vector<512x128xf32>
      %56 = vector.shape_cast %55 : vector<512x128xf32> to vector<64x8x128xf32>
      %cst_16 = arith.constant dense<0.000000e+00> : vector<8x128xf32>
      %57 = vector.multi_reduction <add>, %56, %cst_16 [0] : vector<64x8x128xf32> to vector<8x128xf32>
      %58 = arith.addf %12, %57 : vector<8x128xf32>
      %59 = vector.broadcast %cst_5 : f32 to vector<512x128xf32>
      %60 = arith.select %30, %41, %59 : vector<512x128xi1>, vector<512x128xf32>
      %61 = vector.shape_cast %60 : vector<512x128xf32> to vector<64x8x128xf32>
      %cst_17 = arith.constant dense<0.000000e+00> : vector<8x128xf32>
      %62 = vector.multi_reduction <add>, %61, %cst_17 [0] : vector<64x8x128xf32> to vector<8x128xf32>
      %63 = arith.addf %12, %62 : vector<8x128xf32>
      %c1_i32_18 = arith.constant 1 : i32
      %c0_19 = arith.constant 0 : index
      %c0_20 = arith.constant 0 : index
      %c0_21 = arith.constant 0 : index
      %c0_22 = arith.constant 0 : index
      %64 = vector.load %arg4[%c0_19, %c0_20, %c0_21, %c0_22] : memref<1x4x8x128xf32, #tpu.memory_space<vmem>>, vector<1x1x8x128xf32>
      %65 = vector.shape_cast %64 : vector<1x1x8x128xf32> to vector<8x128xf32>
      %66 = arith.addf %65, %47 : vector<8x128xf32>
      %c0_23 = arith.constant 0 : index
      %c0_24 = arith.constant 0 : index
      %c0_25 = arith.constant 0 : index
      %c0_26 = arith.constant 0 : index
      %67 = vector.load %arg4[%c0_23, %c0_24, %c0_25, %c0_26] : memref<1x4x8x128xf32, #tpu.memory_space<vmem>>, vector<1x1x8x128xf32>
      %68 = vector.shape_cast %67 : vector<1x1x8x128xf32> to vector<8x128xf32>
      %69 = vector.shape_cast %66 : vector<8x128xf32> to vector<1x1x8x128xf32>
      tpu.vector_store %arg4[%c0_23, %c0_24, %c0_25, %c0_26], %69 {strides = array<i32>} : memref<1x4x8x128xf32, #tpu.memory_space<vmem>>, vector<1x1x8x128xf32>,
      %c0_27 = arith.constant 0 : index
      %c1 = arith.constant 1 : index
      %c0_28 = arith.constant 0 : index
      %c0_29 = arith.constant 0 : index
      %70 = vector.load %arg4[%c0_27, %c1, %c0_28, %c0_29] : memref<1x4x8x128xf32, #tpu.memory_space<vmem>>, vector<1x1x8x128xf32>
      %71 = vector.shape_cast %70 : vector<1x1x8x128xf32> to vector<8x128xf32>
      %72 = arith.addf %71, %53 : vector<8x128xf32>
      %c0_30 = arith.constant 0 : index
      %c1_31 = arith.constant 1 : index
      %c0_32 = arith.constant 0 : index
      %c0_33 = arith.constant 0 : index
      %73 = vector.load %arg4[%c0_30, %c1_31, %c0_32, %c0_33] : memref<1x4x8x128xf32, #tpu.memory_space<vmem>>, vector<1x1x8x128xf32>
      %74 = vector.shape_cast %73 : vector<1x1x8x128xf32> to vector<8x128xf32>
      %75 = vector.shape_cast %72 : vector<8x128xf32> to vector<1x1x8x128xf32>
      tpu.vector_store %arg4[%c0_30, %c1_31, %c0_32, %c0_33], %75 {strides = array<i32>} : memref<1x4x8x128xf32, #tpu.memory_space<vmem>>, vector<1x1x8x128xf32>,
      %c0_34 = arith.constant 0 : index
      %c2 = arith.constant 2 : index
      %c0_35 = arith.constant 0 : index
      %c0_36 = arith.constant 0 : index
      %76 = vector.load %arg4[%c0_34, %c2, %c0_35, %c0_36] : memref<1x4x8x128xf32, #tpu.memory_space<vmem>>, vector<1x1x8x128xf32>
      %77 = vector.shape_cast %76 : vector<1x1x8x128xf32> to vector<8x128xf32>
      %78 = arith.addf %77, %58 : vector<8x128xf32>
      %c0_37 = arith.constant 0 : index
      %c2_38 = arith.constant 2 : index
      %c0_39 = arith.constant 0 : index
      %c0_40 = arith.constant 0 : index
      %79 = vector.load %arg4[%c0_37, %c2_38, %c0_39, %c0_40] : memref<1x4x8x128xf32, #tpu.memory_space<vmem>>, vector<1x1x8x128xf32>
      %80 = vector.shape_cast %79 : vector<1x1x8x128xf32> to vector<8x128xf32>
      %81 = vector.shape_cast %78 : vector<8x128xf32> to vector<1x1x8x128xf32>
      tpu.vector_store %arg4[%c0_37, %c2_38, %c0_39, %c0_40], %81 {strides = array<i32>} : memref<1x4x8x128xf32, #tpu.memory_space<vmem>>, vector<1x1x8x128xf32>,
      %c0_41 = arith.constant 0 : index
      %c3 = arith.constant 3 : index
      %c0_42 = arith.constant 0 : index
      %c0_43 = arith.constant 0 : index
      %82 = vector.load %arg4[%c0_41, %c3, %c0_42, %c0_43] : memref<1x4x8x128xf32, #tpu.memory_space<vmem>>, vector<1x1x8x128xf32>
      %83 = vector.shape_cast %82 : vector<1x1x8x128xf32> to vector<8x128xf32>
      %84 = arith.addf %83, %63 : vector<8x128xf32>
      %c0_44 = arith.constant 0 : index
      %c3_45 = arith.constant 3 : index
      %c0_46 = arith.constant 0 : index
      %c0_47 = arith.constant 0 : index
      %85 = vector.load %arg4[%c0_44, %c3_45, %c0_46, %c0_47] : memref<1x4x8x128xf32, #tpu.memory_space<vmem>>, vector<1x1x8x128xf32>
      %86 = vector.shape_cast %85 : vector<1x1x8x128xf32> to vector<8x128xf32>
      %87 = vector.shape_cast %84 : vector<8x128xf32> to vector<1x1x8x128xf32>
      tpu.vector_store %arg4[%c0_44, %c3_45, %c0_46, %c0_47], %87 {strides = array<i32>} : memref<1x4x8x128xf32, #tpu.memory_space<vmem>>, vector<1x1x8x128xf32>,
    } else {
    }
    return
  }
  func.func @transform_0(%arg0: i32, %arg1: i32) -> (i32, i32) {
    %c1_i32 = arith.constant 1 : i32
    %0 = arith.muli %arg0, %c1_i32 : i32
    %1 = arith.addi %0, %arg1 : i32
    %c0_i32 = arith.constant 0 : i32
    %2 = arith.minsi %1, %c0_i32 : i32
    %c0_i32_0 = arith.constant 0 : i32
    %c0_i32_1 = arith.constant 0 : i32
    return %2, %c0_i32_0 : i32, i32
  }
  func.func @transform_1(%arg0: i32, %arg1: i32) -> (i32, i32) {
    %c1_i32 = arith.constant 1 : i32
    %0 = arith.muli %arg0, %c1_i32 : i32
    %1 = arith.addi %0, %arg1 : i32
    %c0_i32 = arith.constant 0 : i32
    %2 = arith.minsi %1, %c0_i32 : i32
    %c0_i32_0 = arith.constant 0 : i32
    %c0_i32_1 = arith.constant 0 : i32
    return %2, %c0_i32_0 : i32, i32
  }
  func.func @transform_2(%arg0: i32, %arg1: i32) -> (i32, i32, i32, i32) {
    %c0_i32 = arith.constant 0 : i32
    %c0_i32_0 = arith.constant 0 : i32
    %c0_i32_1 = arith.constant 0 : i32
    %c0_i32_2 = arith.constant 0 : i32
    return %arg0, %c0_i32, %c0_i32_0, %c0_i32_1 : i32, i32, i32, i32
  }
}

</mosaic_0001>

<llo_original>
// kernel: boundary_loss.1
$region0: #{boundary_loss.1}
  #allocation0 [shape = 'u32[]', space=smem, size = 0x4, offset = 0x4, fixed_abs, tag = 'smem constant byte address 0x4 - core index']
  #allocation1 [shape = 'u32[144,128]{1,0:T(1,128)}', space=vmem, size = 0x12000, scoped, tag = 'internal scratch']
  %s0 = inlined_call_operand.vmem [shape: f32[4,128], index: 0, kind: input, shape index: {}]
  %s1 = inlined_call_operand.vmem [shape: f32[4,128], index: 1, kind: input, shape index: {}]
  %s2 = inlined_call_operand.vmem [shape: f32[1,4,8,128], index: 2, kind: output, shape index: {}]
  %s3 = sld [smem:[#allocation0]]
  $region30: #{boundary_loss.1} parent=0
    _
  %s5 = ssub.s32 1, %s3
  %s6 = scalar_select 0, %s5, %s3
  // Predicated region
  $region2: #{boundary_loss.1} parent=0 // pred_check
    _
  $region3: #{boundary_loss.1} parent=0 // pred_check_branch
    %8 = sbr.rel (0) target = $region5
  $region4: #{boundary_loss.1} parent=0 // pred_region
    %s9 = sadd.s32 0, 0
    %p10 = scmp.lt.s32.totalorder %s9, 0
    %s11 = scalar_select %p10, %s9, 0
    %s12 = smul.u32 128, %s11
    %s13 = ssub.s32 1, %s12
    %s14 = smul.u32 64, %s13
    %p15 = scmp.lt.s32.totalorder %s12, 0
    %s16 = scalar_select %p15, %s12, 0
    %s17 = smul.addr %s16, 4
    %s18 = scalar_lea.vmem %s0, %s17
    %s19 = sadd.s32 0, 0
    %p20 = scmp.lt.s32.totalorder %s19, 0
    %s21 = scalar_select %p20, %s19, 0
    %s22 = smul.u32 128, %s21
    %s23 = ssub.s32 1, %s22
    %s24 = smul.u32 64, %s23
  $region5: #{boundary_loss.1} parent=0 // pred_fallthru
    _
  // Predicated region
  $region6: #{boundary_loss.1} parent=0 // pred_check
    _
  $region7: #{boundary_loss.1} parent=0 // pred_check_branch
    %26 = sbr.rel (0) target = $region9
  $region8: #{boundary_loss.1} parent=0 // pred_region
    %s27 = sadd.s32 0, 0
    %p28 = scmp.lt.s32.totalorder %s27, 0
    %s29 = scalar_select %p28, %s27, 0
    %s30 = smul.u32 128, %s29
    %s31 = ssub.s32 1, %s30
    %s32 = smul.u32 64, %s31
    %p33 = scmp.lt.s32.totalorder %s30, 0
    %s34 = scalar_select %p33, %s30, 0
    %s35 = smul.addr %s34, 4
    %s36 = scalar_lea.vmem %s1, %s35
    %s37 = sadd.s32 0, 0
    %p38 = scmp.lt.s32.totalorder %s37, 0
    %s39 = scalar_select %p38, %s37, 0
    %s40 = smul.u32 128, %s39
    %s41 = ssub.s32 1, %s40
    %s42 = smul.u32 64, %s41
  $region9: #{boundary_loss.1} parent=0 // pred_fallthru
    _
  %s43 = sadd.s32 0, 0
  %p44 = scmp.lt.s32.totalorder %s43, 0
  %s45 = scalar_select %p44, %s43, 0
  %s46 = smul.u32 128, %s45
  %s47 = ssub.s32 1, %s46
  %s48 = smul.u32 64, %s47
  %p49 = scmp.lt.s32.totalorder %s46, 0
  %s50 = scalar_select %p49, %s46, 0
  %s51 = smul.addr %s50, 4
  %s52 = scalar_lea.vmem %s0, %s51
  %s53 = sadd.s32 0, 0
  %p54 = scmp.lt.s32.totalorder %s53, 0
  %s55 = scalar_select %p54, %s53, 0
  %s56 = smul.u32 128, %s55
  %s57 = ssub.s32 1, %s56
  %s58 = smul.u32 64, %s57
  %p59 = scmp.lt.s32.totalorder %s56, 0
  %s60 = scalar_select %p59, %s56, 0
  %s61 = smul.addr %s60, 4
  %s62 = scalar_lea.vmem %s1, %s61
  %s63 = sadd.s32 0, 0
  %p64 = scmp.lt.s32.totalorder %s63, 0
  %s65 = scalar_select %p64, %s63, 0
  %s66 = smul.u32 128, %s65
  %s67 = ssub.s32 1, %s66
  %s68 = smul.u32 64, %s67
  %p69 = scmp.lt.s32.totalorder %s66, 0
  %s70 = scalar_select %p69, %s66, 0
  %s71 = smul.addr %s70, 4
  %s72 = scalar_lea.vmem %s0, %s71
  %s73 = sadd.s32 0, 0
  %p74 = scmp.lt.s32.totalorder %s73, 0
  %s75 = scalar_select %p74, %s73, 0
  %s76 = smul.u32 128, %s75
  %s77 = ssub.s32 1, %s76
  %s78 = smul.u32 64, %s77
  %s79 = sadd.s32 0, 0
  %p80 = scmp.lt.s32.totalorder %s79, 0
  %s81 = scalar_select %p80, %s79, 0
  %s82 = smul.u32 128, %s81
  %s83 = ssub.s32 1, %s82
  %s84 = smul.u32 64, %s83
  %p85 = scmp.lt.s32.totalorder %s82, 0
  %s86 = scalar_select %p85, %s82, 0
  %s87 = smul.addr %s86, 4
  %s88 = scalar_lea.vmem %s1, %s87
  %s89 = sadd.s32 0, 0
  %p90 = scmp.lt.s32.totalorder %s89, 0
  %s91 = scalar_select %p90, %s89, 0
  %s92 = smul.u32 128, %s91
  %s93 = ssub.s32 1, %s92
  %s94 = smul.u32 64, %s93
  %s95 = sadd.s32 0, 0
  %p96 = scmp.eq.s32.totalorder 0, 0
  // Predicated region
  $region10: #{boundary_loss.1} parent=0 // pred_check
    %p97 = pneg %p96
  $region11: #{boundary_loss.1} parent=0 // pred_check_branch
    %99 = sbr.rel (%p97) target = $region13
  $region12: #{boundary_loss.1} parent=0 // pred_region
    %100 = vst [vmem:[%s2] sm:$0xff] 0.0
    %101 = vst [vmem:[%s2 + $0x8] sm:$0xff] 0.0
    %102 = vst [vmem:[%s2 + $0x10] sm:$0xff] 0.0
    %103 = vst [vmem:[%s2 + $0x18] sm:$0xff] 0.0
  $region13: #{boundary_loss.1} parent=0 // pred_fallthru
    _
  %p104 = scmp.lt.s32.totalorder %s95, 0
  // Predicated region
  $region14: #{boundary_loss.1} parent=0 // pred_check
    %p105 = pneg %p104
  $region15: #{boundary_loss.1} parent=0 // pred_check_branch
    %107 = sbr.rel (%p105) target = $region17
  $region16: #{boundary_loss.1} parent=0 // pred_region
    %v108 = vld [vmem:[%s72] sm:$0xff]
    %v109 = vld [vmem:[%s72 + $0x8] sm:$0xff]
    %v110 = vld [vmem:[%s72 + $0x10] sm:$0xff]
    %v111 = vld [vmem:[%s72 + $0x18] sm:$0xff]
    %v112 = vld [vmem:[%s72 + $0x20] sm:$0xff]
    %v113 = vld [vmem:[%s72 + $0x28] sm:$0xff]
    %v114 = vld [vmem:[%s72 + $0x30] sm:$0xff]
    %v115 = vld [vmem:[%s72 + $0x38] sm:$0xff]
    %v116 = vld [vmem:[%s72 + $0x40] sm:$0xff]
    %v117 = vld [vmem:[%s72 + $0x48] sm:$0xff]
    %v118 = vld [vmem:[%s72 + $0x50] sm:$0xff]
    %v119 = vld [vmem:[%s72 + $0x58] sm:$0xff]
    %v120 = vld [vmem:[%s72 + $0x60] sm:$0xff]
    %v121 = vld [vmem:[%s72 + $0x68] sm:$0xff]
    %v122 = vld [vmem:[%s72 + $0x70] sm:$0xff]
    %v123 = vld [vmem:[%s72 + $0x78] sm:$0xff]
    %v124 = vld [vmem:[%s72 + $0x80] sm:$0xff]
    %v125 = vld [vmem:[%s72 + $0x88] sm:$0xff]
    %v126 = vld [vmem:[%s72 + $0x90] sm:$0xff]
    %v127 = vld [vmem:[%s72 + $0x98] sm:$0xff]
    %v128 = vld [vmem:[%s72 + $0xa0] sm:$0xff]
    %v129 = vld [vmem:[%s72 + $0xa8] sm:$0xff]
    %v130 = vld [vmem:[%s72 + $0xb0] sm:$0xff]
    %v131 = vld [vmem:[%s72 + $0xb8] sm:$0xff]
    %v132 = vld [vmem:[%s72 + $0xc0] sm:$0xff]
    %v133 = vld [vmem:[%s72 + $0xc8] sm:$0xff]
    %v134 = vld [vmem:[%s72 + $0xd0] sm:$0xff]
    %v135 = vld [vmem:[%s72 + $0xd8] sm:$0xff]
    %v136 = vld [vmem:[%s72 + $0xe0] sm:$0xff]
    %v137 = vld [vmem:[%s72 + $0xe8] sm:$0xff]
    %v138 = vld [vmem:[%s72 + $0xf0] sm:$0xff]
    %v139 = vld [vmem:[%s72 + $0xf8] sm:$0xff]
    %v140 = vld [vmem:[%s72 + $0x100] sm:$0xff]
    %v141 = vld [vmem:[%s72 + $0x108] sm:$0xff]
    %v142 = vld [vmem:[%s72 + $0x110] sm:$0xff]
    %v143 = vld [vmem:[%s72 + $0x118] sm:$0xff]
    %v144 = vld [vmem:[%s72 + $0x120] sm:$0xff]
    %v145 = vld [vmem:[%s72 + $0x128] sm:$0xff]
    %v146 = vld [vmem:[%s72 + $0x130] sm:$0xff]
    %v147 = vld [vmem:[%s72 + $0x138] sm:$0xff]
    %v148 = vld [vmem:[%s72 + $0x140] sm:$0xff]
    %v149 = vld [vmem:[%s72 + $0x148] sm:$0xff]
    %v150 = vld [vmem:[%s72 + $0x150] sm:$0xff]
    %v151 = vld [vmem:[%s72 + $0x158] sm:$0xff]
    %v152 = vld [vmem:[%s72 + $0x160] sm:$0xff]
    %v153 = vld [vmem:[%s72 + $0x168] sm:$0xff]
    %v154 = vld [vmem:[%s72 + $0x170] sm:$0xff]
    %v155 = vld [vmem:[%s72 + $0x178] sm:$0xff]
    %v156 = vld [vmem:[%s72 + $0x180] sm:$0xff]
    %v157 = vld [vmem:[%s72 + $0x188] sm:$0xff]
    %v158 = vld [vmem:[%s72 + $0x190] sm:$0xff]
    %v159 = vld [vmem:[%s72 + $0x198] sm:$0xff]
    %v160 = vld [vmem:[%s72 + $0x1a0] sm:$0xff]
    %v161 = vld [vmem:[%s72 + $0x1a8] sm:$0xff]
    %v162 = vld [vmem:[%s72 + $0x1b0] sm:$0xff]
    %v163 = vld [vmem:[%s72 + $0x1b8] sm:$0xff]
    %v164 = vld [vmem:[%s72 + $0x1c0] sm:$0xff]
    %v165 = vld [vmem:[%s72 + $0x1c8] sm:$0xff]
    %v166 = vld [vmem:[%s72 + $0x1d0] sm:$0xff]
    %v167 = vld [vmem:[%s72 + $0x1d8] sm:$0xff]
    %v168 = vld [vmem:[%s72 + $0x1e0] sm:$0xff]
    %v169 = vld [vmem:[%s72 + $0x1e8] sm:$0xff]
    %v170 = vld [vmem:[%s72 + $0x1f0] sm:$0xff]
    %v171 = vld [vmem:[%s72 + $0x1f8] sm:$0xff]
    %v172 = vld [vmem:[%s88] sm:$0xff]
    %v173 = vld [vmem:[%s88 + $0x8] sm:$0xff]
    %v174 = vld [vmem:[%s88 + $0x10] sm:$0xff]
    %v175 = vld [vmem:[%s88 + $0x18] sm:$0xff]
    %v176 = vld [vmem:[%s88 + $0x20] sm:$0xff]
    %v177 = vld [vmem:[%s88 + $0x28] sm:$0xff]
    %v178 = vld [vmem:[%s88 + $0x30] sm:$0xff]
    %v179 = vld [vmem:[%s88 + $0x38] sm:$0xff]
    %v180 = vld [vmem:[%s88 + $0x40] sm:$0xff]
    %v181 = vld [vmem:[%s88 + $0x48] sm:$0xff]
    %v182 = vld [vmem:[%s88 + $0x50] sm:$0xff]
    %v183 = vld [vmem:[%s88 + $0x58] sm:$0xff]
    %v184 = vld [vmem:[%s88 + $0x60] sm:$0xff]
    %v185 = vld [vmem:[%s88 + $0x68] sm:$0xff]
    %v186 = vld [vmem:[%s88 + $0x70] sm:$0xff]
    %v187 = vld [vmem:[%s88 + $0x78] sm:$0xff]
    %v188 = vld [vmem:[%s88 + $0x80] sm:$0xff]
    %v189 = vld [vmem:[%s88 + $0x88] sm:$0xff]
    %v190 = vld [vmem:[%s88 + $0x90] sm:$0xff]
    %v191 = vld [vmem:[%s88 + $0x98] sm:$0xff]
    %v192 = vld [vmem:[%s88 + $0xa0] sm:$0xff]
    %v193 = vld [vmem:[%s88 + $0xa8] sm:$0xff]
    %v194 = vld [vmem:[%s88 + $0xb0] sm:$0xff]
    %v195 = vld [vmem:[%s88 + $0xb8] sm:$0xff]
    %v196 = vld [vmem:[%s88 + $0xc0] sm:$0xff]
    %v197 = vld [vmem:[%s88 + $0xc8] sm:$0xff]
    %v198 = vld [vmem:[%s88 + $0xd0] sm:$0xff]
    %v199 = vld [vmem:[%s88 + $0xd8] sm:$0xff]
    %v200 = vld [vmem:[%s88 + $0xe0] sm:$0xff]
    %v201 = vld [vmem:[%s88 + $0xe8] sm:$0xff]
    %v202 = vld [vmem:[%s88 + $0xf0] sm:$0xff]
    %v203 = vld [vmem:[%s88 + $0xf8] sm:$0xff]
    %v204 = vld [vmem:[%s88 + $0x100] sm:$0xff]
    %v205 = vld [vmem:[%s88 + $0x108] sm:$0xff]
    %v206 = vld [vmem:[%s88 + $0x110] sm:$0xff]
    %v207 = vld [vmem:[%s88 + $0x118] sm:$0xff]
    %v208 = vld [vmem:[%s88 + $0x120] sm:$0xff]
    %v209 = vld [vmem:[%s88 + $0x128] sm:$0xff]
    %v210 = vld [vmem:[%s88 + $0x130] sm:$0xff]
    %v211 = vld [vmem:[%s88 + $0x138] sm:$0xff]
    %v212 = vld [vmem:[%s88 + $0x140] sm:$0xff]
    %v213 = vld [vmem:[%s88 + $0x148] sm:$0xff]
    %v214 = vld [vmem:[%s88 + $0x150] sm:$0xff]
    %v215 = vld [vmem:[%s88 + $0x158] sm:$0xff]
    %v216 = vld [vmem:[%s88 + $0x160] sm:$0xff]
    %v217 = vld [vmem:[%s88 + $0x168] sm:$0xff]
    %v218 = vld [vmem:[%s88 + $0x170] sm:$0xff]
    %v219 = vld [vmem:[%s88 + $0x178] sm:$0xff]
    %v220 = vld [vmem:[%s88 + $0x180] sm:$0xff]
    %v221 = vld [vmem:[%s88 + $0x188] sm:$0xff]
    %v222 = vld [vmem:[%s88 + $0x190] sm:$0xff]
    %v223 = vld [vmem:[%s88 + $0x198] sm:$0xff]
    %v224 = vld [vmem:[%s88 + $0x1a0] sm:$0xff]
    %v225 = vld [vmem:[%s88 + $0x1a8] sm:$0xff]
    %v226 = vld [vmem:[%s88 + $0x1b0] sm:$0xff]
    %v227 = vld [vmem:[%s88 + $0x1b8] sm:$0xff]
    %v228 = vld [vmem:[%s88 + $0x1c0] sm:$0xff]
    %v229 = vld [vmem:[%s88 + $0x1c8] sm:$0xff]
    %v230 = vld [vmem:[%s88 + $0x1d0] sm:$0xff]
    %v231 = vld [vmem:[%s88 + $0x1d8] sm:$0xff]
    %v232 = vld [vmem:[%s88 + $0x1e0] sm:$0xff]
    %v233 = vld [vmem:[%s88 + $0x1e8] sm:$0xff]
    %v234 = vld [vmem:[%s88 + $0x1f0] sm:$0xff]
    %v235 = vld [vmem:[%s88 + $0x1f8] sm:$0xff]
    %vm236 = vcmp.eq.f32.partialorder %v172, 1.0
    %vm237 = vcmp.eq.f32.partialorder %v173, 1.0
    %vm238 = vcmp.eq.f32.partialorder %v174, 1.0
    %vm239 = vcmp.eq.f32.partialorder %v175, 1.0
    %vm240 = vcmp.eq.f32.partialorder %v176, 1.0
    %vm241 = vcmp.eq.f32.partialorder %v177, 1.0
    %vm242 = vcmp.eq.f32.partialorder %v178, 1.0
    %vm243 = vcmp.eq.f32.partialorder %v179, 1.0
    %vm244 = vcmp.eq.f32.partialorder %v180, 1.0
    %vm245 = vcmp.eq.f32.partialorder %v181, 1.0
    %vm246 = vcmp.eq.f32.partialorder %v182, 1.0
    %vm247 = vcmp.eq.f32.partialorder %v183, 1.0
    %vm248 = vcmp.eq.f32.partialorder %v184, 1.0
    %vm249 = vcmp.eq.f32.partialorder %v185, 1.0
    %vm250 = vcmp.eq.f32.partialorder %v186, 1.0
    %vm251 = vcmp.eq.f32.partialorder %v187, 1.0
    %vm252 = vcmp.eq.f32.partialorder %v188, 1.0
    %vm253 = vcmp.eq.f32.partialorder %v189, 1.0
    %vm254 = vcmp.eq.f32.partialorder %v190, 1.0
    %vm255 = vcmp.eq.f32.partialorder %v191, 1.0
    %vm256 = vcmp.eq.f32.partialorder %v192, 1.0
    %vm257 = vcmp.eq.f32.partialorder %v193, 1.0
    %vm258 = vcmp.eq.f32.partialorder %v194, 1.0
    %vm259 = vcmp.eq.f32.partialorder %v195, 1.0
    %vm260 = vcmp.eq.f32.partialorder %v196, 1.0
    %vm261 = vcmp.eq.f32.partialorder %v197, 1.0
    %vm262 = vcmp.eq.f32.partialorder %v198, 1.0
    %vm263 = vcmp.eq.f32.partialorder %v199, 1.0
    %vm264 = vcmp.eq.f32.partialorder %v200, 1.0
    %vm265 = vcmp.eq.f32.partialorder %v201, 1.0
    %vm266 = vcmp.eq.f32.partialorder %v202, 1.0
    %vm267 = vcmp.eq.f32.partialorder %v203, 1.0
    %vm268 = vcmp.eq.f32.partialorder %v204, 1.0
    %vm269 = vcmp.eq.f32.partialorder %v205, 1.0
    %vm270 = vcmp.eq.f32.partialorder %v206, 1.0
    %vm271 = vcmp.eq.f32.partialorder %v207, 1.0
    %vm272 = vcmp.eq.f32.partialorder %v208, 1.0
    %vm273 = vcmp.eq.f32.partialorder %v209, 1.0
    %vm274 = vcmp.eq.f32.partialorder %v210, 1.0
    %vm275 = vcmp.eq.f32.partialorder %v211, 1.0
    %vm276 = vcmp.eq.f32.partialorder %v212, 1.0
    %vm277 = vcmp.eq.f32.partialorder %v213, 1.0
    %vm278 = vcmp.eq.f32.partialorder %v214, 1.0
    %vm279 = vcmp.eq.f32.partialorder %v215, 1.0
    %vm280 = vcmp.eq.f32.partialorder %v216, 1.0
    %vm281 = vcmp.eq.f32.partialorder %v217, 1.0
    %vm282 = vcmp.eq.f32.partialorder %v218, 1.0
    %vm283 = vcmp.eq.f32.partialorder %v219, 1.0
    %vm284 = vcmp.eq.f32.partialorder %v220, 1.0
    %vm285 = vcmp.eq.f32.partialorder %v221, 1.0
    %vm286 = vcmp.eq.f32.partialorder %v222, 1.0
    %vm287 = vcmp.eq.f32.partialorder %v223, 1.0
    %vm288 = vcmp.eq.f32.partialorder %v224, 1.0
    %vm289 = vcmp.eq.f32.partialorder %v225, 1.0
    %vm290 = vcmp.eq.f32.partialorder %v226, 1.0
    %vm291 = vcmp.eq.f32.partialorder %v227, 1.0
    %vm292 = vcmp.eq.f32.partialorder %v228, 1.0
    %vm293 = vcmp.eq.f32.partialorder %v229, 1.0
    %vm294 = vcmp.eq.f32.partialorder %v230, 1.0
    %vm295 = vcmp.eq.f32.partialorder %v231, 1.0
    %vm296 = vcmp.eq.f32.partialorder %v232, 1.0
    %vm297 = vcmp.eq.f32.partialorder %v233, 1.0
    %vm298 = vcmp.eq.f32.partialorder %v234, 1.0
    %vm299 = vcmp.eq.f32.partialorder %v235, 1.0
    %vm300 = vcmp.eq.f32.partialorder %v172, 0.0
    %vm301 = vcmp.eq.f32.partialorder %v173, 0.0
    %vm302 = vcmp.eq.f32.partialorder %v174, 0.0
    %vm303 = vcmp.eq.f32.partialorder %v175, 0.0
    %vm304 = vcmp.eq.f32.partialorder %v176, 0.0
    %vm305 = vcmp.eq.f32.partialorder %v177, 0.0
    %vm306 = vcmp.eq.f32.partialorder %v178, 0.0
    %vm307 = vcmp.eq.f32.partialorder %v179, 0.0
    %vm308 = vcmp.eq.f32.partialorder %v180, 0.0
    %vm309 = vcmp.eq.f32.partialorder %v181, 0.0
    %vm310 = vcmp.eq.f32.partialorder %v182, 0.0
    %vm311 = vcmp.eq.f32.partialorder %v183, 0.0
    %vm312 = vcmp.eq.f32.partialorder %v184, 0.0
    %vm313 = vcmp.eq.f32.partialorder %v185, 0.0
    %vm314 = vcmp.eq.f32.partialorder %v186, 0.0
    %vm315 = vcmp.eq.f32.partialorder %v187, 0.0
    %vm316 = vcmp.eq.f32.partialorder %v188, 0.0
    %vm317 = vcmp.eq.f32.partialorder %v189, 0.0
    %vm318 = vcmp.eq.f32.partialorder %v190, 0.0
    %vm319 = vcmp.eq.f32.partialorder %v191, 0.0
    %vm320 = vcmp.eq.f32.partialorder %v192, 0.0
    %vm321 = vcmp.eq.f32.partialorder %v193, 0.0
    %vm322 = vcmp.eq.f32.partialorder %v194, 0.0
    %vm323 = vcmp.eq.f32.partialorder %v195, 0.0
    %vm324 = vcmp.eq.f32.partialorder %v196, 0.0
    %vm325 = vcmp.eq.f32.partialorder %v197, 0.0
    %vm326 = vcmp.eq.f32.partialorder %v198, 0.0
    %vm327 = vcmp.eq.f32.partialorder %v199, 0.0
    %vm328 = vcmp.eq.f32.partialorder %v200, 0.0
    %vm329 = vcmp.eq.f32.partialorder %v201, 0.0
    %vm330 = vcmp.eq.f32.partialorder %v202, 0.0
    %vm331 = vcmp.eq.f32.partialorder %v203, 0.0
    %vm332 = vcmp.eq.f32.partialorder %v204, 0.0
    %vm333 = vcmp.eq.f32.partialorder %v205, 0.0
    %vm334 = vcmp.eq.f32.partialorder %v206, 0.0
    %vm335 = vcmp.eq.f32.partialorder %v207, 0.0
    %vm336 = vcmp.eq.f32.partialorder %v208, 0.0
    %vm337 = vcmp.eq.f32.partialorder %v209, 0.0
    %vm338 = vcmp.eq.f32.partialorder %v210, 0.0
    %vm339 = vcmp.eq.f32.partialorder %v211, 0.0
    %vm340 = vcmp.eq.f32.partialorder %v212, 0.0
    %vm341 = vcmp.eq.f32.partialorder %v213, 0.0
    %vm342 = vcmp.eq.f32.partialorder %v214, 0.0
    %vm343 = vcmp.eq.f32.partialorder %v215, 0.0
    %vm344 = vcmp.eq.f32.partialorder %v216, 0.0
    %vm345 = vcmp.eq.f32.partialorder %v217, 0.0
    %vm346 = vcmp.eq.f32.partialorder %v218, 0.0
    %vm347 = vcmp.eq.f32.partialorder %v219, 0.0
    %vm348 = vcmp.eq.f32.partialorder %v220, 0.0
    %vm349 = vcmp.eq.f32.partialorder %v221, 0.0
    %vm350 = vcmp.eq.f32.partialorder %v222, 0.0
    %vm351 = vcmp.eq.f32.partialorder %v223, 0.0
    %vm352 = vcmp.eq.f32.partialorder %v224, 0.0
    %vm353 = vcmp.eq.f32.partialorder %v225, 0.0
    %vm354 = vcmp.eq.f32.partialorder %v226, 0.0
    %vm355 = vcmp.eq.f32.partialorder %v227, 0.0
    %vm356 = vcmp.eq.f32.partialorder %v228, 0.0
    %vm357 = vcmp.eq.f32.partialorder %v229, 0.0
    %vm358 = vcmp.eq.f32.partialorder %v230, 0.0
    %vm359 = vcmp.eq.f32.partialorder %v231, 0.0
    %vm360 = vcmp.eq.f32.partialorder %v232, 0.0
    %vm361 = vcmp.eq.f32.partialorder %v233, 0.0
    %vm362 = vcmp.eq.f32.partialorder %v234, 0.0
    %vm363 = vcmp.eq.f32.partialorder %v235, 0.0
    %v364 = vmax.f32 %v108, 0.0
    %v365 = vmax.f32 %v109, 0.0
    %v366 = vmax.f32 %v110, 0.0
    %v367 = vmax.f32 %v111, 0.0
    %v368 = vmax.f32 %v112, 0.0
    %v369 = vmax.f32 %v113, 0.0
    %v370 = vmax.f32 %v114, 0.0
    %v371 = vmax.f32 %v115, 0.0
    %v372 = vmax.f32 %v116, 0.0
    %v373 = vmax.f32 %v117, 0.0
    %v374 = vmax.f32 %v118, 0.0
    %v375 = vmax.f32 %v119, 0.0
    %v376 = vmax.f32 %v120, 0.0
    %v377 = vmax.f32 %v121, 0.0
    %v378 = vmax.f32 %v122, 0.0
    %v379 = vmax.f32 %v123, 0.0
    %v380 = vmax.f32 %v124, 0.0
    %v381 = vmax.f32 %v125, 0.0
    %v382 = vmax.f32 %v126, 0.0
    %v383 = vmax.f32 %v127, 0.0
    %v384 = vmax.f32 %v128, 0.0
    %v385 = vmax.f32 %v129, 0.0
    %v386 = vmax.f32 %v130, 0.0
    %v387 = vmax.f32 %v131, 0.0
    %v388 = vmax.f32 %v132, 0.0
    %v389 = vmax.f32 %v133, 0.0
    %v390 = vmax.f32 %v134, 0.0
    %v391 = vmax.f32 %v135, 0.0
    %v392 = vmax.f32 %v136, 0.0
    %v393 = vmax.f32 %v137, 0.0
    %v394 = vmax.f32 %v138, 0.0
    %v395 = vmax.f32 %v139, 0.0
    %v396 = vmax.f32 %v140, 0.0
    %v397 = vmax.f32 %v141, 0.0
    %v398 = vmax.f32 %v142, 0.0
    %v399 = vmax.f32 %v143, 0.0
    %v400 = vmax.f32 %v144, 0.0
    %v401 = vmax.f32 %v145, 0.0
    %v402 = vmax.f32 %v146, 0.0
    %v403 = vmax.f32 %v147, 0.0
    %v404 = vmax.f32 %v148, 0.0
    %v405 = vmax.f32 %v149, 0.0
    %v406 = vmax.f32 %v150, 0.0
    %v407 = vmax.f32 %v151, 0.0
    %v408 = vmax.f32 %v152, 0.0
    %v409 = vmax.f32 %v153, 0.0
    %v410 = vmax.f32 %v154, 0.0
    %v411 = vmax.f32 %v155, 0.0
    %v412 = vmax.f32 %v156, 0.0
    %v413 = vmax.f32 %v157, 0.0
    %v414 = vmax.f32 %v158, 0.0
    %v415 = vmax.f32 %v159, 0.0
    %v416 = vmax.f32 %v160, 0.0
    %v417 = vmax.f32 %v161, 0.0
    %v418 = vmax.f32 %v162, 0.0
    %v419 = vmax.f32 %v163, 0.0
    %v420 = vmax.f32 %v164, 0.0
    %v421 = vmax.f32 %v165, 0.0
    %v422 = vmax.f32 %v166, 0.0
    %v423 = vmax.f32 %v167, 0.0
    %v424 = vmax.f32 %v168, 0.0
    %v425 = vmax.f32 %v169, 0.0
    %v426 = vmax.f32 %v170, 0.0
    %v427 = vmax.f32 %v171, 0.0
    %v428 = vsel %vm236, %v108, 0.0
    %v429 = vsel %vm237, %v109, 0.0
    %v430 = vsel %vm238, %v110, 0.0
    %v431 = vsel %vm239, %v111, 0.0
    %v432 = vsel %vm240, %v112, 0.0
    %v433 = vsel %vm241, %v113, 0.0
    %v434 = vsel %vm242, %v114, 0.0
    %v435 = vsel %vm243, %v115, 0.0
    %v436 = vsel %vm244, %v116, 0.0
    %v437 = vsel %vm245, %v117, 0.0
    %v438 = vsel %vm246, %v118, 0.0
    %v439 = vsel %vm247, %v119, 0.0
    %v440 = vsel %vm248, %v120, 0.0
    %v441 = vsel %vm249, %v121, 0.0
    %v442 = vsel %vm250, %v122, 0.0
    %v443 = vsel %vm251, %v123, 0.0
    %v444 = vsel %vm252, %v124, 0.0
    %v445 = vsel %vm253, %v125, 0.0
    %v446 = vsel %vm254, %v126, 0.0
    %v447 = vsel %vm255, %v127, 0.0
    %v448 = vsel %vm256, %v128, 0.0
    %v449 = vsel %vm257, %v129, 0.0
    %v450 = vsel %vm258, %v130, 0.0
    %v451 = vsel %vm259, %v131, 0.0
    %v452 = vsel %vm260, %v132, 0.0
    %v453 = vsel %vm261, %v133, 0.0
    %v454 = vsel %vm262, %v134, 0.0
    %v455 = vsel %vm263, %v135, 0.0
    %v456 = vsel %vm264, %v136, 0.0
    %v457 = vsel %vm265, %v137, 0.0
    %v458 = vsel %vm266, %v138, 0.0
    %v459 = vsel %vm267, %v139, 0.0
    %v460 = vsel %vm268, %v140, 0.0
    %v461 = vsel %vm269, %v141, 0.0
    %v462 = vsel %vm270, %v142, 0.0
    %v463 = vsel %vm271, %v143, 0.0
    %v464 = vsel %vm272, %v144, 0.0
    %v465 = vsel %vm273, %v145, 0.0
    %v466 = vsel %vm274, %v146, 0.0
    %v467 = vsel %vm275, %v147, 0.0
    %v468 = vsel %vm276, %v148, 0.0
    %v469 = vsel %vm277, %v149, 0.0
    %v470 = vsel %vm278, %v150, 0.0
    %v471 = vsel %vm279, %v151, 0.0
    %v472 = vsel %vm280, %v152, 0.0
    %v473 = vsel %vm281, %v153, 0.0
    %v474 = vsel %vm282, %v154, 0.0
    %v475 = vsel %vm283, %v155, 0.0
    %v476 = vsel %vm284, %v156, 0.0
    %v477 = vsel %vm285, %v157, 0.0
    %v478 = vsel %vm286, %v158, 0.0
    %v479 = vsel %vm287, %v159, 0.0
    %v480 = vsel %vm288, %v160, 0.0
    %v481 = vsel %vm289, %v161, 0.0
    %v482 = vsel %vm290, %v162, 0.0
    %v483 = vsel %vm291, %v163, 0.0
    %v484 = vsel %vm292, %v164, 0.0
    %v485 = vsel %vm293, %v165, 0.0
    %v486 = vsel %vm294, %v166, 0.0
    %v487 = vsel %vm295, %v167, 0.0
    %v488 = vsel %vm296, %v168, 0.0
    %v489 = vsel %vm297, %v169, 0.0
    %v490 = vsel %vm298, %v170, 0.0
    %v491 = vsel %vm299, %v171, 0.0
    %v492 = vsub.f32 %v364, %v428
    %v493 = vsub.f32 %v365, %v429
    %v494 = vsub.f32 %v366, %v430
    %v495 = vsub.f32 %v367, %v431
    %v496 = vsub.f32 %v368, %v432
    %v497 = vsub.f32 %v369, %v433
    %v498 = vsub.f32 %v370, %v434
    %v499 = vsub.f32 %v371, %v435
    %v500 = vsub.f32 %v372, %v436
    %v501 = vsub.f32 %v373, %v437
    %v502 = vsub.f32 %v374, %v438
    %v503 = vsub.f32 %v375, %v439
    %v504 = vsub.f32 %v376, %v440
    %v505 = vsub.f32 %v377, %v441
    %v506 = vsub.f32 %v378, %v442
    %v507 = vsub.f32 %v379, %v443
    %v508 = vsub.f32 %v380, %v444
    %v509 = vsub.f32 %v381, %v445
    %v510 = vsub.f32 %v382, %v446
    %v511 = vsub.f32 %v383, %v447
    %v512 = vsub.f32 %v384, %v448
    %v513 = vsub.f32 %v385, %v449
    %v514 = vsub.f32 %v386, %v450
    %v515 = vsub.f32 %v387, %v451
    %v516 = vsub.f32 %v388, %v452
    %v517 = vsub.f32 %v389, %v453
    %v518 = vsub.f32 %v390, %v454
    %v519 = vsub.f32 %v391, %v455
    %v520 = vsub.f32 %v392, %v456
    %v521 = vsub.f32 %v393, %v457
    %v522 = vsub.f32 %v394, %v458
    %v523 = vsub.f32 %v395, %v459
    %v524 = vsub.f32 %v396, %v460
    %v525 = vsub.f32 %v397, %v461
    %v526 = vsub.f32 %v398, %v462
    %v527 = vsub.f32 %v399, %v463
    %v528 = vsub.f32 %v400, %v464
    %v529 = vsub.f32 %v401, %v465
    %v530 = vsub.f32 %v402, %v466
    %v531 = vsub.f32 %v403, %v467
    %v532 = vsub.f32 %v404, %v468
    %v533 = vsub.f32 %v405, %v469
    %v534 = vsub.f32 %v406, %v470
    %v535 = vsub.f32 %v407, %v471
    %v536 = vsub.f32 %v408, %v472
    %v537 = vsub.f32 %v409, %v473
    %v538 = vsub.f32 %v410, %v474
    %v539 = vsub.f32 %v411, %v475
    %v540 = vsub.f32 %v412, %v476
    %v541 = vsub.f32 %v413, %v477
    %v542 = vsub.f32 %v414, %v478
    %v543 = vsub.f32 %v415, %v479
    %v544 = vsub.f32 %v416, %v480
    %v545 = vsub.f32 %v417, %v481
    %v546 = vsub.f32 %v418, %v482
    %v547 = vsub.f32 %v419, %v483
    %v548 = vsub.f32 %v420, %v484
    %v549 = vsub.f32 %v421, %v485
    %v550 = vsub.f32 %v422, %v486
    %v551 = vsub.f32 %v423, %v487
    %v552 = vsub.f32 %v424, %v488
    %v553 = vsub.f32 %v425, %v489
    %v554 = vsub.f32 %v426, %v490
    %v555 = vsub.f32 %v427, %v491
    %v556 = vand.u32 2147483647, %v108
    %v557 = vand.u32 2147483647, %v109
    %v558 = vand.u32 2147483647, %v110
    %v559 = vand.u32 2147483647, %v111
    %v560 = vand.u32 2147483647, %v112
    %v561 = vand.u32 2147483647, %v113
    %v562 = vand.u32 2147483647, %v114
    %v563 = vand.u32 2147483647, %v115
    %v564 = vand.u32 2147483647, %v116
    %v565 = vand.u32 2147483647, %v117
    %v566 = vand.u32 2147483647, %v118
    %v567 = vand.u32 2147483647, %v119
    %v568 = vand.u32 2147483647, %v120
    %v569 = vand.u32 2147483647, %v121
    %v570 = vand.u32 2147483647, %v122
    %v571 = vand.u32 2147483647, %v123
    %v572 = vand.u32 2147483647, %v124
    %v573 = vand.u32 2147483647, %v125
    %v574 = vand.u32 2147483647, %v126
    %v575 = vand.u32 2147483647, %v127
    %v576 = vand.u32 2147483647, %v128
    %v577 = vand.u32 2147483647, %v129
    %v578 = vand.u32 2147483647, %v130
    %v579 = vand.u32 2147483647, %v131
    %v580 = vand.u32 2147483647, %v132
    %v581 = vand.u32 2147483647, %v133
    %v582 = vand.u32 2147483647, %v134
    %v583 = vand.u32 2147483647, %v135
    %v584 = vand.u32 2147483647, %v136
    %v585 = vand.u32 2147483647, %v137
    %v586 = vand.u32 2147483647, %v138
    %v587 = vand.u32 2147483647, %v139
    %v588 = vand.u32 2147483647, %v140
    %v589 = vand.u32 2147483647, %v141
    %v590 = vand.u32 2147483647, %v142
    %v591 = vand.u32 2147483647, %v143
    %v592 = vand.u32 2147483647, %v144
    %v593 = vand.u32 2147483647, %v145
    %v594 = vand.u32 2147483647, %v146
    %v595 = vand.u32 2147483647, %v147
    %v596 = vand.u32 2147483647, %v148
    %v597 = vand.u32 2147483647, %v149
    %v598 = vand.u32 2147483647, %v150
    %v599 = vand.u32 2147483647, %v151
    %v600 = vand.u32 2147483647, %v152
    %v601 = vand.u32 2147483647, %v153
    %v602 = vand.u32 2147483647, %v154
    %v603 = vand.u32 2147483647, %v155
    %v604 = vand.u32 2147483647, %v156
    %v605 = vand.u32 2147483647, %v157
    %v606 = vand.u32 2147483647, %v158
    %v607 = vand.u32 2147483647, %v159
    %v608 = vand.u32 2147483647, %v160
    %v609 = vand.u32 2147483647, %v161
    %v610 = vand.u32 2147483647, %v162
    %v611 = vand.u32 2147483647, %v163
    %v612 = vand.u32 2147483647, %v164
    %v613 = vand.u32 2147483647, %v165
    %v614 = vand.u32 2147483647, %v166
    %v615 = vand.u32 2147483647, %v167
    %v616 = vand.u32 2147483647, %v168
    %v617 = vand.u32 2147483647, %v169
    %v618 = vand.u32 2147483647, %v170
    %v619 = vand.u32 2147483647, %v171
    %v620 = vsub.f32 0.0, %v556
    %v621 = vsub.f32 0.0, %v557
    %v622 = vsub.f32 0.0, %v558
    %v623 = vsub.f32 0.0, %v559
    %v624 = vsub.f32 0.0, %v560
    %v625 = vsub.f32 0.0, %v561
    %v626 = vsub.f32 0.0, %v562
    %v627 = vsub.f32 0.0, %v563
    %v628 = vsub.f32 0.0, %v564
    %v629 = vsub.f32 0.0, %v565
    %v630 = vsub.f32 0.0, %v566
    %v631 = vsub.f32 0.0, %v567
    %v632 = vsub.f32 0.0, %v568
    %v633 = vsub.f32 0.0, %v569
    %v634 = vsub.f32 0.0, %v570
    %v635 = vsub.f32 0.0, %v571
    %v636 = vsub.f32 0.0, %v572
    %v637 = vsub.f32 0.0, %v573
    %v638 = vsub.f32 0.0, %v574
    %v639 = vsub.f32 0.0, %v575
    %v640 = vsub.f32 0.0, %v576
    %v641 = vsub.f32 0.0, %v577
    %v642 = vsub.f32 0.0, %v578
    %v643 = vsub.f32 0.0, %v579
    %v644 = vsub.f32 0.0, %v580
    %v645 = vsub.f32 0.0, %v581
    %v646 = vsub.f32 0.0, %v582
    %v647 = vsub.f32 0.0, %v583
    %v648 = vsub.f32 0.0, %v584
    %v649 = vsub.f32 0.0, %v585
    %v650 = vsub.f32 0.0, %v586
    %v651 = vsub.f32 0.0, %v587
    %v652 = vsub.f32 0.0, %v588
    %v653 = vsub.f32 0.0, %v589
    %v654 = vsub.f32 0.0, %v590
    %v655 = vsub.f32 0.0, %v591
    %v656 = vsub.f32 0.0, %v592
    %v657 = vsub.f32 0.0, %v593
    %v658 = vsub.f32 0.0, %v594
    %v659 = vsub.f32 0.0, %v595
    %v660 = vsub.f32 0.0, %v596
    %v661 = vsub.f32 0.0, %v597
    %v662 = vsub.f32 0.0, %v598
    %v663 = vsub.f32 0.0, %v599
    %v664 = vsub.f32 0.0, %v600
    %v665 = vsub.f32 0.0, %v601
    %v666 = vsub.f32 0.0, %v602
    %v667 = vsub.f32 0.0, %v603
    %v668 = vsub.f32 0.0, %v604
    %v669 = vsub.f32 0.0, %v605
    %v670 = vsub.f32 0.0, %v606
    %v671 = vsub.f32 0.0, %v607
    %v672 = vsub.f32 0.0, %v608
    %v673 = vsub.f32 0.0, %v609
    %v674 = vsub.f32 0.0, %v610
    %v675 = vsub.f32 0.0, %v611
    %v676 = vsub.f32 0.0, %v612
    %v677 = vsub.f32 0.0, %v613
    %v678 = vsub.f32 0.0, %v614
    %v679 = vsub.f32 0.0, %v615
    %v680 = vsub.f32 0.0, %v616
    %v681 = vsub.f32 0.0, %v617
    %v682 = vsub.f32 0.0, %v618
    %v683 = vsub.f32 0.0, %v619
    %v684 = vmul.f32 %v620, 1.442695
    %v685 = vpow.pop %v684
    %v686 = vmul.f32 %v621, 1.442695
    %v687 = vpow.pop %v686
    %v688 = vmul.f32 %v622, 1.442695
    %v689 = vpow.pop %v688
    %v690 = vmul.f32 %v623, 1.442695
    %v691 = vpow.pop %v690
    %v692 = vmul.f32 %v624, 1.442695
    %v693 = vpow.pop %v692
    %v694 = vmul.f32 %v625, 1.442695
    %v695 = vpow.pop %v694
    %v696 = vmul.f32 %v626, 1.442695
    %v697 = vpow.pop %v696
    %v698 = vmul.f32 %v627, 1.442695
    %v699 = vpow.pop %v698
    %v700 = vmul.f32 %v628, 1.442695
    %v701 = vpow.pop %v700
    %v702 = vmul.f32 %v629, 1.442695
    %v703 = vpow.pop %v702
    %v704 = vmul.f32 %v630, 1.442695
    %v705 = vpow.pop %v704
    %v706 = vmul.f32 %v631, 1.442695
    %v707 = vpow.pop %v706
    %v708 = vmul.f32 %v632, 1.442695
    %v709 = vpow.pop %v708
    %v710 = vmul.f32 %v633, 1.442695
    %v711 = vpow.pop %v710
    %v712 = vmul.f32 %v634, 1.442695
    %v713 = vpow.pop %v712
    %v714 = vmul.f32 %v635, 1.442695
    %v715 = vpow.pop %v714
    %v716 = vmul.f32 %v636, 1.442695
    %v717 = vpow.pop %v716
    %v718 = vmul.f32 %v637, 1.442695
    %v719 = vpow.pop %v718
    %v720 = vmul.f32 %v638, 1.442695
    %v721 = vpow.pop %v720
    %v722 = vmul.f32 %v639, 1.442695
    %v723 = vpow.pop %v722
    %v724 = vmul.f32 %v640, 1.442695
    %v725 = vpow.pop %v724
    %v726 = vmul.f32 %v641, 1.442695
    %v727 = vpow.pop %v726
    %v728 = vmul.f32 %v642, 1.442695
    %v729 = vpow.pop %v728
    %v730 = vmul.f32 %v643, 1.442695
    %v731 = vpow.pop %v730
    %v732 = vmul.f32 %v644, 1.442695
    %v733 = vpow.pop %v732
    %v734 = vmul.f32 %v645, 1.442695
    %v735 = vpow.pop %v734
    %v736 = vmul.f32 %v646, 1.442695
    %v737 = vpow.pop %v736
    %v738 = vmul.f32 %v647, 1.442695
    %v739 = vpow.pop %v738
    %v740 = vmul.f32 %v648, 1.442695
    %v741 = vpow.pop %v740
    %v742 = vmul.f32 %v649, 1.442695
    %v743 = vpow.pop %v742
    %v744 = vmul.f32 %v650, 1.442695
    %v745 = vpow.pop %v744
    %v746 = vmul.f32 %v651, 1.442695
    %v747 = vpow.pop %v746
    %v748 = vmul.f32 %v652, 1.442695
    %v749 = vpow.pop %v748
    %v750 = vmul.f32 %v653, 1.442695
    %v751 = vpow.pop %v750
    %v752 = vmul.f32 %v654, 1.442695
    %v753 = vpow.pop %v752
    %v754 = vmul.f32 %v655, 1.442695
    %v755 = vpow.pop %v754
    %v756 = vmul.f32 %v656, 1.442695
    %v757 = vpow.pop %v756
    %v758 = vmul.f32 %v657, 1.442695
    %v759 = vpow.pop %v758
    %v760 = vmul.f32 %v658, 1.442695
    %v761 = vpow.pop %v760
    %v762 = vmul.f32 %v659, 1.442695
    %v763 = vpow.pop %v762
    %v764 = vmul.f32 %v660, 1.442695
    %v765 = vpow.pop %v764
    %v766 = vmul.f32 %v661, 1.442695
    %v767 = vpow.pop %v766
    %v768 = vmul.f32 %v662, 1.442695
    %v769 = vpow.pop %v768
    %v770 = vmul.f32 %v663, 1.442695
    %v771 = vpow.pop %v770
    %v772 = vmul.f32 %v664, 1.442695
    %v773 = vpow.pop %v772
    %v774 = vmul.f32 %v665, 1.442695
    %v775 = vpow.pop %v774
    %v776 = vmul.f32 %v666, 1.442695
    %v777 = vpow.pop %v776
    %v778 = vmul.f32 %v667, 1.442695
    %v779 = vpow.pop %v778
    %v780 = vmul.f32 %v668, 1.442695
    %v781 = vpow.pop %v780
    %v782 = vmul.f32 %v669, 1.442695
    %v783 = vpow.pop %v782
    %v784 = vmul.f32 %v670, 1.442695
    %v785 = vpow.pop %v784
    %v786 = vmul.f32 %v671, 1.442695
    %v787 = vpow.pop %v786
    %v788 = vmul.f32 %v672, 1.442695
    %v789 = vpow.pop %v788
    %v790 = vmul.f32 %v673, 1.442695
    %v791 = vpow.pop %v790
    %v792 = vmul.f32 %v674, 1.442695
    %v793 = vpow.pop %v792
    %v794 = vmul.f32 %v675, 1.442695
    %v795 = vpow.pop %v794
    %v796 = vmul.f32 %v676, 1.442695
    %v797 = vpow.pop %v796
    %v798 = vmul.f32 %v677, 1.442695
    %v799 = vpow.pop %v798
    %v800 = vmul.f32 %v678, 1.442695
    %v801 = vpow.pop %v800
    %v802 = vmul.f32 %v679, 1.442695
    %v803 = vpow.pop %v802
    %v804 = vmul.f32 %v680, 1.442695
    %v805 = vpow.pop %v804
    %v806 = vmul.f32 %v681, 1.442695
    %v807 = vpow.pop %v806
    %v808 = vmul.f32 %v682, 1.442695
    %v809 = vpow.pop %v808
    %v810 = vmul.f32 %v683, 1.442695
    %v811 = vpow.pop %v810
    %v812 = vadd.f32 %v685, 1.0
    %v813 = vlog2.pop %v812
    %v814 = vmul.f32 %v813, 0.6931472
    %v815 = vmul.f32 -0.5, %v685
    %v816 = vadd.f32 %v815, 1.0
    %v817 = vmul.f32 %v816, %v685
    %v818 = vand.u32 2147483647, %v685
    %vm819 = vcmp.lt.f32.partialorder %v818, 0.0004427343
    %v820 = vsel %vm819, %v817, %v814
    %v821 = vadd.f32 %v687, 1.0
    %v822 = vlog2.pop %v821
    %v823 = vmul.f32 %v822, 0.6931472
    %v824 = vmul.f32 -0.5, %v687
    %v825 = vadd.f32 %v824, 1.0
    %v826 = vmul.f32 %v825, %v687
    %v827 = vand.u32 2147483647, %v687
    %vm828 = vcmp.lt.f32.partialorder %v827, 0.0004427343
    %v829 = vsel %vm828, %v826, %v823
    %v830 = vadd.f32 %v689, 1.0
    %v831 = vlog2.pop %v830
    %v832 = vmul.f32 %v831, 0.6931472
    %v833 = vmul.f32 -0.5, %v689
    %v834 = vadd.f32 %v833, 1.0
    %v835 = vmul.f32 %v834, %v689
    %v836 = vand.u32 2147483647, %v689
    %vm837 = vcmp.lt.f32.partialorder %v836, 0.0004427343
    %v838 = vsel %vm837, %v835, %v832
    %v839 = vadd.f32 %v691, 1.0
    %v840 = vlog2.pop %v839
    %v841 = vmul.f32 %v840, 0.6931472
    %v842 = vmul.f32 -0.5, %v691
    %v843 = vadd.f32 %v842, 1.0
    %v844 = vmul.f32 %v843, %v691
    %v845 = vand.u32 2147483647, %v691
    %vm846 = vcmp.lt.f32.partialorder %v845, 0.0004427343
    %v847 = vsel %vm846, %v844, %v841
    %v848 = vadd.f32 %v693, 1.0
    %v849 = vlog2.pop %v848
    %v850 = vmul.f32 %v849, 0.6931472
    %v851 = vmul.f32 -0.5, %v693
    %v852 = vadd.f32 %v851, 1.0
    %v853 = vmul.f32 %v852, %v693
    %v854 = vand.u32 2147483647, %v693
    %vm855 = vcmp.lt.f32.partialorder %v854, 0.0004427343
    %v856 = vsel %vm855, %v853, %v850
    %v857 = vadd.f32 %v695, 1.0
    %v858 = vlog2.pop %v857
    %v859 = vmul.f32 %v858, 0.6931472
    %v860 = vmul.f32 -0.5, %v695
    %v861 = vadd.f32 %v860, 1.0
    %v862 = vmul.f32 %v861, %v695
    %v863 = vand.u32 2147483647, %v695
    %vm864 = vcmp.lt.f32.partialorder %v863, 0.0004427343
    %v865 = vsel %vm864, %v862, %v859
    %v866 = vadd.f32 %v697, 1.0
    %v867 = vlog2.pop %v866
    %v868 = vmul.f32 %v867, 0.6931472
    %v869 = vmul.f32 -0.5, %v697
    %v870 = vadd.f32 %v869, 1.0
    %v871 = vmul.f32 %v870, %v697
    %v872 = vand.u32 2147483647, %v697
    %vm873 = vcmp.lt.f32.partialorder %v872, 0.0004427343
    %v874 = vsel %vm873, %v871, %v868
    %v875 = vadd.f32 %v699, 1.0
    %v876 = vlog2.pop %v875
    %v877 = vmul.f32 %v876, 0.6931472
    %v878 = vmul.f32 -0.5, %v699
    %v879 = vadd.f32 %v878, 1.0
    %v880 = vmul.f32 %v879, %v699
    %v881 = vand.u32 2147483647, %v699
    %vm882 = vcmp.lt.f32.partialorder %v881, 0.0004427343
    %v883 = vsel %vm882, %v880, %v877
    %v884 = vadd.f32 %v701, 1.0
    %v885 = vlog2.pop %v884
    %v886 = vmul.f32 %v885, 0.6931472
    %v887 = vmul.f32 -0.5, %v701
    %v888 = vadd.f32 %v887, 1.0
    %v889 = vmul.f32 %v888, %v701
    %v890 = vand.u32 2147483647, %v701
    %vm891 = vcmp.lt.f32.partialorder %v890, 0.0004427343
    %v892 = vsel %vm891, %v889, %v886
    %v893 = vadd.f32 %v703, 1.0
    %v894 = vlog2.pop %v893
    %v895 = vmul.f32 %v894, 0.6931472
    %v896 = vmul.f32 -0.5, %v703
    %v897 = vadd.f32 %v896, 1.0
    %v898 = vmul.f32 %v897, %v703
    %v899 = vand.u32 2147483647, %v703
    %vm900 = vcmp.lt.f32.partialorder %v899, 0.0004427343
    %v901 = vsel %vm900, %v898, %v895
    %v902 = vadd.f32 %v705, 1.0
    %v903 = vlog2.pop %v902
    %v904 = vmul.f32 %v903, 0.6931472
    %v905 = vmul.f32 -0.5, %v705
    %v906 = vadd.f32 %v905, 1.0
    %v907 = vmul.f32 %v906, %v705
    %v908 = vand.u32 2147483647, %v705
    %vm909 = vcmp.lt.f32.partialorder %v908, 0.0004427343
    %v910 = vsel %vm909, %v907, %v904
    %v911 = vadd.f32 %v707, 1.0
    %v912 = vlog2.pop %v911
    %v913 = vmul.f32 %v912, 0.6931472
    %v914 = vmul.f32 -0.5, %v707
    %v915 = vadd.f32 %v914, 1.0
    %v916 = vmul.f32 %v915, %v707
    %v917 = vand.u32 2147483647, %v707
    %vm918 = vcmp.lt.f32.partialorder %v917, 0.0004427343
    %v919 = vsel %vm918, %v916, %v913
    %v920 = vadd.f32 %v709, 1.0
    %v921 = vlog2.pop %v920
    %v922 = vmul.f32 %v921, 0.6931472
    %v923 = vmul.f32 -0.5, %v709
    %v924 = vadd.f32 %v923, 1.0
    %v925 = vmul.f32 %v924, %v709
    %v926 = vand.u32 2147483647, %v709
    %vm927 = vcmp.lt.f32.partialorder %v926, 0.0004427343
    %v928 = vsel %vm927, %v925, %v922
    %v929 = vadd.f32 %v711, 1.0
    %v930 = vlog2.pop %v929
    %v931 = vmul.f32 %v930, 0.6931472
    %v932 = vmul.f32 -0.5, %v711
    %v933 = vadd.f32 %v932, 1.0
    %v934 = vmul.f32 %v933, %v711
    %v935 = vand.u32 2147483647, %v711
    %vm936 = vcmp.lt.f32.partialorder %v935, 0.0004427343
    %v937 = vsel %vm936, %v934, %v931
    %v938 = vadd.f32 %v713, 1.0
    %v939 = vlog2.pop %v938
    %v940 = vmul.f32 %v939, 0.6931472
    %v941 = vmul.f32 -0.5, %v713
    %v942 = vadd.f32 %v941, 1.0
    %v943 = vmul.f32 %v942, %v713
    %v944 = vand.u32 2147483647, %v713
    %vm945 = vcmp.lt.f32.partialorder %v944, 0.0004427343
    %v946 = vsel %vm945, %v943, %v940
    %v947 = vadd.f32 %v715, 1.0
    %v948 = vlog2.pop %v947
    %v949 = vmul.f32 %v948, 0.6931472
    %v950 = vmul.f32 -0.5, %v715
    %v951 = vadd.f32 %v950, 1.0
    %v952 = vmul.f32 %v951, %v715
    %v953 = vand.u32 2147483647, %v715
    %vm954 = vcmp.lt.f32.partialorder %v953, 0.0004427343
    %v955 = vsel %vm954, %v952, %v949
    %v956 = vadd.f32 %v717, 1.0
    %v957 = vlog2.pop %v956
    %v958 = vmul.f32 %v957, 0.6931472
    %v959 = vmul.f32 -0.5, %v717
    %v960 = vadd.f32 %v959, 1.0
    %v961 = vmul.f32 %v960, %v717
    %v962 = vand.u32 2147483647, %v717
    %vm963 = vcmp.lt.f32.partialorder %v962, 0.0004427343
    %v964 = vsel %vm963, %v961, %v958
    %v965 = vadd.f32 %v719, 1.0
    %v966 = vlog2.pop %v965
    %v967 = vmul.f32 %v966, 0.6931472
    %v968 = vmul.f32 -0.5, %v719
    %v969 = vadd.f32 %v968, 1.0
    %v970 = vmul.f32 %v969, %v719
    %v971 = vand.u32 2147483647, %v719
    %vm972 = vcmp.lt.f32.partialorder %v971, 0.0004427343
    %v973 = vsel %vm972, %v970, %v967
    %v974 = vadd.f32 %v721, 1.0
    %v975 = vlog2.pop %v974
    %v976 = vmul.f32 %v975, 0.6931472
    %v977 = vmul.f32 -0.5, %v721
    %v978 = vadd.f32 %v977, 1.0
    %v979 = vmul.f32 %v978, %v721
    %v980 = vand.u32 2147483647, %v721
    %vm981 = vcmp.lt.f32.partialorder %v980, 0.0004427343
    %v982 = vsel %vm981, %v979, %v976
    %v983 = vadd.f32 %v723, 1.0
    %v984 = vlog2.pop %v983
    %v985 = vmul.f32 %v984, 0.6931472
    %v986 = vmul.f32 -0.5, %v723
    %v987 = vadd.f32 %v986, 1.0
    %v988 = vmul.f32 %v987, %v723
    %v989 = vand.u32 2147483647, %v723
    %vm990 = vcmp.lt.f32.partialorder %v989, 0.0004427343
    %v991 = vsel %vm990, %v988, %v985
    %v992 = vadd.f32 %v725, 1.0
    %v993 = vlog2.pop %v992
    %v994 = vmul.f32 %v993, 0.6931472
    %v995 = vmul.f32 -0.5, %v725
    %v996 = vadd.f32 %v995, 1.0
    %v997 = vmul.f32 %v996, %v725
    %v998 = vand.u32 2147483647, %v725
    %vm999 = vcmp.lt.f32.partialorder %v998, 0.0004427343
    %v1000 = vsel %vm999, %v997, %v994
    %v1001 = vadd.f32 %v727, 1.0
    %v1002 = vlog2.pop %v1001
    %v1003 = vmul.f32 %v1002, 0.6931472
    %v1004 = vmul.f32 -0.5, %v727
    %v1005 = vadd.f32 %v1004, 1.0
    %v1006 = vmul.f32 %v1005, %v727
    %v1007 = vand.u32 2147483647, %v727
    %vm1008 = vcmp.lt.f32.partialorder %v1007, 0.0004427343
    %v1009 = vsel %vm1008, %v1006, %v1003
    %v1010 = vadd.f32 %v729, 1.0
    %v1011 = vlog2.pop %v1010
    %v1012 = vmul.f32 %v1011, 0.6931472
    %v1013 = vmul.f32 -0.5, %v729
    %v1014 = vadd.f32 %v1013, 1.0
    %v1015 = vmul.f32 %v1014, %v729
    %v1016 = vand.u32 2147483647, %v729
    %vm1017 = vcmp.lt.f32.partialorder %v1016, 0.0004427343
    %v1018 = vsel %vm1017, %v1015, %v1012
    %v1019 = vadd.f32 %v731, 1.0
    %v1020 = vlog2.pop %v1019
    %v1021 = vmul.f32 %v1020, 0.6931472
    %v1022 = vmul.f32 -0.5, %v731
    %v1023 = vadd.f32 %v1022, 1.0
    %v1024 = vmul.f32 %v1023, %v731
    %v1025 = vand.u32 2147483647, %v731
    %vm1026 = vcmp.lt.f32.partialorder %v1025, 0.0004427343
    %v1027 = vsel %vm1026, %v1024, %v1021
    %v1028 = vadd.f32 %v733, 1.0
    %v1029 = vlog2.pop %v1028
    %v1030 = vmul.f32 %v1029, 0.6931472
    %v1031 = vmul.f32 -0.5, %v733
    %v1032 = vadd.f32 %v1031, 1.0
    %v1033 = vmul.f32 %v1032, %v733
    %v1034 = vand.u32 2147483647, %v733
    %vm1035 = vcmp.lt.f32.partialorder %v1034, 0.0004427343
    %v1036 = vsel %vm1035, %v1033, %v1030
    %v1037 = vadd.f32 %v735, 1.0
    %v1038 = vlog2.pop %v1037
    %v1039 = vmul.f32 %v1038, 0.6931472
    %v1040 = vmul.f32 -0.5, %v735
    %v1041 = vadd.f32 %v1040, 1.0
    %v1042 = vmul.f32 %v1041, %v735
    %v1043 = vand.u32 2147483647, %v735
    %vm1044 = vcmp.lt.f32.partialorder %v1043, 0.0004427343
    %v1045 = vsel %vm1044, %v1042, %v1039
    %v1046 = vadd.f32 %v737, 1.0
    %v1047 = vlog2.pop %v1046
    %v1048 = vmul.f32 %v1047, 0.6931472
    %v1049 = vmul.f32 -0.5, %v737
    %v1050 = vadd.f32 %v1049, 1.0
    %v1051 = vmul.f32 %v1050, %v737
    %v1052 = vand.u32 2147483647, %v737
    %vm1053 = vcmp.lt.f32.partialorder %v1052, 0.0004427343
    %v1054 = vsel %vm1053, %v1051, %v1048
    %v1055 = vadd.f32 %v739, 1.0
    %v1056 = vlog2.pop %v1055
    %v1057 = vmul.f32 %v1056, 0.6931472
    %v1058 = vmul.f32 -0.5, %v739
    %v1059 = vadd.f32 %v1058, 1.0
    %v1060 = vmul.f32 %v1059, %v739
    %v1061 = vand.u32 2147483647, %v739
    %vm1062 = vcmp.lt.f32.partialorder %v1061, 0.0004427343
    %v1063 = vsel %vm1062, %v1060, %v1057
    %v1064 = vadd.f32 %v741, 1.0
    %v1065 = vlog2.pop %v1064
    %v1066 = vmul.f32 %v1065, 0.6931472
    %v1067 = vmul.f32 -0.5, %v741
    %v1068 = vadd.f32 %v1067, 1.0
    %v1069 = vmul.f32 %v1068, %v741
    %v1070 = vand.u32 2147483647, %v741
    %vm1071 = vcmp.lt.f32.partialorder %v1070, 0.0004427343
    %v1072 = vsel %vm1071, %v1069, %v1066
    %v1073 = vadd.f32 %v743, 1.0
    %v1074 = vlog2.pop %v1073
    %v1075 = vmul.f32 %v1074, 0.6931472
    %v1076 = vmul.f32 -0.5, %v743
    %v1077 = vadd.f32 %v1076, 1.0
    %v1078 = vmul.f32 %v1077, %v743
    %v1079 = vand.u32 2147483647, %v743
    %vm1080 = vcmp.lt.f32.partialorder %v1079, 0.0004427343
    %v1081 = vsel %vm1080, %v1078, %v1075
    %v1082 = vadd.f32 %v745, 1.0
    %v1083 = vlog2.pop %v1082
    %v1084 = vmul.f32 %v1083, 0.6931472
    %v1085 = vmul.f32 -0.5, %v745
    %v1086 = vadd.f32 %v1085, 1.0
    %v1087 = vmul.f32 %v1086, %v745
    %v1088 = vand.u32 2147483647, %v745
    %vm1089 = vcmp.lt.f32.partialorder %v1088, 0.0004427343
    %v1090 = vsel %vm1089, %v1087, %v1084
    %v1091 = vadd.f32 %v747, 1.0
    %v1092 = vlog2.pop %v1091
    %v1093 = vmul.f32 %v1092, 0.6931472
    %v1094 = vmul.f32 -0.5, %v747
    %v1095 = vadd.f32 %v1094, 1.0
    %v1096 = vmul.f32 %v1095, %v747
    %v1097 = vand.u32 2147483647, %v747
    %vm1098 = vcmp.lt.f32.partialorder %v1097, 0.0004427343
    %v1099 = vsel %vm1098, %v1096, %v1093
    %v1100 = vadd.f32 %v749, 1.0
    %v1101 = vlog2.pop %v1100
    %v1102 = vmul.f32 %v1101, 0.6931472
    %v1103 = vmul.f32 -0.5, %v749
    %v1104 = vadd.f32 %v1103, 1.0
    %v1105 = vmul.f32 %v1104, %v749
    %v1106 = vand.u32 2147483647, %v749
    %vm1107 = vcmp.lt.f32.partialorder %v1106, 0.0004427343
    %v1108 = vsel %vm1107, %v1105, %v1102
    %v1109 = vadd.f32 %v751, 1.0
    %v1110 = vlog2.pop %v1109
    %v1111 = vmul.f32 %v1110, 0.6931472
    %v1112 = vmul.f32 -0.5, %v751
    %v1113 = vadd.f32 %v1112, 1.0
    %v1114 = vmul.f32 %v1113, %v751
    %v1115 = vand.u32 2147483647, %v751
    %vm1116 = vcmp.lt.f32.partialorder %v1115, 0.0004427343
    %v1117 = vsel %vm1116, %v1114, %v1111
    %v1118 = vadd.f32 %v753, 1.0
    %v1119 = vlog2.pop %v1118
    %v1120 = vmul.f32 %v1119, 0.6931472
    %v1121 = vmul.f32 -0.5, %v753
    %v1122 = vadd.f32 %v1121, 1.0
    %v1123 = vmul.f32 %v1122, %v753
    %v1124 = vand.u32 2147483647, %v753
    %vm1125 = vcmp.lt.f32.partialorder %v1124, 0.0004427343
    %v1126 = vsel %vm1125, %v1123, %v1120
    %v1127 = vadd.f32 %v755, 1.0
    %v1128 = vlog2.pop %v1127
    %v1129 = vmul.f32 %v1128, 0.6931472
    %v1130 = vmul.f32 -0.5, %v755
    %v1131 = vadd.f32 %v1130, 1.0
    %v1132 = vmul.f32 %v1131, %v755
    %v1133 = vand.u32 2147483647, %v755
    %vm1134 = vcmp.lt.f32.partialorder %v1133, 0.0004427343
    %v1135 = vsel %vm1134, %v1132, %v1129
    %v1136 = vadd.f32 %v757, 1.0
    %v1137 = vlog2.pop %v1136
    %v1138 = vmul.f32 %v1137, 0.6931472
    %v1139 = vmul.f32 -0.5, %v757
    %v1140 = vadd.f32 %v1139, 1.0
    %v1141 = vmul.f32 %v1140, %v757
    %v1142 = vand.u32 2147483647, %v757
    %vm1143 = vcmp.lt.f32.partialorder %v1142, 0.0004427343
    %v1144 = vsel %vm1143, %v1141, %v1138
    %v1145 = vadd.f32 %v759, 1.0
    %v1146 = vlog2.pop %v1145
    %v1147 = vmul.f32 %v1146, 0.6931472
    %v1148 = vmul.f32 -0.5, %v759
    %v1149 = vadd.f32 %v1148, 1.0
    %v1150 = vmul.f32 %v1149, %v759
    %v1151 = vand.u32 2147483647, %v759
    %vm1152 = vcmp.lt.f32.partialorder %v1151, 0.0004427343
    %v1153 = vsel %vm1152, %v1150, %v1147
    %v1154 = vadd.f32 %v761, 1.0
    %v1155 = vlog2.pop %v1154
    %v1156 = vmul.f32 %v1155, 0.6931472
    %v1157 = vmul.f32 -0.5, %v761
    %v1158 = vadd.f32 %v1157, 1.0
    %v1159 = vmul.f32 %v1158, %v761
    %v1160 = vand.u32 2147483647, %v761
    %vm1161 = vcmp.lt.f32.partialorder %v1160, 0.0004427343
    %v1162 = vsel %vm1161, %v1159, %v1156
    %v1163 = vadd.f32 %v763, 1.0
    %v1164 = vlog2.pop %v1163
    %v1165 = vmul.f32 %v1164, 0.6931472
    %v1166 = vmul.f32 -0.5, %v763
    %v1167 = vadd.f32 %v1166, 1.0
    %v1168 = vmul.f32 %v1167, %v763
    %v1169 = vand.u32 2147483647, %v763
    %vm1170 = vcmp.lt.f32.partialorder %v1169, 0.0004427343
    %v1171 = vsel %vm1170, %v1168, %v1165
    %v1172 = vadd.f32 %v765, 1.0
    %v1173 = vlog2.pop %v1172
    %v1174 = vmul.f32 %v1173, 0.6931472
    %v1175 = vmul.f32 -0.5, %v765
    %v1176 = vadd.f32 %v1175, 1.0
    %v1177 = vmul.f32 %v1176, %v765
    %v1178 = vand.u32 2147483647, %v765
    %vm1179 = vcmp.lt.f32.partialorder %v1178, 0.0004427343
    %v1180 = vsel %vm1179, %v1177, %v1174
    %v1181 = vadd.f32 %v767, 1.0
    %v1182 = vlog2.pop %v1181
    %v1183 = vmul.f32 %v1182, 0.6931472
    %v1184 = vmul.f32 -0.5, %v767
    %v1185 = vadd.f32 %v1184, 1.0
    %v1186 = vmul.f32 %v1185, %v767
    %v1187 = vand.u32 2147483647, %v767
    %vm1188 = vcmp.lt.f32.partialorder %v1187, 0.0004427343
    %v1189 = vsel %vm1188, %v1186, %v1183
    %v1190 = vadd.f32 %v769, 1.0
    %v1191 = vlog2.pop %v1190
    %v1192 = vmul.f32 %v1191, 0.6931472
    %v1193 = vmul.f32 -0.5, %v769
    %v1194 = vadd.f32 %v1193, 1.0
    %v1195 = vmul.f32 %v1194, %v769
    %v1196 = vand.u32 2147483647, %v769
    %vm1197 = vcmp.lt.f32.partialorder %v1196, 0.0004427343
    %v1198 = vsel %vm1197, %v1195, %v1192
    %v1199 = vadd.f32 %v771, 1.0
    %v1200 = vlog2.pop %v1199
    %v1201 = vmul.f32 %v1200, 0.6931472
    %v1202 = vmul.f32 -0.5, %v771
    %v1203 = vadd.f32 %v1202, 1.0
    %v1204 = vmul.f32 %v1203, %v771
    %v1205 = vand.u32 2147483647, %v771
    %vm1206 = vcmp.lt.f32.partialorder %v1205, 0.0004427343
    %v1207 = vsel %vm1206, %v1204, %v1201
    %v1208 = vadd.f32 %v773, 1.0
    %v1209 = vlog2.pop %v1208
    %v1210 = vmul.f32 %v1209, 0.6931472
    %v1211 = vmul.f32 -0.5, %v773
    %v1212 = vadd.f32 %v1211, 1.0
    %v1213 = vmul.f32 %v1212, %v773
    %v1214 = vand.u32 2147483647, %v773
    %vm1215 = vcmp.lt.f32.partialorder %v1214, 0.0004427343
    %v1216 = vsel %vm1215, %v1213, %v1210
    %v1217 = vadd.f32 %v775, 1.0
    %v1218 = vlog2.pop %v1217
    %v1219 = vmul.f32 %v1218, 0.6931472
    %v1220 = vmul.f32 -0.5, %v775
    %v1221 = vadd.f32 %v1220, 1.0
    %v1222 = vmul.f32 %v1221, %v775
    %v1223 = vand.u32 2147483647, %v775
    %vm1224 = vcmp.lt.f32.partialorder %v1223, 0.0004427343
    %v1225 = vsel %vm1224, %v1222, %v1219
    %v1226 = vadd.f32 %v777, 1.0
    %v1227 = vlog2.pop %v1226
    %v1228 = vmul.f32 %v1227, 0.6931472
    %v1229 = vmul.f32 -0.5, %v777
    %v1230 = vadd.f32 %v1229, 1.0
    %v1231 = vmul.f32 %v1230, %v777
    %v1232 = vand.u32 2147483647, %v777
    %vm1233 = vcmp.lt.f32.partialorder %v1232, 0.0004427343
    %v1234 = vsel %vm1233, %v1231, %v1228
    %v1235 = vadd.f32 %v779, 1.0
    %v1236 = vlog2.pop %v1235
    %v1237 = vmul.f32 %v1236, 0.6931472
    %v1238 = vmul.f32 -0.5, %v779
    %v1239 = vadd.f32 %v1238, 1.0
    %v1240 = vmul.f32 %v1239, %v779
    %v1241 = vand.u32 2147483647, %v779
    %vm1242 = vcmp.lt.f32.partialorder %v1241, 0.0004427343
    %v1243 = vsel %vm1242, %v1240, %v1237
    %v1244 = vadd.f32 %v781, 1.0
    %v1245 = vlog2.pop %v1244
    %v1246 = vmul.f32 %v1245, 0.6931472
    %v1247 = vmul.f32 -0.5, %v781
    %v1248 = vadd.f32 %v1247, 1.0
    %v1249 = vmul.f32 %v1248, %v781
    %v1250 = vand.u32 2147483647, %v781
    %vm1251 = vcmp.lt.f32.partialorder %v1250, 0.0004427343
    %v1252 = vsel %vm1251, %v1249, %v1246
    %v1253 = vadd.f32 %v783, 1.0
    %v1254 = vlog2.pop %v1253
    %v1255 = vmul.f32 %v1254, 0.6931472
    %v1256 = vmul.f32 -0.5, %v783
    %v1257 = vadd.f32 %v1256, 1.0
    %v1258 = vmul.f32 %v1257, %v783
    %v1259 = vand.u32 2147483647, %v783
    %vm1260 = vcmp.lt.f32.partialorder %v1259, 0.0004427343
    %v1261 = vsel %vm1260, %v1258, %v1255
    %v1262 = vadd.f32 %v785, 1.0
    %v1263 = vlog2.pop %v1262
    %v1264 = vmul.f32 %v1263, 0.6931472
    %v1265 = vmul.f32 -0.5, %v785
    %v1266 = vadd.f32 %v1265, 1.0
    %v1267 = vmul.f32 %v1266, %v785
    %v1268 = vand.u32 2147483647, %v785
    %vm1269 = vcmp.lt.f32.partialorder %v1268, 0.0004427343
    %v1270 = vsel %vm1269, %v1267, %v1264
    %v1271 = vadd.f32 %v787, 1.0
    %v1272 = vlog2.pop %v1271
    %v1273 = vmul.f32 %v1272, 0.6931472
    %v1274 = vmul.f32 -0.5, %v787
    %v1275 = vadd.f32 %v1274, 1.0
    %v1276 = vmul.f32 %v1275, %v787
    %v1277 = vand.u32 2147483647, %v787
    %vm1278 = vcmp.lt.f32.partialorder %v1277, 0.0004427343
    %v1279 = vsel %vm1278, %v1276, %v1273
    %v1280 = vadd.f32 %v789, 1.0
    %v1281 = vlog2.pop %v1280
    %v1282 = vmul.f32 %v1281, 0.6931472
    %v1283 = vmul.f32 -0.5, %v789
    %v1284 = vadd.f32 %v1283, 1.0
    %v1285 = vmul.f32 %v1284, %v789
    %v1286 = vand.u32 2147483647, %v789
    %vm1287 = vcmp.lt.f32.partialorder %v1286, 0.0004427343
    %v1288 = vsel %vm1287, %v1285, %v1282
    %v1289 = vadd.f32 %v791, 1.0
    %v1290 = vlog2.pop %v1289
    %v1291 = vmul.f32 %v1290, 0.6931472
    %v1292 = vmul.f32 -0.5, %v791
    %v1293 = vadd.f32 %v1292, 1.0
    %v1294 = vmul.f32 %v1293, %v791
    %v1295 = vand.u32 2147483647, %v791
    %vm1296 = vcmp.lt.f32.partialorder %v1295, 0.0004427343
    %v1297 = vsel %vm1296, %v1294, %v1291
    %v1298 = vadd.f32 %v793, 1.0
    %v1299 = vlog2.pop %v1298
    %v1300 = vmul.f32 %v1299, 0.6931472
    %v1301 = vmul.f32 -0.5, %v793
    %v1302 = vadd.f32 %v1301, 1.0
    %v1303 = vmul.f32 %v1302, %v793
    %v1304 = vand.u32 2147483647, %v793
    %vm1305 = vcmp.lt.f32.partialorder %v1304, 0.0004427343
    %v1306 = vsel %vm1305, %v1303, %v1300
    %v1307 = vadd.f32 %v795, 1.0
    %v1308 = vlog2.pop %v1307
    %v1309 = vmul.f32 %v1308, 0.6931472
    %v1310 = vmul.f32 -0.5, %v795
    %v1311 = vadd.f32 %v1310, 1.0
    %v1312 = vmul.f32 %v1311, %v795
    %v1313 = vand.u32 2147483647, %v795
    %vm1314 = vcmp.lt.f32.partialorder %v1313, 0.0004427343
    %v1315 = vsel %vm1314, %v1312, %v1309
    %v1316 = vadd.f32 %v797, 1.0
    %v1317 = vlog2.pop %v1316
    %v1318 = vmul.f32 %v1317, 0.6931472
    %v1319 = vmul.f32 -0.5, %v797
    %v1320 = vadd.f32 %v1319, 1.0
    %v1321 = vmul.f32 %v1320, %v797
    %v1322 = vand.u32 2147483647, %v797
    %vm1323 = vcmp.lt.f32.partialorder %v1322, 0.0004427343
    %v1324 = vsel %vm1323, %v1321, %v1318
    %v1325 = vadd.f32 %v799, 1.0
    %v1326 = vlog2.pop %v1325
    %v1327 = vmul.f32 %v1326, 0.6931472
    %v1328 = vmul.f32 -0.5, %v799
    %v1329 = vadd.f32 %v1328, 1.0
    %v1330 = vmul.f32 %v1329, %v799
    %v1331 = vand.u32 2147483647, %v799
    %vm1332 = vcmp.lt.f32.partialorder %v1331, 0.0004427343
    %v1333 = vsel %vm1332, %v1330, %v1327
    %v1334 = vadd.f32 %v801, 1.0
    %v1335 = vlog2.pop %v1334
    %v1336 = vmul.f32 %v1335, 0.6931472
    %v1337 = vmul.f32 -0.5, %v801
    %v1338 = vadd.f32 %v1337, 1.0
    %v1339 = vmul.f32 %v1338, %v801
    %v1340 = vand.u32 2147483647, %v801
    %vm1341 = vcmp.lt.f32.partialorder %v1340, 0.0004427343
    %v1342 = vsel %vm1341, %v1339, %v1336
    %v1343 = vadd.f32 %v803, 1.0
    %v1344 = vlog2.pop %v1343
    %v1345 = vmul.f32 %v1344, 0.6931472
    %v1346 = vmul.f32 -0.5, %v803
    %v1347 = vadd.f32 %v1346, 1.0
    %v1348 = vmul.f32 %v1347, %v803
    %v1349 = vand.u32 2147483647, %v803
    %vm1350 = vcmp.lt.f32.partialorder %v1349, 0.0004427343
    %v1351 = vsel %vm1350, %v1348, %v1345
    %v1352 = vadd.f32 %v805, 1.0
    %v1353 = vlog2.pop %v1352
    %v1354 = vmul.f32 %v1353, 0.6931472
    %v1355 = vmul.f32 -0.5, %v805
    %v1356 = vadd.f32 %v1355, 1.0
    %v1357 = vmul.f32 %v1356, %v805
    %v1358 = vand.u32 2147483647, %v805
    %vm1359 = vcmp.lt.f32.partialorder %v1358, 0.0004427343
    %v1360 = vsel %vm1359, %v1357, %v1354
    %v1361 = vadd.f32 %v807, 1.0
    %v1362 = vlog2.pop %v1361
    %v1363 = vmul.f32 %v1362, 0.6931472
    %v1364 = vmul.f32 -0.5, %v807
    %v1365 = vadd.f32 %v1364, 1.0
    %v1366 = vmul.f32 %v1365, %v807
    %v1367 = vand.u32 2147483647, %v807
    %vm1368 = vcmp.lt.f32.partialorder %v1367, 0.0004427343
    %v1369 = vsel %vm1368, %v1366, %v1363
    %v1370 = vadd.f32 %v809, 1.0
    %v1371 = vlog2.pop %v1370
    %v1372 = vmul.f32 %v1371, 0.6931472
    %v1373 = vmul.f32 -0.5, %v809
    %v1374 = vadd.f32 %v1373, 1.0
    %v1375 = vmul.f32 %v1374, %v809
    %v1376 = vand.u32 2147483647, %v809
    %vm1377 = vcmp.lt.f32.partialorder %v1376, 0.0004427343
    %v1378 = vsel %vm1377, %v1375, %v1372
    %v1379 = vadd.f32 %v811, 1.0
    %v1380 = vlog2.pop %v1379
    %v1381 = vmul.f32 %v1380, 0.6931472
    %v1382 = vmul.f32 -0.5, %v811
    %v1383 = vadd.f32 %v1382, 1.0
    %v1384 = vmul.f32 %v1383, %v811
    %v1385 = vand.u32 2147483647, %v811
    %vm1386 = vcmp.lt.f32.partialorder %v1385, 0.0004427343
    %v1387 = vsel %vm1386, %v1384, %v1381
    %v1388 = vadd.f32 %v492, %v820
    %v1389 = vadd.f32 %v493, %v829
    %v1390 = vadd.f32 %v494, %v838
    %v1391 = vadd.f32 %v495, %v847
    %v1392 = vadd.f32 %v496, %v856
    %v1393 = vadd.f32 %v497, %v865
    %v1394 = vadd.f32 %v498, %v874
    %v1395 = vadd.f32 %v499, %v883
    %v1396 = vadd.f32 %v500, %v892
    %v1397 = vadd.f32 %v501, %v901
    %v1398 = vadd.f32 %v502, %v910
    %v1399 = vadd.f32 %v503, %v919
    %v1400 = vadd.f32 %v504, %v928
    %v1401 = vadd.f32 %v505, %v937
    %v1402 = vadd.f32 %v506, %v946
    %v1403 = vadd.f32 %v507, %v955
    %v1404 = vadd.f32 %v508, %v964
    %v1405 = vadd.f32 %v509, %v973
    %v1406 = vadd.f32 %v510, %v982
    %v1407 = vadd.f32 %v511, %v991
    %v1408 = vadd.f32 %v512, %v1000
    %v1409 = vadd.f32 %v513, %v1009
    %v1410 = vadd.f32 %v514, %v1018
    %v1411 = vadd.f32 %v515, %v1027
    %v1412 = vadd.f32 %v516, %v1036
    %v1413 = vadd.f32 %v517, %v1045
    %v1414 = vadd.f32 %v518, %v1054
    %v1415 = vadd.f32 %v519, %v1063
    %v1416 = vadd.f32 %v520, %v1072
    %v1417 = vadd.f32 %v521, %v1081
    %v1418 = vadd.f32 %v522, %v1090
    %v1419 = vadd.f32 %v523, %v1099
    %v1420 = vadd.f32 %v524, %v1108
    %v1421 = vadd.f32 %v525, %v1117
    %v1422 = vadd.f32 %v526, %v1126
    %v1423 = vadd.f32 %v527, %v1135
    %v1424 = vadd.f32 %v528, %v1144
    %v1425 = vadd.f32 %v529, %v1153
    %v1426 = vadd.f32 %v530, %v1162
    %v1427 = vadd.f32 %v531, %v1171
    %v1428 = vadd.f32 %v532, %v1180
    %v1429 = vadd.f32 %v533, %v1189
    %v1430 = vadd.f32 %v534, %v1198
    %v1431 = vadd.f32 %v535, %v1207
    %v1432 = vadd.f32 %v536, %v1216
    %v1433 = vadd.f32 %v537, %v1225
    %v1434 = vadd.f32 %v538, %v1234
    %v1435 = vadd.f32 %v539, %v1243
    %v1436 = vadd.f32 %v540, %v1252
    %v1437 = vadd.f32 %v541, %v1261
    %v1438 = vadd.f32 %v542, %v1270
    %v1439 = vadd.f32 %v543, %v1279
    %v1440 = vadd.f32 %v544, %v1288
    %v1441 = vadd.f32 %v545, %v1297
    %v1442 = vadd.f32 %v546, %v1306
    %v1443 = vadd.f32 %v547, %v1315
    %v1444 = vadd.f32 %v548, %v1324
    %v1445 = vadd.f32 %v549, %v1333
    %v1446 = vadd.f32 %v550, %v1342
    %v1447 = vadd.f32 %v551, %v1351
    %v1448 = vadd.f32 %v552, %v1360
    %v1449 = vadd.f32 %v553, %v1369
    %v1450 = vadd.f32 %v554, %v1378
    %v1451 = vadd.f32 %v555, %v1387
    %v1452 = vsel %vm236, 1.0, 0.0
    %v1453 = vsel %vm237, 1.0, 0.0
    %v1454 = vsel %vm238, 1.0, 0.0
    %v1455 = vsel %vm239, 1.0, 0.0
    %v1456 = vsel %vm240, 1.0, 0.0
    %v1457 = vsel %vm241, 1.0, 0.0
    %v1458 = vsel %vm242, 1.0, 0.0
    %v1459 = vsel %vm243, 1.0, 0.0
    %v1460 = vsel %vm244, 1.0, 0.0
    %v1461 = vsel %vm245, 1.0, 0.0
    %v1462 = vsel %vm246, 1.0, 0.0
    %v1463 = vsel %vm247, 1.0, 0.0
    %v1464 = vsel %vm248, 1.0, 0.0
    %v1465 = vsel %vm249, 1.0, 0.0
    %v1466 = vsel %vm250, 1.0, 0.0
    %v1467 = vsel %vm251, 1.0, 0.0
    %v1468 = vsel %vm252, 1.0, 0.0
    %v1469 = vsel %vm253, 1.0, 0.0
    %v1470 = vsel %vm254, 1.0, 0.0
    %v1471 = vsel %vm255, 1.0, 0.0
    %v1472 = vsel %vm256, 1.0, 0.0
    %v1473 = vsel %vm257, 1.0, 0.0
    %v1474 = vsel %vm258, 1.0, 0.0
    %v1475 = vsel %vm259, 1.0, 0.0
    %v1476 = vsel %vm260, 1.0, 0.0
    %v1477 = vsel %vm261, 1.0, 0.0
    %v1478 = vsel %vm262, 1.0, 0.0
    %v1479 = vsel %vm263, 1.0, 0.0
    %v1480 = vsel %vm264, 1.0, 0.0
    %v1481 = vsel %vm265, 1.0, 0.0
    %v1482 = vsel %vm266, 1.0, 0.0
    %v1483 = vsel %vm267, 1.0, 0.0
    %v1484 = vsel %vm268, 1.0, 0.0
    %v1485 = vsel %vm269, 1.0, 0.0
    %v1486 = vsel %vm270, 1.0, 0.0
    %v1487 = vsel %vm271, 1.0, 0.0
    %v1488 = vsel %vm272, 1.0, 0.0
    %v1489 = vsel %vm273, 1.0, 0.0
    %v1490 = vsel %vm274, 1.0, 0.0
    %v1491 = vsel %vm275, 1.0, 0.0
    %v1492 = vsel %vm276, 1.0, 0.0
    %v1493 = vsel %vm277, 1.0, 0.0
    %v1494 = vsel %vm278, 1.0, 0.0
    %v1495 = vsel %vm279, 1.0, 0.0
    %v1496 = vsel %vm280, 1.0, 0.0
    %v1497 = vsel %vm281, 1.0, 0.0
    %v1498 = vsel %vm282, 1.0, 0.0
    %v1499 = vsel %vm283, 1.0, 0.0
    %v1500 = vsel %vm284, 1.0, 0.0
    %v1501 = vsel %vm285, 1.0, 0.0
    %v1502 = vsel %vm286, 1.0, 0.0
    %v1503 = vsel %vm287, 1.0, 0.0
    %v1504 = vsel %vm288, 1.0, 0.0
    %v1505 = vsel %vm289, 1.0, 0.0
    %v1506 = vsel %vm290, 1.0, 0.0
    %v1507 = vsel %vm291, 1.0, 0.0
    %v1508 = vsel %vm292, 1.0, 0.0
    %v1509 = vsel %vm293, 1.0, 0.0
    %v1510 = vsel %vm294, 1.0, 0.0
    %v1511 = vsel %vm295, 1.0, 0.0
    %v1512 = vsel %vm296, 1.0, 0.0
    %v1513 = vsel %vm297, 1.0, 0.0
    %v1514 = vsel %vm298, 1.0, 0.0
    %v1515 = vsel %vm299, 1.0, 0.0
    %v1516 = vadd.f32 %v1452, %v1453
    %v1517 = vadd.f32 %v1516, %v1454
    %v1518 = vadd.f32 %v1517, %v1455
    %v1519 = vadd.f32 %v1518, %v1456
    %v1520 = vadd.f32 %v1519, %v1457
    %v1521 = vadd.f32 %v1520, %v1458
    %v1522 = vadd.f32 %v1521, %v1459
    %v1523 = vadd.f32 %v1522, %v1460
    %v1524 = vadd.f32 %v1523, %v1461
    %v1525 = vadd.f32 %v1524, %v1462
    %v1526 = vadd.f32 %v1525, %v1463
    %v1527 = vadd.f32 %v1526, %v1464
    %v1528 = vadd.f32 %v1527, %v1465
    %v1529 = vadd.f32 %v1528, %v1466
    %v1530 = vadd.f32 %v1529, %v1467
    %v1531 = vadd.f32 %v1530, %v1468
    %v1532 = vadd.f32 %v1531, %v1469
    %v1533 = vadd.f32 %v1532, %v1470
    %v1534 = vadd.f32 %v1533, %v1471
    %v1535 = vadd.f32 %v1534, %v1472
    %v1536 = vadd.f32 %v1535, %v1473
    %v1537 = vadd.f32 %v1536, %v1474
    %v1538 = vadd.f32 %v1537, %v1475
    %v1539 = vadd.f32 %v1538, %v1476
    %v1540 = vadd.f32 %v1539, %v1477
    %v1541 = vadd.f32 %v1540, %v1478
    %v1542 = vadd.f32 %v1541, %v1479
    %v1543 = vadd.f32 %v1542, %v1480
    %v1544 = vadd.f32 %v1543, %v1481
    %v1545 = vadd.f32 %v1544, %v1482
    %v1546 = vadd.f32 %v1545, %v1483
    %v1547 = vadd.f32 %v1546, %v1484
    %v1548 = vadd.f32 %v1547, %v1485
    %v1549 = vadd.f32 %v1548, %v1486
    %v1550 = vadd.f32 %v1549, %v1487
    %v1551 = vadd.f32 %v1550, %v1488
    %v1552 = vadd.f32 %v1551, %v1489
    %v1553 = vadd.f32 %v1552, %v1490
    %v1554 = vadd.f32 %v1553, %v1491
    %v1555 = vadd.f32 %v1554, %v1492
    %v1556 = vadd.f32 %v1555, %v1493
    %v1557 = vadd.f32 %v1556, %v1494
    %v1558 = vadd.f32 %v1557, %v1495
    %v1559 = vadd.f32 %v1558, %v1496
    %v1560 = vadd.f32 %v1559, %v1497
    %v1561 = vadd.f32 %v1560, %v1498
    %v1562 = vadd.f32 %v1561, %v1499
    %v1563 = vadd.f32 %v1562, %v1500
    %v1564 = vadd.f32 %v1563, %v1501
    %v1565 = vadd.f32 %v1564, %v1502
    %v1566 = vadd.f32 %v1565, %v1503
    %v1567 = vadd.f32 %v1566, %v1504
    %v1568 = vadd.f32 %v1567, %v1505
    %v1569 = vadd.f32 %v1568, %v1506
    %v1570 = vadd.f32 %v1569, %v1507
    %v1571 = vadd.f32 %v1570, %v1508
    %v1572 = vadd.f32 %v1571, %v1509
    %v1573 = vadd.f32 %v1572, %v1510
    %v1574 = vadd.f32 %v1573, %v1511
    %v1575 = vadd.f32 %v1574, %v1512
    %v1576 = vadd.f32 %v1575, %v1513
    %v1577 = vadd.f32 %v1576, %v1514
    %v1578 = vadd.f32 %v1577, %v1515
    %v1579 = vadd.f32 %v1578, 0.0
    %v1580 = vsel %vm300, 1.0, 0.0
    %v1581 = vsel %vm301, 1.0, 0.0
    %v1582 = vsel %vm302, 1.0, 0.0
    %v1583 = vsel %vm303, 1.0, 0.0
    %v1584 = vsel %vm304, 1.0, 0.0
    %v1585 = vsel %vm305, 1.0, 0.0
    %v1586 = vsel %vm306, 1.0, 0.0
    %v1587 = vsel %vm307, 1.0, 0.0
    %v1588 = vsel %vm308, 1.0, 0.0
    %v1589 = vsel %vm309, 1.0, 0.0
    %v1590 = vsel %vm310, 1.0, 0.0
    %v1591 = vsel %vm311, 1.0, 0.0
    %v1592 = vsel %vm312, 1.0, 0.0
    %v1593 = vsel %vm313, 1.0, 0.0
    %v1594 = vsel %vm314, 1.0, 0.0
    %v1595 = vsel %vm315, 1.0, 0.0
    %v1596 = vsel %vm316, 1.0, 0.0
    %v1597 = vsel %vm317, 1.0, 0.0
    %v1598 = vsel %vm318, 1.0, 0.0
    %v1599 = vsel %vm319, 1.0, 0.0
    %v1600 = vsel %vm320, 1.0, 0.0
    %v1601 = vsel %vm321, 1.0, 0.0
    %v1602 = vsel %vm322, 1.0, 0.0
    %v1603 = vsel %vm323, 1.0, 0.0
    %v1604 = vsel %vm324, 1.0, 0.0
    %v1605 = vsel %vm325, 1.0, 0.0
    %v1606 = vsel %vm326, 1.0, 0.0
    %v1607 = vsel %vm327, 1.0, 0.0
    %v1608 = vsel %vm328, 1.0, 0.0
    %v1609 = vsel %vm329, 1.0, 0.0
    %v1610 = vsel %vm330, 1.0, 0.0
    %v1611 = vsel %vm331, 1.0, 0.0
    %v1612 = vsel %vm332, 1.0, 0.0
    %v1613 = vsel %vm333, 1.0, 0.0
    %v1614 = vsel %vm334, 1.0, 0.0
    %v1615 = vsel %vm335, 1.0, 0.0
    %v1616 = vsel %vm336, 1.0, 0.0
    %v1617 = vsel %vm337, 1.0, 0.0
    %v1618 = vsel %vm338, 1.0, 0.0
    %v1619 = vsel %vm339, 1.0, 0.0
    %v1620 = vsel %vm340, 1.0, 0.0
    %v1621 = vsel %vm341, 1.0, 0.0
    %v1622 = vsel %vm342, 1.0, 0.0
    %v1623 = vsel %vm343, 1.0, 0.0
    %v1624 = vsel %vm344, 1.0, 0.0
    %v1625 = vsel %vm345, 1.0, 0.0
    %v1626 = vsel %vm346, 1.0, 0.0
    %v1627 = vsel %vm347, 1.0, 0.0
    %v1628 = vsel %vm348, 1.0, 0.0
    %v1629 = vsel %vm349, 1.0, 0.0
    %v1630 = vsel %vm350, 1.0, 0.0
    %v1631 = vsel %vm351, 1.0, 0.0
    %v1632 = vsel %vm352, 1.0, 0.0
    %v1633 = vsel %vm353, 1.0, 0.0
    %v1634 = vsel %vm354, 1.0, 0.0
    %v1635 = vsel %vm355, 1.0, 0.0
    %v1636 = vsel %vm356, 1.0, 0.0
    %v1637 = vsel %vm357, 1.0, 0.0
    %v1638 = vsel %vm358, 1.0, 0.0
    %v1639 = vsel %vm359, 1.0, 0.0
    %v1640 = vsel %vm360, 1.0, 0.0
    %v1641 = vsel %vm361, 1.0, 0.0
    %v1642 = vsel %vm362, 1.0, 0.0
    %v1643 = vsel %vm363, 1.0, 0.0
    %v1644 = vadd.f32 %v1580, %v1581
    %v1645 = vadd.f32 %v1644, %v1582
    %v1646 = vadd.f32 %v1645, %v1583
    %v1647 = vadd.f32 %v1646, %v1584
    %v1648 = vadd.f32 %v1647, %v1585
    %v1649 = vadd.f32 %v1648, %v1586
    %v1650 = vadd.f32 %v1649, %v1587
    %v1651 = vadd.f32 %v1650, %v1588
    %v1652 = vadd.f32 %v1651, %v1589
    %v1653 = vadd.f32 %v1652, %v1590
    %v1654 = vadd.f32 %v1653, %v1591
    %v1655 = vadd.f32 %v1654, %v1592
    %v1656 = vadd.f32 %v1655, %v1593
    %v1657 = vadd.f32 %v1656, %v1594
    %v1658 = vadd.f32 %v1657, %v1595
    %v1659 = vadd.f32 %v1658, %v1596
    %v1660 = vadd.f32 %v1659, %v1597
    %v1661 = vadd.f32 %v1660, %v1598
    %v1662 = vadd.f32 %v1661, %v1599
    %v1663 = vadd.f32 %v1662, %v1600
    %v1664 = vadd.f32 %v1663, %v1601
    %v1665 = vadd.f32 %v1664, %v1602
    %v1666 = vadd.f32 %v1665, %v1603
    %v1667 = vadd.f32 %v1666, %v1604
    %v1668 = vadd.f32 %v1667, %v1605
    %v1669 = vadd.f32 %v1668, %v1606
    %v1670 = vadd.f32 %v1669, %v1607
    %v1671 = vadd.f32 %v1670, %v1608
    %v1672 = vadd.f32 %v1671, %v1609
    %v1673 = vadd.f32 %v1672, %v1610
    %v1674 = vadd.f32 %v1673, %v1611
    %v1675 = vadd.f32 %v1674, %v1612
    %v1676 = vadd.f32 %v1675, %v1613
    %v1677 = vadd.f32 %v1676, %v1614
    %v1678 = vadd.f32 %v1677, %v1615
    %v1679 = vadd.f32 %v1678, %v1616
    %v1680 = vadd.f32 %v1679, %v1617
    %v1681 = vadd.f32 %v1680, %v1618
    %v1682 = vadd.f32 %v1681, %v1619
    %v1683 = vadd.f32 %v1682, %v1620
    %v1684 = vadd.f32 %v1683, %v1621
    %v1685 = vadd.f32 %v1684, %v1622
    %v1686 = vadd.f32 %v1685, %v1623
    %v1687 = vadd.f32 %v1686, %v1624
    %v1688 = vadd.f32 %v1687, %v1625
    %v1689 = vadd.f32 %v1688, %v1626
    %v1690 = vadd.f32 %v1689, %v1627
    %v1691 = vadd.f32 %v1690, %v1628
    %v1692 = vadd.f32 %v1691, %v1629
    %v1693 = vadd.f32 %v1692, %v1630
    %v1694 = vadd.f32 %v1693, %v1631
    %v1695 = vadd.f32 %v1694, %v1632
    %v1696 = vadd.f32 %v1695, %v1633
    %v1697 = vadd.f32 %v1696, %v1634
    %v1698 = vadd.f32 %v1697, %v1635
    %v1699 = vadd.f32 %v1698, %v1636
    %v1700 = vadd.f32 %v1699, %v1637
    %v1701 = vadd.f32 %v1700, %v1638
    %v1702 = vadd.f32 %v1701, %v1639
    %v1703 = vadd.f32 %v1702, %v1640
    %v1704 = vadd.f32 %v1703, %v1641
    %v1705 = vadd.f32 %v1704, %v1642
    %v1706 = vadd.f32 %v1705, %v1643
    %v1707 = vadd.f32 %v1706, 0.0
    %v1708 = vsel %vm236, %v1388, 0.0
    %v1709 = vsel %vm237, %v1389, 0.0
    %v1710 = vsel %vm238, %v1390, 0.0
    %v1711 = vsel %vm239, %v1391, 0.0
    %v1712 = vsel %vm240, %v1392, 0.0
    %v1713 = vsel %vm241, %v1393, 0.0
    %v1714 = vsel %vm242, %v1394, 0.0
    %v1715 = vsel %vm243, %v1395, 0.0
    %v1716 = vsel %vm244, %v1396, 0.0
    %v1717 = vsel %vm245, %v1397, 0.0
    %v1718 = vsel %vm246, %v1398, 0.0
    %v1719 = vsel %vm247, %v1399, 0.0
    %v1720 = vsel %vm248, %v1400, 0.0
    %v1721 = vsel %vm249, %v1401, 0.0
    %v1722 = vsel %vm250, %v1402, 0.0
    %v1723 = vsel %vm251, %v1403, 0.0
    %v1724 = vsel %vm252, %v1404, 0.0
    %v1725 = vsel %vm253, %v1405, 0.0
    %v1726 = vsel %vm254, %v1406, 0.0
    %v1727 = vsel %vm255, %v1407, 0.0
    %v1728 = vsel %vm256, %v1408, 0.0
    %v1729 = vsel %vm257, %v1409, 0.0
    %v1730 = vsel %vm258, %v1410, 0.0
    %v1731 = vsel %vm259, %v1411, 0.0
    %v1732 = vsel %vm260, %v1412, 0.0
    %v1733 = vsel %vm261, %v1413, 0.0
    %v1734 = vsel %vm262, %v1414, 0.0
    %v1735 = vsel %vm263, %v1415, 0.0
    %v1736 = vsel %vm264, %v1416, 0.0
    %v1737 = vsel %vm265, %v1417, 0.0
    %v1738 = vsel %vm266, %v1418, 0.0
    %v1739 = vsel %vm267, %v1419, 0.0
    %v1740 = vsel %vm268, %v1420, 0.0
    %v1741 = vsel %vm269, %v1421, 0.0
    %v1742 = vsel %vm270, %v1422, 0.0
    %v1743 = vsel %vm271, %v1423, 0.0
    %v1744 = vsel %vm272, %v1424, 0.0
    %v1745 = vsel %vm273, %v1425, 0.0
    %v1746 = vsel %vm274, %v1426, 0.0
    %v1747 = vsel %vm275, %v1427, 0.0
    %v1748 = vsel %vm276, %v1428, 0.0
    %v1749 = vsel %vm277, %v1429, 0.0
    %v1750 = vsel %vm278, %v1430, 0.0
    %v1751 = vsel %vm279, %v1431, 0.0
    %v1752 = vsel %vm280, %v1432, 0.0
    %v1753 = vsel %vm281, %v1433, 0.0
    %v1754 = vsel %vm282, %v1434, 0.0
    %v1755 = vsel %vm283, %v1435, 0.0
    %v1756 = vsel %vm284, %v1436, 0.0
    %v1757 = vsel %vm285, %v1437, 0.0
    %v1758 = vsel %vm286, %v1438, 0.0
    %v1759 = vsel %vm287, %v1439, 0.0
    %v1760 = vsel %vm288, %v1440, 0.0
    %v1761 = vsel %vm289, %v1441, 0.0
    %v1762 = vsel %vm290, %v1442, 0.0
    %v1763 = vsel %vm291, %v1443, 0.0
    %v1764 = vsel %vm292, %v1444, 0.0
    %v1765 = vsel %vm293, %v1445, 0.0
    %v1766 = vsel %vm294, %v1446, 0.0
    %v1767 = vsel %vm295, %v1447, 0.0
    %v1768 = vsel %vm296, %v1448, 0.0
    %v1769 = vsel %vm297, %v1449, 0.0
    %v1770 = vsel %vm298, %v1450, 0.0
    %v1771 = vsel %vm299, %v1451, 0.0
    %v1772 = vadd.f32 %v1708, %v1709
    %v1773 = vadd.f32 %v1772, %v1710
    %v1774 = vadd.f32 %v1773, %v1711
    %v1775 = vadd.f32 %v1774, %v1712
    %v1776 = vadd.f32 %v1775, %v1713
    %v1777 = vadd.f32 %v1776, %v1714
    %v1778 = vadd.f32 %v1777, %v1715
    %v1779 = vadd.f32 %v1778, %v1716
    %v1780 = vadd.f32 %v1779, %v1717
    %v1781 = vadd.f32 %v1780, %v1718
    %v1782 = vadd.f32 %v1781, %v1719
    %v1783 = vadd.f32 %v1782, %v1720
    %v1784 = vadd.f32 %v1783, %v1721
    %v1785 = vadd.f32 %v1784, %v1722
    %v1786 = vadd.f32 %v1785, %v1723
    %v1787 = vadd.f32 %v1786, %v1724
    %v1788 = vadd.f32 %v1787, %v1725
    %v1789 = vadd.f32 %v1788, %v1726
    %v1790 = vadd.f32 %v1789, %v1727
    %v1791 = vadd.f32 %v1790, %v1728
    %v1792 = vadd.f32 %v1791, %v1729
    %v1793 = vadd.f32 %v1792, %v1730
    %v1794 = vadd.f32 %v1793, %v1731
    %v1795 = vadd.f32 %v1794, %v1732
    %v1796 = vadd.f32 %v1795, %v1733
    %v1797 = vadd.f32 %v1796, %v1734
    %v1798 = vadd.f32 %v1797, %v1735
    %v1799 = vadd.f32 %v1798, %v1736
    %v1800 = vadd.f32 %v1799, %v1737
    %v1801 = vadd.f32 %v1800, %v1738
    %v1802 = vadd.f32 %v1801, %v1739
    %v1803 = vadd.f32 %v1802, %v1740
    %v1804 = vadd.f32 %v1803, %v1741
    %v1805 = vadd.f32 %v1804, %v1742
    %v1806 = vadd.f32 %v1805, %v1743
    %v1807 = vadd.f32 %v1806, %v1744
    %v1808 = vadd.f32 %v1807, %v1745
    %v1809 = vadd.f32 %v1808, %v1746
    %v1810 = vadd.f32 %v1809, %v1747
    %v1811 = vadd.f32 %v1810, %v1748
    %v1812 = vadd.f32 %v1811, %v1749
    %v1813 = vadd.f32 %v1812, %v1750
    %v1814 = vadd.f32 %v1813, %v1751
    %v1815 = vadd.f32 %v1814, %v1752
    %v1816 = vadd.f32 %v1815, %v1753
    %v1817 = vadd.f32 %v1816, %v1754
    %v1818 = vadd.f32 %v1817, %v1755
    %v1819 = vadd.f32 %v1818, %v1756
    %v1820 = vadd.f32 %v1819, %v1757
    %v1821 = vadd.f32 %v1820, %v1758
    %v1822 = vadd.f32 %v1821, %v1759
    %v1823 = vadd.f32 %v1822, %v1760
    %v1824 = vadd.f32 %v1823, %v1761
    %v1825 = vadd.f32 %v1824, %v1762
    %v1826 = vadd.f32 %v1825, %v1763
    %v1827 = vadd.f32 %v1826, %v1764
    %v1828 = vadd.f32 %v1827, %v1765
    %v1829 = vadd.f32 %v1828, %v1766
    %v1830 = vadd.f32 %v1829, %v1767
    %v1831 = vadd.f32 %v1830, %v1768
    %v1832 = vadd.f32 %v1831, %v1769
    %v1833 = vadd.f32 %v1832, %v1770
    %v1834 = vadd.f32 %v1833, %v1771
    %v1835 = vadd.f32 %v1834, 0.0
    %v1836 = vsel %vm300, %v1388, 0.0
    %v1837 = vsel %vm301, %v1389, 0.0
    %v1838 = vsel %vm302, %v1390, 0.0
    %v1839 = vsel %vm303, %v1391, 0.0
    %v1840 = vsel %vm304, %v1392, 0.0
    %v1841 = vsel %vm305, %v1393, 0.0
    %v1842 = vsel %vm306, %v1394, 0.0
    %v1843 = vsel %vm307, %v1395, 0.0
    %v1844 = vsel %vm308, %v1396, 0.0
    %v1845 = vsel %vm309, %v1397, 0.0
    %v1846 = vsel %vm310, %v1398, 0.0
    %v1847 = vsel %vm311, %v1399, 0.0
    %v1848 = vsel %vm312, %v1400, 0.0
    %v1849 = vsel %vm313, %v1401, 0.0
    %v1850 = vsel %vm314, %v1402, 0.0
    %v1851 = vsel %vm315, %v1403, 0.0
    %v1852 = vsel %vm316, %v1404, 0.0
    %v1853 = vsel %vm317, %v1405, 0.0
    %v1854 = vsel %vm318, %v1406, 0.0
    %v1855 = vsel %vm319, %v1407, 0.0
    %v1856 = vsel %vm320, %v1408, 0.0
    %v1857 = vsel %vm321, %v1409, 0.0
    %v1858 = vsel %vm322, %v1410, 0.0
    %v1859 = vsel %vm323, %v1411, 0.0
    %v1860 = vsel %vm324, %v1412, 0.0
    %v1861 = vsel %vm325, %v1413, 0.0
    %v1862 = vsel %vm326, %v1414, 0.0
    %v1863 = vsel %vm327, %v1415, 0.0
    %v1864 = vsel %vm328, %v1416, 0.0
    %v1865 = vsel %vm329, %v1417, 0.0
    %v1866 = vsel %vm330, %v1418, 0.0
    %v1867 = vsel %vm331, %v1419, 0.0
    %v1868 = vsel %vm332, %v1420, 0.0
    %v1869 = vsel %vm333, %v1421, 0.0
    %v1870 = vsel %vm334, %v1422, 0.0
    %v1871 = vsel %vm335, %v1423, 0.0
    %v1872 = vsel %vm336, %v1424, 0.0
    %v1873 = vsel %vm337, %v1425, 0.0
    %v1874 = vsel %vm338, %v1426, 0.0
    %v1875 = vsel %vm339, %v1427, 0.0
    %v1876 = vsel %vm340, %v1428, 0.0
    %v1877 = vsel %vm341, %v1429, 0.0
    %v1878 = vsel %vm342, %v1430, 0.0
    %v1879 = vsel %vm343, %v1431, 0.0
    %v1880 = vsel %vm344, %v1432, 0.0
    %v1881 = vsel %vm345, %v1433, 0.0
    %v1882 = vsel %vm346, %v1434, 0.0
    %v1883 = vsel %vm347, %v1435, 0.0
    %v1884 = vsel %vm348, %v1436, 0.0
    %v1885 = vsel %vm349, %v1437, 0.0
    %v1886 = vsel %vm350, %v1438, 0.0
    %v1887 = vsel %vm351, %v1439, 0.0
    %v1888 = vsel %vm352, %v1440, 0.0
    %v1889 = vsel %vm353, %v1441, 0.0
    %v1890 = vsel %vm354, %v1442, 0.0
    %v1891 = vsel %vm355, %v1443, 0.0
    %v1892 = vsel %vm356, %v1444, 0.0
    %v1893 = vsel %vm357, %v1445, 0.0
    %v1894 = vsel %vm358, %v1446, 0.0
    %v1895 = vsel %vm359, %v1447, 0.0
    %v1896 = vsel %vm360, %v1448, 0.0
    %v1897 = vsel %vm361, %v1449, 0.0
    %v1898 = vsel %vm362, %v1450, 0.0
    %v1899 = vsel %vm363, %v1451, 0.0
    %v1900 = vadd.f32 %v1836, %v1837
    %v1901 = vadd.f32 %v1900, %v1838
    %v1902 = vadd.f32 %v1901, %v1839
    %v1903 = vadd.f32 %v1902, %v1840
    %v1904 = vadd.f32 %v1903, %v1841
    %v1905 = vadd.f32 %v1904, %v1842
    %v1906 = vadd.f32 %v1905, %v1843
    %v1907 = vadd.f32 %v1906, %v1844
    %v1908 = vadd.f32 %v1907, %v1845
    %v1909 = vadd.f32 %v1908, %v1846
    %v1910 = vadd.f32 %v1909, %v1847
    %v1911 = vadd.f32 %v1910, %v1848
    %v1912 = vadd.f32 %v1911, %v1849
    %v1913 = vadd.f32 %v1912, %v1850
    %v1914 = vadd.f32 %v1913, %v1851
    %v1915 = vadd.f32 %v1914, %v1852
    %v1916 = vadd.f32 %v1915, %v1853
    %v1917 = vadd.f32 %v1916, %v1854
    %v1918 = vadd.f32 %v1917, %v1855
    %v1919 = vadd.f32 %v1918, %v1856
    %v1920 = vadd.f32 %v1919, %v1857
    %v1921 = vadd.f32 %v1920, %v1858
    %v1922 = vadd.f32 %v1921, %v1859
    %v1923 = vadd.f32 %v1922, %v1860
    %v1924 = vadd.f32 %v1923, %v1861
    %v1925 = vadd.f32 %v1924, %v1862
    %v1926 = vadd.f32 %v1925, %v1863
    %v1927 = vadd.f32 %v1926, %v1864
    %v1928 = vadd.f32 %v1927, %v1865
    %v1929 = vadd.f32 %v1928, %v1866
    %v1930 = vadd.f32 %v1929, %v1867
    %v1931 = vadd.f32 %v1930, %v1868
    %v1932 = vadd.f32 %v1931, %v1869
    %v1933 = vadd.f32 %v1932, %v1870
    %v1934 = vadd.f32 %v1933, %v1871
    %v1935 = vadd.f32 %v1934, %v1872
    %v1936 = vadd.f32 %v1935, %v1873
    %v1937 = vadd.f32 %v1936, %v1874
    %v1938 = vadd.f32 %v1937, %v1875
    %v1939 = vadd.f32 %v1938, %v1876
    %v1940 = vadd.f32 %v1939, %v1877
    %v1941 = vadd.f32 %v1940, %v1878
    %v1942 = vadd.f32 %v1941, %v1879
    %v1943 = vadd.f32 %v1942, %v1880
    %v1944 = vadd.f32 %v1943, %v1881
    %v1945 = vadd.f32 %v1944, %v1882
    %v1946 = vadd.f32 %v1945, %v1883
    %v1947 = vadd.f32 %v1946, %v1884
    %v1948 = vadd.f32 %v1947, %v1885
    %v1949 = vadd.f32 %v1948, %v1886
    %v1950 = vadd.f32 %v1949, %v1887
    %v1951 = vadd.f32 %v1950, %v1888
    %v1952 = vadd.f32 %v1951, %v1889
    %v1953 = vadd.f32 %v1952, %v1890
    %v1954 = vadd.f32 %v1953, %v1891
    %v1955 = vadd.f32 %v1954, %v1892
    %v1956 = vadd.f32 %v1955, %v1893
    %v1957 = vadd.f32 %v1956, %v1894
    %v1958 = vadd.f32 %v1957, %v1895
    %v1959 = vadd.f32 %v1958, %v1896
    %v1960 = vadd.f32 %v1959, %v1897
    %v1961 = vadd.f32 %v1960, %v1898
    %v1962 = vadd.f32 %v1961, %v1899
    %v1963 = vadd.f32 %v1962, 0.0
    %v1964 = vld [vmem:[%s2] sm:$0xff]
    %v1965 = vadd.f32 %v1964, %v1579
    %1966 = vst [vmem:[%s2] sm:$0xff] %v1965
    %s1967 = scalar_lea.vmem %s2, 8
    %v1968 = vld [vmem:[%s1967] sm:$0xff]
    %v1969 = vadd.f32 %v1968, %v1707
    %1970 = vst [vmem:[%s1967] sm:$0xff] %v1969
    %s1971 = scalar_lea.vmem %s2, 16
    %v1972 = vld [vmem:[%s1971] sm:$0xff]
    %v1973 = vadd.f32 %v1972, %v1835
    %1974 = vst [vmem:[%s1971] sm:$0xff] %v1973
    %s1975 = scalar_lea.vmem %s2, 24
    %v1976 = vld [vmem:[%s1975] sm:$0xff]
    %v1977 = vadd.f32 %v1976, %v1963
    %1978 = vst [vmem:[%s1975] sm:$0xff] %v1977
  $region17: #{boundary_loss.1} parent=0 // pred_fallthru
    _
  %p1979 = scmp.eq.s32.totalorder %s95, 0
  // Predicated region
  $region18: #{boundary_loss.1} parent=0 // pred_check
    %p1980 = pneg %p1979
  $region19: #{boundary_loss.1} parent=0 // pred_check_branch
    %1982 = sbr.rel (%p1980) target = $region21
  $region20: #{boundary_loss.1} parent=0 // pred_region
    %s1983 = smul.u32 %s95, 512
    %v1984 = vld [vmem:[%s72] sm:$0xff]
    %v1985 = vld [vmem:[%s72 + $0x8] sm:$0xff]
    %v1986 = vld [vmem:[%s72 + $0x10] sm:$0xff]
    %v1987 = vld [vmem:[%s72 + $0x18] sm:$0xff]
    %v1988 = vld [vmem:[%s72 + $0x20] sm:$0xff]
    %v1989 = vld [vmem:[%s72 + $0x28] sm:$0xff]
    %v1990 = vld [vmem:[%s72 + $0x30] sm:$0xff]
    %v1991 = vld [vmem:[%s72 + $0x38] sm:$0xff]
    %v1992 = vld [vmem:[%s72 + $0x40] sm:$0xff]
    %v1993 = vld [vmem:[%s72 + $0x48] sm:$0xff]
    %v1994 = vld [vmem:[%s72 + $0x50] sm:$0xff]
    %v1995 = vld [vmem:[%s72 + $0x58] sm:$0xff]
    %v1996 = vld [vmem:[%s72 + $0x60] sm:$0xff]
    %v1997 = vld [vmem:[%s72 + $0x68] sm:$0xff]
    %v1998 = vld [vmem:[%s72 + $0x70] sm:$0xff]
    %v1999 = vld [vmem:[%s72 + $0x78] sm:$0xff]
    %v2000 = vld [vmem:[%s72 + $0x80] sm:$0xff]
    %v2001 = vld [vmem:[%s72 + $0x88] sm:$0xff]
    %v2002 = vld [vmem:[%s72 + $0x90] sm:$0xff]
    %v2003 = vld [vmem:[%s72 + $0x98] sm:$0xff]
    %v2004 = vld [vmem:[%s72 + $0xa0] sm:$0xff]
    %v2005 = vld [vmem:[%s72 + $0xa8] sm:$0xff]
    %v2006 = vld [vmem:[%s72 + $0xb0] sm:$0xff]
    %v2007 = vld [vmem:[%s72 + $0xb8] sm:$0xff]
    %v2008 = vld [vmem:[%s72 + $0xc0] sm:$0xff]
    %v2009 = vld [vmem:[%s72 + $0xc8] sm:$0xff]
    %v2010 = vld [vmem:[%s72 + $0xd0] sm:$0xff]
    %v2011 = vld [vmem:[%s72 + $0xd8] sm:$0xff]
    %v2012 = vld [vmem:[%s72 + $0xe0] sm:$0xff]
    %v2013 = vld [vmem:[%s72 + $0xe8] sm:$0xff]
    %v2014 = vld [vmem:[%s72 + $0xf0] sm:$0xff]
    %v2015 = vld [vmem:[%s72 + $0xf8] sm:$0xff]
    %v2016 = vld [vmem:[%s72 + $0x100] sm:$0xff]
    %v2017 = vld [vmem:[%s72 + $0x108] sm:$0xff]
    %v2018 = vld [vmem:[%s72 + $0x110] sm:$0xff]
    %v2019 = vld [vmem:[%s72 + $0x118] sm:$0xff]
    %v2020 = vld [vmem:[%s72 + $0x120] sm:$0xff]
    %v2021 = vld [vmem:[%s72 + $0x128] sm:$0xff]
    %v2022 = vld [vmem:[%s72 + $0x130] sm:$0xff]
    %v2023 = vld [vmem:[%s72 + $0x138] sm:$0xff]
    %v2024 = vld [vmem:[%s72 + $0x140] sm:$0xff]
    %v2025 = vld [vmem:[%s72 + $0x148] sm:$0xff]
    %v2026 = vld [vmem:[%s72 + $0x150] sm:$0xff]
    %v2027 = vld [vmem:[%s72 + $0x158] sm:$0xff]
    %v2028 = vld [vmem:[%s72 + $0x160] sm:$0xff]
    %v2029 = vld [vmem:[%s72 + $0x168] sm:$0xff]
    %v2030 = vld [vmem:[%s72 + $0x170] sm:$0xff]
    %v2031 = vld [vmem:[%s72 + $0x178] sm:$0xff]
    %v2032 = vld [vmem:[%s72 + $0x180] sm:$0xff]
    %v2033 = vld [vmem:[%s72 + $0x188] sm:$0xff]
    %v2034 = vld [vmem:[%s72 + $0x190] sm:$0xff]
    %v2035 = vld [vmem:[%s72 + $0x198] sm:$0xff]
    %v2036 = vld [vmem:[%s72 + $0x1a0] sm:$0xff]
    %v2037 = vld [vmem:[%s72 + $0x1a8] sm:$0xff]
    %v2038 = vld [vmem:[%s72 + $0x1b0] sm:$0xff]
    %v2039 = vld [vmem:[%s72 + $0x1b8] sm:$0xff]
    %v2040 = vld [vmem:[%s72 + $0x1c0] sm:$0xff]
    %v2041 = vld [vmem:[%s72 + $0x1c8] sm:$0xff]
    %v2042 = vld [vmem:[%s72 + $0x1d0] sm:$0xff]
    %v2043 = vld [vmem:[%s72 + $0x1d8] sm:$0xff]
    %v2044 = vld [vmem:[%s72 + $0x1e0] sm:$0xff]
    %v2045 = vld [vmem:[%s72 + $0x1e8] sm:$0xff]
    %v2046 = vld [vmem:[%s72 + $0x1f0] sm:$0xff]
    %v2047 = vld [vmem:[%s72 + $0x1f8] sm:$0xff]
    %v2048 = vld [vmem:[%s88] sm:$0xff]
    %v2049 = vld [vmem:[%s88 + $0x8] sm:$0xff]
    %v2050 = vld [vmem:[%s88 + $0x10] sm:$0xff]
    %v2051 = vld [vmem:[%s88 + $0x18] sm:$0xff]
    %v2052 = vld [vmem:[%s88 + $0x20] sm:$0xff]
    %v2053 = vld [vmem:[%s88 + $0x28] sm:$0xff]
    %v2054 = vld [vmem:[%s88 + $0x30] sm:$0xff]
    %v2055 = vld [vmem:[%s88 + $0x38] sm:$0xff]
    %v2056 = vld [vmem:[%s88 + $0x40] sm:$0xff]
    %v2057 = vld [vmem:[%s88 + $0x48] sm:$0xff]
    %v2058 = vld [vmem:[%s88 + $0x50] sm:$0xff]
    %v2059 = vld [vmem:[%s88 + $0x58] sm:$0xff]
    %v2060 = vld [vmem:[%s88 + $0x60] sm:$0xff]
    %v2061 = vld [vmem:[%s88 + $0x68] sm:$0xff]
    %v2062 = vld [vmem:[%s88 + $0x70] sm:$0xff]
    %v2063 = vld [vmem:[%s88 + $0x78] sm:$0xff]
    %v2064 = vld [vmem:[%s88 + $0x80] sm:$0xff]
    %v2065 = vld [vmem:[%s88 + $0x88] sm:$0xff]
    %v2066 = vld [vmem:[%s88 + $0x90] sm:$0xff]
    %v2067 = vld [vmem:[%s88 + $0x98] sm:$0xff]
    %v2068 = vld [vmem:[%s88 + $0xa0] sm:$0xff]
    %v2069 = vld [vmem:[%s88 + $0xa8] sm:$0xff]
    %v2070 = vld [vmem:[%s88 + $0xb0] sm:$0xff]
    %v2071 = vld [vmem:[%s88 + $0xb8] sm:$0xff]
    %v2072 = vld [vmem:[%s88 + $0xc0] sm:$0xff]
    %v2073 = vld [vmem:[%s88 + $0xc8] sm:$0xff]
    %v2074 = vld [vmem:[%s88 + $0xd0] sm:$0xff]
    %v2075 = vld [vmem:[%s88 + $0xd8] sm:$0xff]
    %v2076 = vld [vmem:[%s88 + $0xe0] sm:$0xff]
    %v2077 = vld [vmem:[%s88 + $0xe8] sm:$0xff]
    %v2078 = vld [vmem:[%s88 + $0xf0] sm:$0xff]
    %v2079 = vld [vmem:[%s88 + $0xf8] sm:$0xff]
    %v2080 = vld [vmem:[%s88 + $0x100] sm:$0xff]
    %v2081 = vld [vmem:[%s88 + $0x108] sm:$0xff]
    %v2082 = vld [vmem:[%s88 + $0x110] sm:$0xff]
    %v2083 = vld [vmem:[%s88 + $0x118] sm:$0xff]
    %v2084 = vld [vmem:[%s88 + $0x120] sm:$0xff]
    %v2085 = vld [vmem:[%s88 + $0x128] sm:$0xff]
    %v2086 = vld [vmem:[%s88 + $0x130] sm:$0xff]
    %v2087 = vld [vmem:[%s88 + $0x138] sm:$0xff]
    %v2088 = vld [vmem:[%s88 + $0x140] sm:$0xff]
    %v2089 = vld [vmem:[%s88 + $0x148] sm:$0xff]
    %v2090 = vld [vmem:[%s88 + $0x150] sm:$0xff]
    %v2091 = vld [vmem:[%s88 + $0x158] sm:$0xff]
    %v2092 = vld [vmem:[%s88 + $0x160] sm:$0xff]
    %v2093 = vld [vmem:[%s88 + $0x168] sm:$0xff]
    %v2094 = vld [vmem:[%s88 + $0x170] sm:$0xff]
    %v2095 = vld [vmem:[%s88 + $0x178] sm:$0xff]
    %v2096 = vld [vmem:[%s88 + $0x180] sm:$0xff]
    %v2097 = vld [vmem:[%s88 + $0x188] sm:$0xff]
    %v2098 = vld [vmem:[%s88 + $0x190] sm:$0xff]
    %v2099 = vld [vmem:[%s88 + $0x198] sm:$0xff]
    %v2100 = vld [vmem:[%s88 + $0x1a0] sm:$0xff]
    %v2101 = vld [vmem:[%s88 + $0x1a8] sm:$0xff]
    %v2102 = vld [vmem:[%s88 + $0x1b0] sm:$0xff]
    %v2103 = vld [vmem:[%s88 + $0x1b8] sm:$0xff]
    %v2104 = vld [vmem:[%s88 + $0x1c0] sm:$0xff]
    %v2105 = vld [vmem:[%s88 + $0x1c8] sm:$0xff]
    %v2106 = vld [vmem:[%s88 + $0x1d0] sm:$0xff]
    %v2107 = vld [vmem:[%s88 + $0x1d8] sm:$0xff]
    %v2108 = vld [vmem:[%s88 + $0x1e0] sm:$0xff]
    %v2109 = vld [vmem:[%s88 + $0x1e8] sm:$0xff]
    %v2110 = vld [vmem:[%s88 + $0x1f0] sm:$0xff]
    %v2111 = vld [vmem:[%s88 + $0x1f8] sm:$0xff]
    %vm2112 = vcmp.eq.f32.partialorder %v2048, 1.0
    %vm2113 = vcmp.eq.f32.partialorder %v2049, 1.0
    %vm2114 = vcmp.eq.f32.partialorder %v2050, 1.0
    %vm2115 = vcmp.eq.f32.partialorder %v2051, 1.0
    %vm2116 = vcmp.eq.f32.partialorder %v2052, 1.0
    %vm2117 = vcmp.eq.f32.partialorder %v2053, 1.0
    %vm2118 = vcmp.eq.f32.partialorder %v2054, 1.0
    %vm2119 = vcmp.eq.f32.partialorder %v2055, 1.0
    %vm2120 = vcmp.eq.f32.partialorder %v2056, 1.0
    %vm2121 = vcmp.eq.f32.partialorder %v2057, 1.0
    %vm2122 = vcmp.eq.f32.partialorder %v2058, 1.0
    %vm2123 = vcmp.eq.f32.partialorder %v2059, 1.0
    %vm2124 = vcmp.eq.f32.partialorder %v2060, 1.0
    %vm2125 = vcmp.eq.f32.partialorder %v2061, 1.0
    %vm2126 = vcmp.eq.f32.partialorder %v2062, 1.0
    %vm2127 = vcmp.eq.f32.partialorder %v2063, 1.0
    %vm2128 = vcmp.eq.f32.partialorder %v2064, 1.0
    %vm2129 = vcmp.eq.f32.partialorder %v2065, 1.0
    %vm2130 = vcmp.eq.f32.partialorder %v2066, 1.0
    %vm2131 = vcmp.eq.f32.partialorder %v2067, 1.0
    %vm2132 = vcmp.eq.f32.partialorder %v2068, 1.0
    %vm2133 = vcmp.eq.f32.partialorder %v2069, 1.0
    %vm2134 = vcmp.eq.f32.partialorder %v2070, 1.0
    %vm2135 = vcmp.eq.f32.partialorder %v2071, 1.0
    %vm2136 = vcmp.eq.f32.partialorder %v2072, 1.0
    %vm2137 = vcmp.eq.f32.partialorder %v2073, 1.0
    %vm2138 = vcmp.eq.f32.partialorder %v2074, 1.0
    %vm2139 = vcmp.eq.f32.partialorder %v2075, 1.0
    %vm2140 = vcmp.eq.f32.partialorder %v2076, 1.0
    %vm2141 = vcmp.eq.f32.partialorder %v2077, 1.0
    %vm2142 = vcmp.eq.f32.partialorder %v2078, 1.0
    %vm2143 = vcmp.eq.f32.partialorder %v2079, 1.0
    %vm2144 = vcmp.eq.f32.partialorder %v2080, 1.0
    %vm2145 = vcmp.eq.f32.partialorder %v2081, 1.0
    %vm2146 = vcmp.eq.f32.partialorder %v2082, 1.0
    %vm2147 = vcmp.eq.f32.partialorder %v2083, 1.0
    %vm2148 = vcmp.eq.f32.partialorder %v2084, 1.0
    %vm2149 = vcmp.eq.f32.partialorder %v2085, 1.0
    %vm2150 = vcmp.eq.f32.partialorder %v2086, 1.0
    %vm2151 = vcmp.eq.f32.partialorder %v2087, 1.0
    %vm2152 = vcmp.eq.f32.partialorder %v2088, 1.0
    %vm2153 = vcmp.eq.f32.partialorder %v2089, 1.0
    %vm2154 = vcmp.eq.f32.partialorder %v2090, 1.0
    %vm2155 = vcmp.eq.f32.partialorder %v2091, 1.0
    %vm2156 = vcmp.eq.f32.partialorder %v2092, 1.0
    %vm2157 = vcmp.eq.f32.partialorder %v2093, 1.0
    %vm2158 = vcmp.eq.f32.partialorder %v2094, 1.0
    %vm2159 = vcmp.eq.f32.partialorder %v2095, 1.0
    %vm2160 = vcmp.eq.f32.partialorder %v2096, 1.0
    %vm2161 = vcmp.eq.f32.partialorder %v2097, 1.0
    %vm2162 = vcmp.eq.f32.partialorder %v2098, 1.0
    %vm2163 = vcmp.eq.f32.partialorder %v2099, 1.0
    %vm2164 = vcmp.eq.f32.partialorder %v2100, 1.0
    %vm2165 = vcmp.eq.f32.partialorder %v2101, 1.0
    %vm2166 = vcmp.eq.f32.partialorder %v2102, 1.0
    %vm2167 = vcmp.eq.f32.partialorder %v2103, 1.0
    %vm2168 = vcmp.eq.f32.partialorder %v2104, 1.0
    %vm2169 = vcmp.eq.f32.partialorder %v2105, 1.0
    %vm2170 = vcmp.eq.f32.partialorder %v2106, 1.0
    %vm2171 = vcmp.eq.f32.partialorder %v2107, 1.0
    %vm2172 = vcmp.eq.f32.partialorder %v2108, 1.0
    %vm2173 = vcmp.eq.f32.partialorder %v2109, 1.0
    %vm2174 = vcmp.eq.f32.partialorder %v2110, 1.0
    %vm2175 = vcmp.eq.f32.partialorder %v2111, 1.0
    %vm2176 = vcmp.eq.f32.partialorder %v2048, 0.0
    %vm2177 = vcmp.eq.f32.partialorder %v2049, 0.0
    %vm2178 = vcmp.eq.f32.partialorder %v2050, 0.0
    %vm2179 = vcmp.eq.f32.partialorder %v2051, 0.0
    %vm2180 = vcmp.eq.f32.partialorder %v2052, 0.0
    %vm2181 = vcmp.eq.f32.partialorder %v2053, 0.0
    %vm2182 = vcmp.eq.f32.partialorder %v2054, 0.0
    %vm2183 = vcmp.eq.f32.partialorder %v2055, 0.0
    %vm2184 = vcmp.eq.f32.partialorder %v2056, 0.0
    %vm2185 = vcmp.eq.f32.partialorder %v2057, 0.0
    %vm2186 = vcmp.eq.f32.partialorder %v2058, 0.0
    %vm2187 = vcmp.eq.f32.partialorder %v2059, 0.0
    %vm2188 = vcmp.eq.f32.partialorder %v2060, 0.0
    %vm2189 = vcmp.eq.f32.partialorder %v2061, 0.0
    %vm2190 = vcmp.eq.f32.partialorder %v2062, 0.0
    %vm2191 = vcmp.eq.f32.partialorder %v2063, 0.0
    %vm2192 = vcmp.eq.f32.partialorder %v2064, 0.0
    %vm2193 = vcmp.eq.f32.partialorder %v2065, 0.0
    %vm2194 = vcmp.eq.f32.partialorder %v2066, 0.0
    %vm2195 = vcmp.eq.f32.partialorder %v2067, 0.0
    %vm2196 = vcmp.eq.f32.partialorder %v2068, 0.0
    %vm2197 = vcmp.eq.f32.partialorder %v2069, 0.0
    %vm2198 = vcmp.eq.f32.partialorder %v2070, 0.0
    %vm2199 = vcmp.eq.f32.partialorder %v2071, 0.0
    %vm2200 = vcmp.eq.f32.partialorder %v2072, 0.0
    %vm2201 = vcmp.eq.f32.partialorder %v2073, 0.0
    %vm2202 = vcmp.eq.f32.partialorder %v2074, 0.0
    %vm2203 = vcmp.eq.f32.partialorder %v2075, 0.0
    %vm2204 = vcmp.eq.f32.partialorder %v2076, 0.0
    %vm2205 = vcmp.eq.f32.partialorder %v2077, 0.0
    %vm2206 = vcmp.eq.f32.partialorder %v2078, 0.0
    %vm2207 = vcmp.eq.f32.partialorder %v2079, 0.0
    %vm2208 = vcmp.eq.f32.partialorder %v2080, 0.0
    %vm2209 = vcmp.eq.f32.partialorder %v2081, 0.0
    %vm2210 = vcmp.eq.f32.partialorder %v2082, 0.0
    %vm2211 = vcmp.eq.f32.partialorder %v2083, 0.0
    %vm2212 = vcmp.eq.f32.partialorder %v2084, 0.0
    %vm2213 = vcmp.eq.f32.partialorder %v2085, 0.0
    %vm2214 = vcmp.eq.f32.partialorder %v2086, 0.0
    %vm2215 = vcmp.eq.f32.partialorder %v2087, 0.0
    %vm2216 = vcmp.eq.f32.partialorder %v2088, 0.0
    %vm2217 = vcmp.eq.f32.partialorder %v2089, 0.0
    %vm2218 = vcmp.eq.f32.partialorder %v2090, 0.0
    %vm2219 = vcmp.eq.f32.partialorder %v2091, 0.0
    %vm2220 = vcmp.eq.f32.partialorder %v2092, 0.0
    %vm2221 = vcmp.eq.f32.partialorder %v2093, 0.0
    %vm2222 = vcmp.eq.f32.partialorder %v2094, 0.0
    %vm2223 = vcmp.eq.f32.partialorder %v2095, 0.0
    %vm2224 = vcmp.eq.f32.partialorder %v2096, 0.0
    %vm2225 = vcmp.eq.f32.partialorder %v2097, 0.0
    %vm2226 = vcmp.eq.f32.partialorder %v2098, 0.0
    %vm2227 = vcmp.eq.f32.partialorder %v2099, 0.0
    %vm2228 = vcmp.eq.f32.partialorder %v2100, 0.0
    %vm2229 = vcmp.eq.f32.partialorder %v2101, 0.0
    %vm2230 = vcmp.eq.f32.partialorder %v2102, 0.0
    %vm2231 = vcmp.eq.f32.partialorder %v2103, 0.0
    %vm2232 = vcmp.eq.f32.partialorder %v2104, 0.0
    %vm2233 = vcmp.eq.f32.partialorder %v2105, 0.0
    %vm2234 = vcmp.eq.f32.partialorder %v2106, 0.0
    %vm2235 = vcmp.eq.f32.partialorder %v2107, 0.0
    %vm2236 = vcmp.eq.f32.partialorder %v2108, 0.0
    %vm2237 = vcmp.eq.f32.partialorder %v2109, 0.0
    %vm2238 = vcmp.eq.f32.partialorder %v2110, 0.0
    %vm2239 = vcmp.eq.f32.partialorder %v2111, 0.0
    %v2240 = vlaneseq
    %v2241 = vshrl.u32 %v2240, 7
    %v2242 = vadd.s32 %v2241, 8
    %v2243 = vadd.s32 %v2241, 16
    %v2244 = vadd.s32 %v2241, 24
    %v2245 = vadd.s32 %v2241, 32
    %v2246 = vadd.s32 %v2241, 40
    %v2247 = vadd.s32 %v2241, 48
    %v2248 = vadd.s32 %v2241, 56
    %v2249 = vadd.s32 %v2241, 64
    %v2250 = vadd.s32 %v2241, 72
    %v2251 = vadd.s32 %v2241, 80
    %v2252 = vadd.s32 %v2241, 88
    %v2253 = vadd.s32 %v2241, 96
    %v2254 = vadd.s32 %v2241, 104
    %v2255 = vadd.s32 %v2241, 112
    %v2256 = vadd.s32 %v2241, 120
    %v2257 = vadd.s32 %v2241, 128
    %v2258 = vadd.s32 %v2241, 136
    %v2259 = vadd.s32 %v2241, 144
    %v2260 = vadd.s32 %v2241, 152
    %v2261 = vadd.s32 %v2241, 160
    %v2262 = vadd.s32 %v2241, 168
    %v2263 = vadd.s32 %v2241, 176
    %v2264 = vadd.s32 %v2241, 184
    %v2265 = vadd.s32 %v2241, 192
    %v2266 = vadd.s32 %v2241, 200
    %v2267 = vadd.s32 %v2241, 208
    %v2268 = vadd.s32 %v2241, 216
    %v2269 = vadd.s32 %v2241, 224
    %v2270 = vadd.s32 %v2241, 232
    %v2271 = vadd.s32 %v2241, 240
    %v2272 = vadd.s32 %v2241, 248
    %v2273 = vadd.s32 %v2241, 256
    %v2274 = vadd.s32 %v2241, 264
    %v2275 = vadd.s32 %v2241, 272
    %v2276 = vadd.s32 %v2241, 280
    %v2277 = vadd.s32 %v2241, 288
    %v2278 = vadd.s32 %v2241, 296
    %v2279 = vadd.s32 %v2241, 304
    %v2280 = vadd.s32 %v2241, 312
    %v2281 = vadd.s32 %v2241, 320
    %v2282 = vadd.s32 %v2241, 328
    %v2283 = vadd.s32 %v2241, 336
    %v2284 = vadd.s32 %v2241, 344
    %v2285 = vadd.s32 %v2241, 352
    %v2286 = vadd.s32 %v2241, 360
    %v2287 = vadd.s32 %v2241, 368
    %v2288 = vadd.s32 %v2241, 376
    %v2289 = vadd.s32 %v2241, 384
    %v2290 = vadd.s32 %v2241, 392
    %v2291 = vadd.s32 %v2241, 400
    %v2292 = vadd.s32 %v2241, 408
    %v2293 = vadd.s32 %v2241, 416
    %v2294 = vadd.s32 %v2241, 424
    %v2295 = vadd.s32 %v2241, 432
    %v2296 = vadd.s32 %v2241, 440
    %v2297 = vadd.s32 %v2241, 448
    %v2298 = vadd.s32 %v2241, 456
    %v2299 = vadd.s32 %v2241, 464
    %v2300 = vadd.s32 %v2241, 472
    %v2301 = vadd.s32 %v2241, 480
    %v2302 = vadd.s32 %v2241, 488
    %v2303 = vadd.s32 %v2241, 496
    %v2304 = vadd.s32 %v2241, 504
    %s2305 = sadd.s32 %s1983, 0
    %v2306 = vstv %s2305
    %v2307 = vadd.s32 %v2241, %v2306
    %v2308 = vadd.s32 %v2242, %v2306
    %v2309 = vadd.s32 %v2243, %v2306
    %v2310 = vadd.s32 %v2244, %v2306
    %v2311 = vadd.s32 %v2245, %v2306
    %v2312 = vadd.s32 %v2246, %v2306
    %v2313 = vadd.s32 %v2247, %v2306
    %v2314 = vadd.s32 %v2248, %v2306
    %v2315 = vadd.s32 %v2249, %v2306
    %v2316 = vadd.s32 %v2250, %v2306
    %v2317 = vadd.s32 %v2251, %v2306
    %v2318 = vadd.s32 %v2252, %v2306
    %v2319 = vadd.s32 %v2253, %v2306
    %v2320 = vadd.s32 %v2254, %v2306
    %v2321 = vadd.s32 %v2255, %v2306
    %v2322 = vadd.s32 %v2256, %v2306
    %v2323 = vadd.s32 %v2257, %v2306
    %v2324 = vadd.s32 %v2258, %v2306
    %v2325 = vadd.s32 %v2259, %v2306
    %v2326 = vadd.s32 %v2260, %v2306
    %v2327 = vadd.s32 %v2261, %v2306
    %v2328 = vadd.s32 %v2262, %v2306
    %v2329 = vadd.s32 %v2263, %v2306
    %v2330 = vadd.s32 %v2264, %v2306
    %v2331 = vadd.s32 %v2265, %v2306
    %v2332 = vadd.s32 %v2266, %v2306
    %v2333 = vadd.s32 %v2267, %v2306
    %v2334 = vadd.s32 %v2268, %v2306
    %v2335 = vadd.s32 %v2269, %v2306
    %v2336 = vadd.s32 %v2270, %v2306
    %v2337 = vadd.s32 %v2271, %v2306
    %v2338 = vadd.s32 %v2272, %v2306
    %v2339 = vadd.s32 %v2273, %v2306
    %v2340 = vadd.s32 %v2274, %v2306
    %v2341 = vadd.s32 %v2275, %v2306
    %v2342 = vadd.s32 %v2276, %v2306
    %v2343 = vadd.s32 %v2277, %v2306
    %v2344 = vadd.s32 %v2278, %v2306
    %v2345 = vadd.s32 %v2279, %v2306
    %v2346 = vadd.s32 %v2280, %v2306
    %v2347 = vadd.s32 %v2281, %v2306
    %v2348 = vadd.s32 %v2282, %v2306
    %v2349 = vadd.s32 %v2283, %v2306
    %v2350 = vadd.s32 %v2284, %v2306
    %v2351 = vadd.s32 %v2285, %v2306
    %v2352 = vadd.s32 %v2286, %v2306
    %v2353 = vadd.s32 %v2287, %v2306
    %v2354 = vadd.s32 %v2288, %v2306
    %v2355 = vadd.s32 %v2289, %v2306
    %v2356 = vadd.s32 %v2290, %v2306
    %v2357 = vadd.s32 %v2291, %v2306
    %v2358 = vadd.s32 %v2292, %v2306
    %v2359 = vadd.s32 %v2293, %v2306
    %v2360 = vadd.s32 %v2294, %v2306
    %v2361 = vadd.s32 %v2295, %v2306
    %v2362 = vadd.s32 %v2296, %v2306
    %v2363 = vadd.s32 %v2297, %v2306
    %v2364 = vadd.s32 %v2298, %v2306
    %v2365 = vadd.s32 %v2299, %v2306
    %v2366 = vadd.s32 %v2300, %v2306
    %v2367 = vadd.s32 %v2301, %v2306
    %v2368 = vadd.s32 %v2302, %v2306
    %v2369 = vadd.s32 %v2303, %v2306
    %v2370 = vadd.s32 %v2304, %v2306
    %vm2371 = vcmp.lt.s32.totalorder %v2307, 4
    %vm2372 = vcmp.lt.s32.totalorder %v2308, 4
    %vm2373 = vcmp.lt.s32.totalorder %v2309, 4
    %vm2374 = vcmp.lt.s32.totalorder %v2310, 4
    %vm2375 = vcmp.lt.s32.totalorder %v2311, 4
    %vm2376 = vcmp.lt.s32.totalorder %v2312, 4
    %vm2377 = vcmp.lt.s32.totalorder %v2313, 4
    %vm2378 = vcmp.lt.s32.totalorder %v2314, 4
    %vm2379 = vcmp.lt.s32.totalorder %v2315, 4
    %vm2380 = vcmp.lt.s32.totalorder %v2316, 4
    %vm2381 = vcmp.lt.s32.totalorder %v2317, 4
    %vm2382 = vcmp.lt.s32.totalorder %v2318, 4
    %vm2383 = vcmp.lt.s32.totalorder %v2319, 4
    %vm2384 = vcmp.lt.s32.totalorder %v2320, 4
    %vm2385 = vcmp.lt.s32.totalorder %v2321, 4
    %vm2386 = vcmp.lt.s32.totalorder %v2322, 4
    %vm2387 = vcmp.lt.s32.totalorder %v2323, 4
    %vm2388 = vcmp.lt.s32.totalorder %v2324, 4
    %vm2389 = vcmp.lt.s32.totalorder %v2325, 4
    %vm2390 = vcmp.lt.s32.totalorder %v2326, 4
    %vm2391 = vcmp.lt.s32.totalorder %v2327, 4
    %vm2392 = vcmp.lt.s32.totalorder %v2328, 4
    %vm2393 = vcmp.lt.s32.totalorder %v2329, 4
    %vm2394 = vcmp.lt.s32.totalorder %v2330, 4
    %vm2395 = vcmp.lt.s32.totalorder %v2331, 4
    %vm2396 = vcmp.lt.s32.totalorder %v2332, 4
    %vm2397 = vcmp.lt.s32.totalorder %v2333, 4
    %vm2398 = vcmp.lt.s32.totalorder %v2334, 4
    %vm2399 = vcmp.lt.s32.totalorder %v2335, 4
    %vm2400 = vcmp.lt.s32.totalorder %v2336, 4
    %vm2401 = vcmp.lt.s32.totalorder %v2337, 4
    %vm2402 = vcmp.lt.s32.totalorder %v2338, 4
    %vm2403 = vcmp.lt.s32.totalorder %v2339, 4
    %vm2404 = vcmp.lt.s32.totalorder %v2340, 4
    %vm2405 = vcmp.lt.s32.totalorder %v2341, 4
    %vm2406 = vcmp.lt.s32.totalorder %v2342, 4
    %vm2407 = vcmp.lt.s32.totalorder %v2343, 4
    %vm2408 = vcmp.lt.s32.totalorder %v2344, 4
    %vm2409 = vcmp.lt.s32.totalorder %v2345, 4
    %vm2410 = vcmp.lt.s32.totalorder %v2346, 4
    %vm2411 = vcmp.lt.s32.totalorder %v2347, 4
    %vm2412 = vcmp.lt.s32.totalorder %v2348, 4
    %vm2413 = vcmp.lt.s32.totalorder %v2349, 4
    %vm2414 = vcmp.lt.s32.totalorder %v2350, 4
    %vm2415 = vcmp.lt.s32.totalorder %v2351, 4
    %vm2416 = vcmp.lt.s32.totalorder %v2352, 4
    %vm2417 = vcmp.lt.s32.totalorder %v2353, 4
    %vm2418 = vcmp.lt.s32.totalorder %v2354, 4
    %vm2419 = vcmp.lt.s32.totalorder %v2355, 4
    %vm2420 = vcmp.lt.s32.totalorder %v2356, 4
    %vm2421 = vcmp.lt.s32.totalorder %v2357, 4
    %vm2422 = vcmp.lt.s32.totalorder %v2358, 4
    %vm2423 = vcmp.lt.s32.totalorder %v2359, 4
    %vm2424 = vcmp.lt.s32.totalorder %v2360, 4
    %vm2425 = vcmp.lt.s32.totalorder %v2361, 4
    %vm2426 = vcmp.lt.s32.totalorder %v2362, 4
    %vm2427 = vcmp.lt.s32.totalorder %v2363, 4
    %vm2428 = vcmp.lt.s32.totalorder %v2364, 4
    %vm2429 = vcmp.lt.s32.totalorder %v2365, 4
    %vm2430 = vcmp.lt.s32.totalorder %v2366, 4
    %vm2431 = vcmp.lt.s32.totalorder %v2367, 4
    %vm2432 = vcmp.lt.s32.totalorder %v2368, 4
    %vm2433 = vcmp.lt.s32.totalorder %v2369, 4
    %vm2434 = vcmp.lt.s32.totalorder %v2370, 4
    %vm2435 = vmand %vm2112, %vm2371
    %vm2436 = vmand %vm2113, %vm2372
    %vm2437 = vmand %vm2114, %vm2373
    %vm2438 = vmand %vm2115, %vm2374
    %vm2439 = vmand %vm2116, %vm2375
    %vm2440 = vmand %vm2117, %vm2376
    %vm2441 = vmand %vm2118, %vm2377
    %vm2442 = vmand %vm2119, %vm2378
    %vm2443 = vmand %vm2120, %vm2379
    %vm2444 = vmand %vm2121, %vm2380
    %vm2445 = vmand %vm2122, %vm2381
    %vm2446 = vmand %vm2123, %vm2382
    %vm2447 = vmand %vm2124, %vm2383
    %vm2448 = vmand %vm2125, %vm2384
    %vm2449 = vmand %vm2126, %vm2385
    %vm2450 = vmand %vm2127, %vm2386
    %vm2451 = vmand %vm2128, %vm2387
    %vm2452 = vmand %vm2129, %vm2388
    %vm2453 = vmand %vm2130, %vm2389
    %vm2454 = vmand %vm2131, %vm2390
    %vm2455 = vmand %vm2132, %vm2391
    %vm2456 = vmand %vm2133, %vm2392
    %vm2457 = vmand %vm2134, %vm2393
    %vm2458 = vmand %vm2135, %vm2394
    %vm2459 = vmand %vm2136, %vm2395
    %vm2460 = vmand %vm2137, %vm2396
    %vm2461 = vmand %vm2138, %vm2397
    %vm2462 = vmand %vm2139, %vm2398
    %vm2463 = vmand %vm2140, %vm2399
    %vm2464 = vmand %vm2141, %vm2400
    %vm2465 = vmand %vm2142, %vm2401
    %vm2466 = vmand %vm2143, %vm2402
    %vm2467 = vmand %vm2144, %vm2403
    %vm2468 = vmand %vm2145, %vm2404
    %vm2469 = vmand %vm2146, %vm2405
    %vm2470 = vmand %vm2147, %vm2406
    %vm2471 = vmand %vm2148, %vm2407
    %vm2472 = vmand %vm2149, %vm2408
    %vm2473 = vmand %vm2150, %vm2409
    %vm2474 = vmand %vm2151, %vm2410
    %vm2475 = vmand %vm2152, %vm2411
    %vm2476 = vmand %vm2153, %vm2412
    %vm2477 = vmand %vm2154, %vm2413
    %vm2478 = vmand %vm2155, %vm2414
    %vm2479 = vmand %vm2156, %vm2415
    %vm2480 = vmand %vm2157, %vm2416
    %vm2481 = vmand %vm2158, %vm2417
    %vm2482 = vmand %vm2159, %vm2418
    %vm2483 = vmand %vm2160, %vm2419
    %vm2484 = vmand %vm2161, %vm2420
    %vm2485 = vmand %vm2162, %vm2421
    %vm2486 = vmand %vm2163, %vm2422
    %vm2487 = vmand %vm2164, %vm2423
    %vm2488 = vmand %vm2165, %vm2424
    %vm2489 = vmand %vm2166, %vm2425
    %vm2490 = vmand %vm2167, %vm2426
    %vm2491 = vmand %vm2168, %vm2427
    %vm2492 = vmand %vm2169, %vm2428
    %vm2493 = vmand %vm2170, %vm2429
    %vm2494 = vmand %vm2171, %vm2430
    %vm2495 = vmand %vm2172, %vm2431
    %vm2496 = vmand %vm2173, %vm2432
    %vm2497 = vmand %vm2174, %vm2433
    %vm2498 = vmand %vm2175, %vm2434
    %vm2499 = vmand %vm2176, %vm2371
    %vm2500 = vmand %vm2177, %vm2372
    %vm2501 = vmand %vm2178, %vm2373
    %vm2502 = vmand %vm2179, %vm2374
    %vm2503 = vmand %vm2180, %vm2375
    %vm2504 = vmand %vm2181, %vm2376
    %vm2505 = vmand %vm2182, %vm2377
    %vm2506 = vmand %vm2183, %vm2378
    %vm2507 = vmand %vm2184, %vm2379
    %vm2508 = vmand %vm2185, %vm2380
    %vm2509 = vmand %vm2186, %vm2381
    %vm2510 = vmand %vm2187, %vm2382
    %vm2511 = vmand %vm2188, %vm2383
    %vm2512 = vmand %vm2189, %vm2384
    %vm2513 = vmand %vm2190, %vm2385
    %vm2514 = vmand %vm2191, %vm2386
    %vm2515 = vmand %vm2192, %vm2387
    %vm2516 = vmand %vm2193, %vm2388
    %vm2517 = vmand %vm2194, %vm2389
    %vm2518 = vmand %vm2195, %vm2390
    %vm2519 = vmand %vm2196, %vm2391
    %vm2520 = vmand %vm2197, %vm2392
    %vm2521 = vmand %vm2198, %vm2393
    %vm2522 = vmand %vm2199, %vm2394
    %vm2523 = vmand %vm2200, %vm2395
    %vm2524 = vmand %vm2201, %vm2396
    %vm2525 = vmand %vm2202, %vm2397
    %vm2526 = vmand %vm2203, %vm2398
    %vm2527 = vmand %vm2204, %vm2399
    %vm2528 = vmand %vm2205, %vm2400
    %vm2529 = vmand %vm2206, %vm2401
    %vm2530 = vmand %vm2207, %vm2402
    %vm2531 = vmand %vm2208, %vm2403
    %vm2532 = vmand %vm2209, %vm2404
    %vm2533 = vmand %vm2210, %vm2405
    %vm2534 = vmand %vm2211, %vm2406
    %vm2535 = vmand %vm2212, %vm2407
    %vm2536 = vmand %vm2213, %vm2408
    %vm2537 = vmand %vm2214, %vm2409
    %vm2538 = vmand %vm2215, %vm2410
    %vm2539 = vmand %vm2216, %vm2411
    %vm2540 = vmand %vm2217, %vm2412
    %vm2541 = vmand %vm2218, %vm2413
    %vm2542 = vmand %vm2219, %vm2414
    %vm2543 = vmand %vm2220, %vm2415
    %vm2544 = vmand %vm2221, %vm2416
    %vm2545 = vmand %vm2222, %vm2417
    %vm2546 = vmand %vm2223, %vm2418
    %vm2547 = vmand %vm2224, %vm2419
    %vm2548 = vmand %vm2225, %vm2420
    %vm2549 = vmand %vm2226, %vm2421
    %vm2550 = vmand %vm2227, %vm2422
    %vm2551 = vmand %vm2228, %vm2423
    %vm2552 = vmand %vm2229, %vm2424
    %vm2553 = vmand %vm2230, %vm2425
    %vm2554 = vmand %vm2231, %vm2426
    %vm2555 = vmand %vm2232, %vm2427
    %vm2556 = vmand %vm2233, %vm2428
    %vm2557 = vmand %vm2234, %vm2429
    %vm2558 = vmand %vm2235, %vm2430
    %vm2559 = vmand %vm2236, %vm2431
    %vm2560 = vmand %vm2237, %vm2432
    %vm2561 = vmand %vm2238, %vm2433
    %vm2562 = vmand %vm2239, %vm2434
    %v2563 = vmax.f32 %v1984, 0.0
    %v2564 = vmax.f32 %v1985, 0.0
    %v2565 = vmax.f32 %v1986, 0.0
    %v2566 = vmax.f32 %v1987, 0.0
    %v2567 = vmax.f32 %v1988, 0.0
    %v2568 = vmax.f32 %v1989, 0.0
    %v2569 = vmax.f32 %v1990, 0.0
    %v2570 = vmax.f32 %v1991, 0.0
    %v2571 = vmax.f32 %v1992, 0.0
    %v2572 = vmax.f32 %v1993, 0.0
    %v2573 = vmax.f32 %v1994, 0.0
    %v2574 = vmax.f32 %v1995, 0.0
    %v2575 = vmax.f32 %v1996, 0.0
    %v2576 = vmax.f32 %v1997, 0.0
    %v2577 = vmax.f32 %v1998, 0.0
    %v2578 = vmax.f32 %v1999, 0.0
    %v2579 = vmax.f32 %v2000, 0.0
    %v2580 = vmax.f32 %v2001, 0.0
    %v2581 = vmax.f32 %v2002, 0.0
    %v2582 = vmax.f32 %v2003, 0.0
    %v2583 = vmax.f32 %v2004, 0.0
    %v2584 = vmax.f32 %v2005, 0.0
    %v2585 = vmax.f32 %v2006, 0.0
    %v2586 = vmax.f32 %v2007, 0.0
    %v2587 = vmax.f32 %v2008, 0.0
    %v2588 = vmax.f32 %v2009, 0.0
    %v2589 = vmax.f32 %v2010, 0.0
    %v2590 = vmax.f32 %v2011, 0.0
    %v2591 = vmax.f32 %v2012, 0.0
    %v2592 = vmax.f32 %v2013, 0.0
    %v2593 = vmax.f32 %v2014, 0.0
    %v2594 = vmax.f32 %v2015, 0.0
    %v2595 = vmax.f32 %v2016, 0.0
    %v2596 = vmax.f32 %v2017, 0.0
    %v2597 = vmax.f32 %v2018, 0.0
    %v2598 = vmax.f32 %v2019, 0.0
    %v2599 = vmax.f32 %v2020, 0.0
    %v2600 = vmax.f32 %v2021, 0.0
    %v2601 = vmax.f32 %v2022, 0.0
    %v2602 = vmax.f32 %v2023, 0.0
    %v2603 = vmax.f32 %v2024, 0.0
    %v2604 = vmax.f32 %v2025, 0.0
    %v2605 = vmax.f32 %v2026, 0.0
    %v2606 = vmax.f32 %v2027, 0.0
    %v2607 = vmax.f32 %v2028, 0.0
    %v2608 = vmax.f32 %v2029, 0.0
    %v2609 = vmax.f32 %v2030, 0.0
    %v2610 = vmax.f32 %v2031, 0.0
    %v2611 = vmax.f32 %v2032, 0.0
    %v2612 = vmax.f32 %v2033, 0.0
    %v2613 = vmax.f32 %v2034, 0.0
    %v2614 = vmax.f32 %v2035, 0.0
    %v2615 = vmax.f32 %v2036, 0.0
    %v2616 = vmax.f32 %v2037, 0.0
    %v2617 = vmax.f32 %v2038, 0.0
    %v2618 = vmax.f32 %v2039, 0.0
    %v2619 = vmax.f32 %v2040, 0.0
    %v2620 = vmax.f32 %v2041, 0.0
    %v2621 = vmax.f32 %v2042, 0.0
    %v2622 = vmax.f32 %v2043, 0.0
    %v2623 = vmax.f32 %v2044, 0.0
    %v2624 = vmax.f32 %v2045, 0.0
    %v2625 = vmax.f32 %v2046, 0.0
    %v2626 = vmax.f32 %v2047, 0.0
    %v2627 = vsel %vm2435, %v1984, 0.0
    %v2628 = vsel %vm2436, %v1985, 0.0
    %v2629 = vsel %vm2437, %v1986, 0.0
    %v2630 = vsel %vm2438, %v1987, 0.0
    %v2631 = vsel %vm2439, %v1988, 0.0
    %v2632 = vsel %vm2440, %v1989, 0.0
    %v2633 = vsel %vm2441, %v1990, 0.0
    %v2634 = vsel %vm2442, %v1991, 0.0
    %v2635 = vsel %vm2443, %v1992, 0.0
    %v2636 = vsel %vm2444, %v1993, 0.0
    %v2637 = vsel %vm2445, %v1994, 0.0
    %v2638 = vsel %vm2446, %v1995, 0.0
    %v2639 = vsel %vm2447, %v1996, 0.0
    %v2640 = vsel %vm2448, %v1997, 0.0
    %v2641 = vsel %vm2449, %v1998, 0.0
    %v2642 = vsel %vm2450, %v1999, 0.0
    %v2643 = vsel %vm2451, %v2000, 0.0
    %v2644 = vsel %vm2452, %v2001, 0.0
    %v2645 = vsel %vm2453, %v2002, 0.0
    %v2646 = vsel %vm2454, %v2003, 0.0
    %v2647 = vsel %vm2455, %v2004, 0.0
    %v2648 = vsel %vm2456, %v2005, 0.0
    %v2649 = vsel %vm2457, %v2006, 0.0
    %v2650 = vsel %vm2458, %v2007, 0.0
    %v2651 = vsel %vm2459, %v2008, 0.0
    %v2652 = vsel %vm2460, %v2009, 0.0
    %v2653 = vsel %vm2461, %v2010, 0.0
    %v2654 = vsel %vm2462, %v2011, 0.0
    %v2655 = vsel %vm2463, %v2012, 0.0
    %v2656 = vsel %vm2464, %v2013, 0.0
    %v2657 = vsel %vm2465, %v2014, 0.0
    %v2658 = vsel %vm2466, %v2015, 0.0
    %v2659 = vsel %vm2467, %v2016, 0.0
    %v2660 = vsel %vm2468, %v2017, 0.0
    %v2661 = vsel %vm2469, %v2018, 0.0
    %v2662 = vsel %vm2470, %v2019, 0.0
    %v2663 = vsel %vm2471, %v2020, 0.0
    %v2664 = vsel %vm2472, %v2021, 0.0
    %v2665 = vsel %vm2473, %v2022, 0.0
    %v2666 = vsel %vm2474, %v2023, 0.0
    %v2667 = vsel %vm2475, %v2024, 0.0
    %v2668 = vsel %vm2476, %v2025, 0.0
    %v2669 = vsel %vm2477, %v2026, 0.0
    %v2670 = vsel %vm2478, %v2027, 0.0
    %v2671 = vsel %vm2479, %v2028, 0.0
    %v2672 = vsel %vm2480, %v2029, 0.0
    %v2673 = vsel %vm2481, %v2030, 0.0
    %v2674 = vsel %vm2482, %v2031, 0.0
    %v2675 = vsel %vm2483, %v2032, 0.0
    %v2676 = vsel %vm2484, %v2033, 0.0
    %v2677 = vsel %vm2485, %v2034, 0.0
    %v2678 = vsel %vm2486, %v2035, 0.0
    %v2679 = vsel %vm2487, %v2036, 0.0
    %v2680 = vsel %vm2488, %v2037, 0.0
    %v2681 = vsel %vm2489, %v2038, 0.0
    %v2682 = vsel %vm2490, %v2039, 0.0
    %v2683 = vsel %vm2491, %v2040, 0.0
    %v2684 = vsel %vm2492, %v2041, 0.0
    %v2685 = vsel %vm2493, %v2042, 0.0
    %v2686 = vsel %vm2494, %v2043, 0.0
    %v2687 = vsel %vm2495, %v2044, 0.0
    %v2688 = vsel %vm2496, %v2045, 0.0
    %v2689 = vsel %vm2497, %v2046, 0.0
    %v2690 = vsel %vm2498, %v2047, 0.0
    %v2691 = vsub.f32 %v2563, %v2627
    %v2692 = vsub.f32 %v2564, %v2628
    %v2693 = vsub.f32 %v2565, %v2629
    %v2694 = vsub.f32 %v2566, %v2630
    %v2695 = vsub.f32 %v2567, %v2631
    %v2696 = vsub.f32 %v2568, %v2632
    %v2697 = vsub.f32 %v2569, %v2633
    %v2698 = vsub.f32 %v2570, %v2634
    %v2699 = vsub.f32 %v2571, %v2635
    %v2700 = vsub.f32 %v2572, %v2636
    %v2701 = vsub.f32 %v2573, %v2637
    %v2702 = vsub.f32 %v2574, %v2638
    %v2703 = vsub.f32 %v2575, %v2639
    %v2704 = vsub.f32 %v2576, %v2640
    %v2705 = vsub.f32 %v2577, %v2641
    %v2706 = vsub.f32 %v2578, %v2642
    %v2707 = vsub.f32 %v2579, %v2643
    %v2708 = vsub.f32 %v2580, %v2644
    %v2709 = vsub.f32 %v2581, %v2645
    %v2710 = vsub.f32 %v2582, %v2646
    %v2711 = vsub.f32 %v2583, %v2647
    %v2712 = vsub.f32 %v2584, %v2648
    %v2713 = vsub.f32 %v2585, %v2649
    %v2714 = vsub.f32 %v2586, %v2650
    %v2715 = vsub.f32 %v2587, %v2651
    %v2716 = vsub.f32 %v2588, %v2652
    %v2717 = vsub.f32 %v2589, %v2653
    %v2718 = vsub.f32 %v2590, %v2654
    %v2719 = vsub.f32 %v2591, %v2655
    %v2720 = vsub.f32 %v2592, %v2656
    %v2721 = vsub.f32 %v2593, %v2657
    %v2722 = vsub.f32 %v2594, %v2658
    %v2723 = vsub.f32 %v2595, %v2659
    %v2724 = vsub.f32 %v2596, %v2660
    %v2725 = vsub.f32 %v2597, %v2661
    %v2726 = vsub.f32 %v2598, %v2662
    %v2727 = vsub.f32 %v2599, %v2663
    %v2728 = vsub.f32 %v2600, %v2664
    %v2729 = vsub.f32 %v2601, %v2665
    %v2730 = vsub.f32 %v2602, %v2666
    %v2731 = vsub.f32 %v2603, %v2667
    %v2732 = vsub.f32 %v2604, %v2668
    %v2733 = vsub.f32 %v2605, %v2669
    %v2734 = vsub.f32 %v2606, %v2670
    %v2735 = vsub.f32 %v2607, %v2671
    %v2736 = vsub.f32 %v2608, %v2672
    %v2737 = vsub.f32 %v2609, %v2673
    %v2738 = vsub.f32 %v2610, %v2674
    %v2739 = vsub.f32 %v2611, %v2675
    %v2740 = vsub.f32 %v2612, %v2676
    %v2741 = vsub.f32 %v2613, %v2677
    %v2742 = vsub.f32 %v2614, %v2678
    %v2743 = vsub.f32 %v2615, %v2679
    %v2744 = vsub.f32 %v2616, %v2680
    %v2745 = vsub.f32 %v2617, %v2681
    %v2746 = vsub.f32 %v2618, %v2682
    %v2747 = vsub.f32 %v2619, %v2683
    %v2748 = vsub.f32 %v2620, %v2684
    %v2749 = vsub.f32 %v2621, %v2685
    %v2750 = vsub.f32 %v2622, %v2686
    %v2751 = vsub.f32 %v2623, %v2687
    %v2752 = vsub.f32 %v2624, %v2688
    %v2753 = vsub.f32 %v2625, %v2689
    %v2754 = vsub.f32 %v2626, %v2690
    %v2755 = vand.u32 2147483647, %v1984
    %v2756 = vand.u32 2147483647, %v1985
    %v2757 = vand.u32 2147483647, %v1986
    %v2758 = vand.u32 2147483647, %v1987
    %v2759 = vand.u32 2147483647, %v1988
    %v2760 = vand.u32 2147483647, %v1989
    %v2761 = vand.u32 2147483647, %v1990
    %v2762 = vand.u32 2147483647, %v1991
    %v2763 = vand.u32 2147483647, %v1992
    %v2764 = vand.u32 2147483647, %v1993
    %v2765 = vand.u32 2147483647, %v1994
    %v2766 = vand.u32 2147483647, %v1995
    %v2767 = vand.u32 2147483647, %v1996
    %v2768 = vand.u32 2147483647, %v1997
    %v2769 = vand.u32 2147483647, %v1998
    %v2770 = vand.u32 2147483647, %v1999
    %v2771 = vand.u32 2147483647, %v2000
    %v2772 = vand.u32 2147483647, %v2001
    %v2773 = vand.u32 2147483647, %v2002
    %v2774 = vand.u32 2147483647, %v2003
    %v2775 = vand.u32 2147483647, %v2004
    %v2776 = vand.u32 2147483647, %v2005
    %v2777 = vand.u32 2147483647, %v2006
    %v2778 = vand.u32 2147483647, %v2007
    %v2779 = vand.u32 2147483647, %v2008
    %v2780 = vand.u32 2147483647, %v2009
    %v2781 = vand.u32 2147483647, %v2010
    %v2782 = vand.u32 2147483647, %v2011
    %v2783 = vand.u32 2147483647, %v2012
    %v2784 = vand.u32 2147483647, %v2013
    %v2785 = vand.u32 2147483647, %v2014
    %v2786 = vand.u32 2147483647, %v2015
    %v2787 = vand.u32 2147483647, %v2016
    %v2788 = vand.u32 2147483647, %v2017
    %v2789 = vand.u32 2147483647, %v2018
    %v2790 = vand.u32 2147483647, %v2019
    %v2791 = vand.u32 2147483647, %v2020
    %v2792 = vand.u32 2147483647, %v2021
    %v2793 = vand.u32 2147483647, %v2022
    %v2794 = vand.u32 2147483647, %v2023
    %v2795 = vand.u32 2147483647, %v2024
    %v2796 = vand.u32 2147483647, %v2025
    %v2797 = vand.u32 2147483647, %v2026
    %v2798 = vand.u32 2147483647, %v2027
    %v2799 = vand.u32 2147483647, %v2028
    %v2800 = vand.u32 2147483647, %v2029
    %v2801 = vand.u32 2147483647, %v2030
    %v2802 = vand.u32 2147483647, %v2031
    %v2803 = vand.u32 2147483647, %v2032
    %v2804 = vand.u32 2147483647, %v2033
    %v2805 = vand.u32 2147483647, %v2034
    %v2806 = vand.u32 2147483647, %v2035
    %v2807 = vand.u32 2147483647, %v2036
    %v2808 = vand.u32 2147483647, %v2037
    %v2809 = vand.u32 2147483647, %v2038
    %v2810 = vand.u32 2147483647, %v2039
    %v2811 = vand.u32 2147483647, %v2040
    %v2812 = vand.u32 2147483647, %v2041
    %v2813 = vand.u32 2147483647, %v2042
    %v2814 = vand.u32 2147483647, %v2043
    %v2815 = vand.u32 2147483647, %v2044
    %v2816 = vand.u32 2147483647, %v2045
    %v2817 = vand.u32 2147483647, %v2046
    %v2818 = vand.u32 2147483647, %v2047
    %v2819 = vsub.f32 0.0, %v2755
    %v2820 = vsub.f32 0.0, %v2756
    %v2821 = vsub.f32 0.0, %v2757
    %v2822 = vsub.f32 0.0, %v2758
    %v2823 = vsub.f32 0.0, %v2759
    %v2824 = vsub.f32 0.0, %v2760
    %v2825 = vsub.f32 0.0, %v2761
    %v2826 = vsub.f32 0.0, %v2762
    %v2827 = vsub.f32 0.0, %v2763
    %v2828 = vsub.f32 0.0, %v2764
    %v2829 = vsub.f32 0.0, %v2765
    %v2830 = vsub.f32 0.0, %v2766
    %v2831 = vsub.f32 0.0, %v2767
    %v2832 = vsub.f32 0.0, %v2768
    %v2833 = vsub.f32 0.0, %v2769
    %v2834 = vsub.f32 0.0, %v2770
    %v2835 = vsub.f32 0.0, %v2771
    %v2836 = vsub.f32 0.0, %v2772
    %v2837 = vsub.f32 0.0, %v2773
    %v2838 = vsub.f32 0.0, %v2774
    %v2839 = vsub.f32 0.0, %v2775
    %v2840 = vsub.f32 0.0, %v2776
    %v2841 = vsub.f32 0.0, %v2777
    %v2842 = vsub.f32 0.0, %v2778
    %v2843 = vsub.f32 0.0, %v2779
    %v2844 = vsub.f32 0.0, %v2780
    %v2845 = vsub.f32 0.0, %v2781
    %v2846 = vsub.f32 0.0, %v2782
    %v2847 = vsub.f32 0.0, %v2783
    %v2848 = vsub.f32 0.0, %v2784
    %v2849 = vsub.f32 0.0, %v2785
    %v2850 = vsub.f32 0.0, %v2786
    %v2851 = vsub.f32 0.0, %v2787
    %v2852 = vsub.f32 0.0, %v2788
    %v2853 = vsub.f32 0.0, %v2789
    %v2854 = vsub.f32 0.0, %v2790
    %v2855 = vsub.f32 0.0, %v2791
    %v2856 = vsub.f32 0.0, %v2792
    %v2857 = vsub.f32 0.0, %v2793
    %v2858 = vsub.f32 0.0, %v2794
    %v2859 = vsub.f32 0.0, %v2795
    %v2860 = vsub.f32 0.0, %v2796
    %v2861 = vsub.f32 0.0, %v2797
    %v2862 = vsub.f32 0.0, %v2798
    %v2863 = vsub.f32 0.0, %v2799
    %v2864 = vsub.f32 0.0, %v2800
    %v2865 = vsub.f32 0.0, %v2801
    %v2866 = vsub.f32 0.0, %v2802
    %v2867 = vsub.f32 0.0, %v2803
    %v2868 = vsub.f32 0.0, %v2804
    %v2869 = vsub.f32 0.0, %v2805
    %v2870 = vsub.f32 0.0, %v2806
    %v2871 = vsub.f32 0.0, %v2807
    %v2872 = vsub.f32 0.0, %v2808
    %v2873 = vsub.f32 0.0, %v2809
    %v2874 = vsub.f32 0.0, %v2810
    %v2875 = vsub.f32 0.0, %v2811
    %v2876 = vsub.f32 0.0, %v2812
    %v2877 = vsub.f32 0.0, %v2813
    %v2878 = vsub.f32 0.0, %v2814
    %v2879 = vsub.f32 0.0, %v2815
    %v2880 = vsub.f32 0.0, %v2816
    %v2881 = vsub.f32 0.0, %v2817
    %v2882 = vsub.f32 0.0, %v2818
    %v2883 = vmul.f32 %v2819, 1.442695
    %v2884 = vpow.pop %v2883
    %v2885 = vmul.f32 %v2820, 1.442695
    %v2886 = vpow.pop %v2885
    %v2887 = vmul.f32 %v2821, 1.442695
    %v2888 = vpow.pop %v2887
    %v2889 = vmul.f32 %v2822, 1.442695
    %v2890 = vpow.pop %v2889
    %v2891 = vmul.f32 %v2823, 1.442695
    %v2892 = vpow.pop %v2891
    %v2893 = vmul.f32 %v2824, 1.442695
    %v2894 = vpow.pop %v2893
    %v2895 = vmul.f32 %v2825, 1.442695
    %v2896 = vpow.pop %v2895
    %v2897 = vmul.f32 %v2826, 1.442695
    %v2898 = vpow.pop %v2897
    %v2899 = vmul.f32 %v2827, 1.442695
    %v2900 = vpow.pop %v2899
    %v2901 = vmul.f32 %v2828, 1.442695
    %v2902 = vpow.pop %v2901
    %v2903 = vmul.f32 %v2829, 1.442695
    %v2904 = vpow.pop %v2903
    %v2905 = vmul.f32 %v2830, 1.442695
    %v2906 = vpow.pop %v2905
    %v2907 = vmul.f32 %v2831, 1.442695
    %v2908 = vpow.pop %v2907
    %v2909 = vmul.f32 %v2832, 1.442695
    %v2910 = vpow.pop %v2909
    %v2911 = vmul.f32 %v2833, 1.442695
    %v2912 = vpow.pop %v2911
    %v2913 = vmul.f32 %v2834, 1.442695
    %v2914 = vpow.pop %v2913
    %v2915 = vmul.f32 %v2835, 1.442695
    %v2916 = vpow.pop %v2915
    %v2917 = vmul.f32 %v2836, 1.442695
    %v2918 = vpow.pop %v2917
    %v2919 = vmul.f32 %v2837, 1.442695
    %v2920 = vpow.pop %v2919
    %v2921 = vmul.f32 %v2838, 1.442695
    %v2922 = vpow.pop %v2921
    %v2923 = vmul.f32 %v2839, 1.442695
    %v2924 = vpow.pop %v2923
    %v2925 = vmul.f32 %v2840, 1.442695
    %v2926 = vpow.pop %v2925
    %v2927 = vmul.f32 %v2841, 1.442695
    %v2928 = vpow.pop %v2927
    %v2929 = vmul.f32 %v2842, 1.442695
    %v2930 = vpow.pop %v2929
    %v2931 = vmul.f32 %v2843, 1.442695
    %v2932 = vpow.pop %v2931
    %v2933 = vmul.f32 %v2844, 1.442695
    %v2934 = vpow.pop %v2933
    %v2935 = vmul.f32 %v2845, 1.442695
    %v2936 = vpow.pop %v2935
    %v2937 = vmul.f32 %v2846, 1.442695
    %v2938 = vpow.pop %v2937
    %v2939 = vmul.f32 %v2847, 1.442695
    %v2940 = vpow.pop %v2939
    %v2941 = vmul.f32 %v2848, 1.442695
    %v2942 = vpow.pop %v2941
    %v2943 = vmul.f32 %v2849, 1.442695
    %v2944 = vpow.pop %v2943
    %v2945 = vmul.f32 %v2850, 1.442695
    %v2946 = vpow.pop %v2945
    %v2947 = vmul.f32 %v2851, 1.442695
    %v2948 = vpow.pop %v2947
    %v2949 = vmul.f32 %v2852, 1.442695
    %v2950 = vpow.pop %v2949
    %v2951 = vmul.f32 %v2853, 1.442695
    %v2952 = vpow.pop %v2951
    %v2953 = vmul.f32 %v2854, 1.442695
    %v2954 = vpow.pop %v2953
    %v2955 = vmul.f32 %v2855, 1.442695
    %v2956 = vpow.pop %v2955
    %v2957 = vmul.f32 %v2856, 1.442695
    %v2958 = vpow.pop %v2957
    %v2959 = vmul.f32 %v2857, 1.442695
    %v2960 = vpow.pop %v2959
    %v2961 = vmul.f32 %v2858, 1.442695
    %v2962 = vpow.pop %v2961
    %v2963 = vmul.f32 %v2859, 1.442695
    %v2964 = vpow.pop %v2963
    %v2965 = vmul.f32 %v2860, 1.442695
    %v2966 = vpow.pop %v2965
    %v2967 = vmul.f32 %v2861, 1.442695
    %v2968 = vpow.pop %v2967
    %v2969 = vmul.f32 %v2862, 1.442695
    %v2970 = vpow.pop %v2969
    %v2971 = vmul.f32 %v2863, 1.442695
    %v2972 = vpow.pop %v2971
    %v2973 = vmul.f32 %v2864, 1.442695
    %v2974 = vpow.pop %v2973
    %v2975 = vmul.f32 %v2865, 1.442695
    %v2976 = vpow.pop %v2975
    %v2977 = vmul.f32 %v2866, 1.442695
    %v2978 = vpow.pop %v2977
    %v2979 = vmul.f32 %v2867, 1.442695
    %v2980 = vpow.pop %v2979
    %v2981 = vmul.f32 %v2868, 1.442695
    %v2982 = vpow.pop %v2981
    %v2983 = vmul.f32 %v2869, 1.442695
    %v2984 = vpow.pop %v2983
    %v2985 = vmul.f32 %v2870, 1.442695
    %v2986 = vpow.pop %v2985
    %v2987 = vmul.f32 %v2871, 1.442695
    %v2988 = vpow.pop %v2987
    %v2989 = vmul.f32 %v2872, 1.442695
    %v2990 = vpow.pop %v2989
    %v2991 = vmul.f32 %v2873, 1.442695
    %v2992 = vpow.pop %v2991
    %v2993 = vmul.f32 %v2874, 1.442695
    %v2994 = vpow.pop %v2993
    %v2995 = vmul.f32 %v2875, 1.442695
    %v2996 = vpow.pop %v2995
    %v2997 = vmul.f32 %v2876, 1.442695
    %v2998 = vpow.pop %v2997
    %v2999 = vmul.f32 %v2877, 1.442695
    %v3000 = vpow.pop %v2999
    %v3001 = vmul.f32 %v2878, 1.442695
    %v3002 = vpow.pop %v3001
    %v3003 = vmul.f32 %v2879, 1.442695
    %v3004 = vpow.pop %v3003
    %v3005 = vmul.f32 %v2880, 1.442695
    %v3006 = vpow.pop %v3005
    %v3007 = vmul.f32 %v2881, 1.442695
    %v3008 = vpow.pop %v3007
    %v3009 = vmul.f32 %v2882, 1.442695
    %v3010 = vpow.pop %v3009
    %v3011 = vadd.f32 %v2884, 1.0
    %v3012 = vlog2.pop %v3011
    %v3013 = vmul.f32 %v3012, 0.6931472
    %v3014 = vmul.f32 -0.5, %v2884
    %v3015 = vadd.f32 %v3014, 1.0
    %v3016 = vmul.f32 %v3015, %v2884
    %v3017 = vand.u32 2147483647, %v2884
    %vm3018 = vcmp.lt.f32.partialorder %v3017, 0.0004427343
    %v3019 = vsel %vm3018, %v3016, %v3013
    %v3020 = vadd.f32 %v2886, 1.0
    %v3021 = vlog2.pop %v3020
    %v3022 = vmul.f32 %v3021, 0.6931472
    %v3023 = vmul.f32 -0.5, %v2886
    %v3024 = vadd.f32 %v3023, 1.0
    %v3025 = vmul.f32 %v3024, %v2886
    %v3026 = vand.u32 2147483647, %v2886
    %vm3027 = vcmp.lt.f32.partialorder %v3026, 0.0004427343
    %v3028 = vsel %vm3027, %v3025, %v3022
    %v3029 = vadd.f32 %v2888, 1.0
    %v3030 = vlog2.pop %v3029
    %v3031 = vmul.f32 %v3030, 0.6931472
    %v3032 = vmul.f32 -0.5, %v2888
    %v3033 = vadd.f32 %v3032, 1.0
    %v3034 = vmul.f32 %v3033, %v2888
    %v3035 = vand.u32 2147483647, %v2888
    %vm3036 = vcmp.lt.f32.partialorder %v3035, 0.0004427343
    %v3037 = vsel %vm3036, %v3034, %v3031
    %v3038 = vadd.f32 %v2890, 1.0
    %v3039 = vlog2.pop %v3038
    %v3040 = vmul.f32 %v3039, 0.6931472
    %v3041 = vmul.f32 -0.5, %v2890
    %v3042 = vadd.f32 %v3041, 1.0
    %v3043 = vmul.f32 %v3042, %v2890
    %v3044 = vand.u32 2147483647, %v2890
    %vm3045 = vcmp.lt.f32.partialorder %v3044, 0.0004427343
    %v3046 = vsel %vm3045, %v3043, %v3040
    %v3047 = vadd.f32 %v2892, 1.0
    %v3048 = vlog2.pop %v3047
    %v3049 = vmul.f32 %v3048, 0.6931472
    %v3050 = vmul.f32 -0.5, %v2892
    %v3051 = vadd.f32 %v3050, 1.0
    %v3052 = vmul.f32 %v3051, %v2892
    %v3053 = vand.u32 2147483647, %v2892
    %vm3054 = vcmp.lt.f32.partialorder %v3053, 0.0004427343
    %v3055 = vsel %vm3054, %v3052, %v3049
    %v3056 = vadd.f32 %v2894, 1.0
    %v3057 = vlog2.pop %v3056
    %v3058 = vmul.f32 %v3057, 0.6931472
    %v3059 = vmul.f32 -0.5, %v2894
    %v3060 = vadd.f32 %v3059, 1.0
    %v3061 = vmul.f32 %v3060, %v2894
    %v3062 = vand.u32 2147483647, %v2894
    %vm3063 = vcmp.lt.f32.partialorder %v3062, 0.0004427343
    %v3064 = vsel %vm3063, %v3061, %v3058
    %v3065 = vadd.f32 %v2896, 1.0
    %v3066 = vlog2.pop %v3065
    %v3067 = vmul.f32 %v3066, 0.6931472
    %v3068 = vmul.f32 -0.5, %v2896
    %v3069 = vadd.f32 %v3068, 1.0
    %v3070 = vmul.f32 %v3069, %v2896
    %v3071 = vand.u32 2147483647, %v2896
    %vm3072 = vcmp.lt.f32.partialorder %v3071, 0.0004427343
    %v3073 = vsel %vm3072, %v3070, %v3067
    %v3074 = vadd.f32 %v2898, 1.0
    %v3075 = vlog2.pop %v3074
    %v3076 = vmul.f32 %v3075, 0.6931472
    %v3077 = vmul.f32 -0.5, %v2898
    %v3078 = vadd.f32 %v3077, 1.0
    %v3079 = vmul.f32 %v3078, %v2898
    %v3080 = vand.u32 2147483647, %v2898
    %vm3081 = vcmp.lt.f32.partialorder %v3080, 0.0004427343
    %v3082 = vsel %vm3081, %v3079, %v3076
    %v3083 = vadd.f32 %v2900, 1.0
    %v3084 = vlog2.pop %v3083
    %v3085 = vmul.f32 %v3084, 0.6931472
    %v3086 = vmul.f32 -0.5, %v2900
    %v3087 = vadd.f32 %v3086, 1.0
    %v3088 = vmul.f32 %v3087, %v2900
    %v3089 = vand.u32 2147483647, %v2900
    %vm3090 = vcmp.lt.f32.partialorder %v3089, 0.0004427343
    %v3091 = vsel %vm3090, %v3088, %v3085
    %v3092 = vadd.f32 %v2902, 1.0
    %v3093 = vlog2.pop %v3092
    %v3094 = vmul.f32 %v3093, 0.6931472
    %v3095 = vmul.f32 -0.5, %v2902
    %v3096 = vadd.f32 %v3095, 1.0
    %v3097 = vmul.f32 %v3096, %v2902
    %v3098 = vand.u32 2147483647, %v2902
    %vm3099 = vcmp.lt.f32.partialorder %v3098, 0.0004427343
    %v3100 = vsel %vm3099, %v3097, %v3094
    %v3101 = vadd.f32 %v2904, 1.0
    %v3102 = vlog2.pop %v3101
    %v3103 = vmul.f32 %v3102, 0.6931472
    %v3104 = vmul.f32 -0.5, %v2904
    %v3105 = vadd.f32 %v3104, 1.0
    %v3106 = vmul.f32 %v3105, %v2904
    %v3107 = vand.u32 2147483647, %v2904
    %vm3108 = vcmp.lt.f32.partialorder %v3107, 0.0004427343
    %v3109 = vsel %vm3108, %v3106, %v3103
    %v3110 = vadd.f32 %v2906, 1.0
    %v3111 = vlog2.pop %v3110
    %v3112 = vmul.f32 %v3111, 0.6931472
    %v3113 = vmul.f32 -0.5, %v2906
    %v3114 = vadd.f32 %v3113, 1.0
    %v3115 = vmul.f32 %v3114, %v2906
    %v3116 = vand.u32 2147483647, %v2906
    %vm3117 = vcmp.lt.f32.partialorder %v3116, 0.0004427343
    %v3118 = vsel %vm3117, %v3115, %v3112
    %v3119 = vadd.f32 %v2908, 1.0
    %v3120 = vlog2.pop %v3119
    %v3121 = vmul.f32 %v3120, 0.6931472
    %v3122 = vmul.f32 -0.5, %v2908
    %v3123 = vadd.f32 %v3122, 1.0
    %v3124 = vmul.f32 %v3123, %v2908
    %v3125 = vand.u32 2147483647, %v2908
    %vm3126 = vcmp.lt.f32.partialorder %v3125, 0.0004427343
    %v3127 = vsel %vm3126, %v3124, %v3121
    %v3128 = vadd.f32 %v2910, 1.0
    %v3129 = vlog2.pop %v3128
    %v3130 = vmul.f32 %v3129, 0.6931472
    %v3131 = vmul.f32 -0.5, %v2910
    %v3132 = vadd.f32 %v3131, 1.0
    %v3133 = vmul.f32 %v3132, %v2910
    %v3134 = vand.u32 2147483647, %v2910
    %vm3135 = vcmp.lt.f32.partialorder %v3134, 0.0004427343
    %v3136 = vsel %vm3135, %v3133, %v3130
    %v3137 = vadd.f32 %v2912, 1.0
    %v3138 = vlog2.pop %v3137
    %v3139 = vmul.f32 %v3138, 0.6931472
    %v3140 = vmul.f32 -0.5, %v2912
    %v3141 = vadd.f32 %v3140, 1.0
    %v3142 = vmul.f32 %v3141, %v2912
    %v3143 = vand.u32 2147483647, %v2912
    %vm3144 = vcmp.lt.f32.partialorder %v3143, 0.0004427343
    %v3145 = vsel %vm3144, %v3142, %v3139
    %v3146 = vadd.f32 %v2914, 1.0
    %v3147 = vlog2.pop %v3146
    %v3148 = vmul.f32 %v3147, 0.6931472
    %v3149 = vmul.f32 -0.5, %v2914
    %v3150 = vadd.f32 %v3149, 1.0
    %v3151 = vmul.f32 %v3150, %v2914
    %v3152 = vand.u32 2147483647, %v2914
    %vm3153 = vcmp.lt.f32.partialorder %v3152, 0.0004427343
    %v3154 = vsel %vm3153, %v3151, %v3148
    %v3155 = vadd.f32 %v2916, 1.0
    %v3156 = vlog2.pop %v3155
    %v3157 = vmul.f32 %v3156, 0.6931472
    %v3158 = vmul.f32 -0.5, %v2916
    %v3159 = vadd.f32 %v3158, 1.0
    %v3160 = vmul.f32 %v3159, %v2916
    %v3161 = vand.u32 2147483647, %v2916
    %vm3162 = vcmp.lt.f32.partialorder %v3161, 0.0004427343
    %v3163 = vsel %vm3162, %v3160, %v3157
    %v3164 = vadd.f32 %v2918, 1.0
    %v3165 = vlog2.pop %v3164
    %v3166 = vmul.f32 %v3165, 0.6931472
    %v3167 = vmul.f32 -0.5, %v2918
    %v3168 = vadd.f32 %v3167, 1.0
    %v3169 = vmul.f32 %v3168, %v2918
    %v3170 = vand.u32 2147483647, %v2918
    %vm3171 = vcmp.lt.f32.partialorder %v3170, 0.0004427343
    %v3172 = vsel %vm3171, %v3169, %v3166
    %v3173 = vadd.f32 %v2920, 1.0
    %v3174 = vlog2.pop %v3173
    %v3175 = vmul.f32 %v3174, 0.6931472
    %v3176 = vmul.f32 -0.5, %v2920
    %v3177 = vadd.f32 %v3176, 1.0
    %v3178 = vmul.f32 %v3177, %v2920
    %v3179 = vand.u32 2147483647, %v2920
    %vm3180 = vcmp.lt.f32.partialorder %v3179, 0.0004427343
    %v3181 = vsel %vm3180, %v3178, %v3175
    %v3182 = vadd.f32 %v2922, 1.0
    %v3183 = vlog2.pop %v3182
    %v3184 = vmul.f32 %v3183, 0.6931472
    %v3185 = vmul.f32 -0.5, %v2922
    %v3186 = vadd.f32 %v3185, 1.0
    %v3187 = vmul.f32 %v3186, %v2922
    %v3188 = vand.u32 2147483647, %v2922
    %vm3189 = vcmp.lt.f32.partialorder %v3188, 0.0004427343
    %v3190 = vsel %vm3189, %v3187, %v3184
    %v3191 = vadd.f32 %v2924, 1.0
    %v3192 = vlog2.pop %v3191
    %v3193 = vmul.f32 %v3192, 0.6931472
    %v3194 = vmul.f32 -0.5, %v2924
    %v3195 = vadd.f32 %v3194, 1.0
    %v3196 = vmul.f32 %v3195, %v2924
    %v3197 = vand.u32 2147483647, %v2924
    %vm3198 = vcmp.lt.f32.partialorder %v3197, 0.0004427343
    %v3199 = vsel %vm3198, %v3196, %v3193
    %v3200 = vadd.f32 %v2926, 1.0
    %v3201 = vlog2.pop %v3200
    %v3202 = vmul.f32 %v3201, 0.6931472
    %v3203 = vmul.f32 -0.5, %v2926
    %v3204 = vadd.f32 %v3203, 1.0
    %v3205 = vmul.f32 %v3204, %v2926
    %v3206 = vand.u32 2147483647, %v2926
    %vm3207 = vcmp.lt.f32.partialorder %v3206, 0.0004427343
    %v3208 = vsel %vm3207, %v3205, %v3202
    %v3209 = vadd.f32 %v2928, 1.0
    %v3210 = vlog2.pop %v3209
    %v3211 = vmul.f32 %v3210, 0.6931472
    %v3212 = vmul.f32 -0.5, %v2928
    %v3213 = vadd.f32 %v3212, 1.0
    %v3214 = vmul.f32 %v3213, %v2928
    %v3215 = vand.u32 2147483647, %v2928
    %vm3216 = vcmp.lt.f32.partialorder %v3215, 0.0004427343
    %v3217 = vsel %vm3216, %v3214, %v3211
    %v3218 = vadd.f32 %v2930, 1.0
    %v3219 = vlog2.pop %v3218
    %v3220 = vmul.f32 %v3219, 0.6931472
    %v3221 = vmul.f32 -0.5, %v2930
    %v3222 = vadd.f32 %v3221, 1.0
    %v3223 = vmul.f32 %v3222, %v2930
    %v3224 = vand.u32 2147483647, %v2930
    %vm3225 = vcmp.lt.f32.partialorder %v3224, 0.0004427343
    %v3226 = vsel %vm3225, %v3223, %v3220
    %v3227 = vadd.f32 %v2932, 1.0
    %v3228 = vlog2.pop %v3227
    %v3229 = vmul.f32 %v3228, 0.6931472
    %v3230 = vmul.f32 -0.5, %v2932
    %v3231 = vadd.f32 %v3230, 1.0
    %v3232 = vmul.f32 %v3231, %v2932
    %v3233 = vand.u32 2147483647, %v2932
    %vm3234 = vcmp.lt.f32.partialorder %v3233, 0.0004427343
    %v3235 = vsel %vm3234, %v3232, %v3229
    %v3236 = vadd.f32 %v2934, 1.0
    %v3237 = vlog2.pop %v3236
    %v3238 = vmul.f32 %v3237, 0.6931472
    %v3239 = vmul.f32 -0.5, %v2934
    %v3240 = vadd.f32 %v3239, 1.0
    %v3241 = vmul.f32 %v3240, %v2934
    %v3242 = vand.u32 2147483647, %v2934
    %vm3243 = vcmp.lt.f32.partialorder %v3242, 0.0004427343
    %v3244 = vsel %vm3243, %v3241, %v3238
    %v3245 = vadd.f32 %v2936, 1.0
    %v3246 = vlog2.pop %v3245
    %v3247 = vmul.f32 %v3246, 0.6931472
    %v3248 = vmul.f32 -0.5, %v2936
    %v3249 = vadd.f32 %v3248, 1.0
    %v3250 = vmul.f32 %v3249, %v2936
    %v3251 = vand.u32 2147483647, %v2936
    %vm3252 = vcmp.lt.f32.partialorder %v3251, 0.0004427343
    %v3253 = vsel %vm3252, %v3250, %v3247
    %v3254 = vadd.f32 %v2938, 1.0
    %v3255 = vlog2.pop %v3254
    %v3256 = vmul.f32 %v3255, 0.6931472
    %v3257 = vmul.f32 -0.5, %v2938
    %v3258 = vadd.f32 %v3257, 1.0
    %v3259 = vmul.f32 %v3258, %v2938
    %v3260 = vand.u32 2147483647, %v2938
    %vm3261 = vcmp.lt.f32.partialorder %v3260, 0.0004427343
    %v3262 = vsel %vm3261, %v3259, %v3256
    %v3263 = vadd.f32 %v2940, 1.0
    %v3264 = vlog2.pop %v3263
    %v3265 = vmul.f32 %v3264, 0.6931472
    %v3266 = vmul.f32 -0.5, %v2940
    %v3267 = vadd.f32 %v3266, 1.0
    %v3268 = vmul.f32 %v3267, %v2940
    %v3269 = vand.u32 2147483647, %v2940
    %vm3270 = vcmp.lt.f32.partialorder %v3269, 0.0004427343
    %v3271 = vsel %vm3270, %v3268, %v3265
    %v3272 = vadd.f32 %v2942, 1.0
    %v3273 = vlog2.pop %v3272
    %v3274 = vmul.f32 %v3273, 0.6931472
    %v3275 = vmul.f32 -0.5, %v2942
    %v3276 = vadd.f32 %v3275, 1.0
    %v3277 = vmul.f32 %v3276, %v2942
    %v3278 = vand.u32 2147483647, %v2942
    %vm3279 = vcmp.lt.f32.partialorder %v3278, 0.0004427343
    %v3280 = vsel %vm3279, %v3277, %v3274
    %v3281 = vadd.f32 %v2944, 1.0
    %v3282 = vlog2.pop %v3281
    %v3283 = vmul.f32 %v3282, 0.6931472
    %v3284 = vmul.f32 -0.5, %v2944
    %v3285 = vadd.f32 %v3284, 1.0
    %v3286 = vmul.f32 %v3285, %v2944
    %v3287 = vand.u32 2147483647, %v2944
    %vm3288 = vcmp.lt.f32.partialorder %v3287, 0.0004427343
    %v3289 = vsel %vm3288, %v3286, %v3283
    %v3290 = vadd.f32 %v2946, 1.0
    %v3291 = vlog2.pop %v3290
    %v3292 = vmul.f32 %v3291, 0.6931472
    %v3293 = vmul.f32 -0.5, %v2946
    %v3294 = vadd.f32 %v3293, 1.0
    %v3295 = vmul.f32 %v3294, %v2946
    %v3296 = vand.u32 2147483647, %v2946
    %vm3297 = vcmp.lt.f32.partialorder %v3296, 0.0004427343
    %v3298 = vsel %vm3297, %v3295, %v3292
    %v3299 = vadd.f32 %v2948, 1.0
    %v3300 = vlog2.pop %v3299
    %v3301 = vmul.f32 %v3300, 0.6931472
    %v3302 = vmul.f32 -0.5, %v2948
    %v3303 = vadd.f32 %v3302, 1.0
    %v3304 = vmul.f32 %v3303, %v2948
    %v3305 = vand.u32 2147483647, %v2948
    %vm3306 = vcmp.lt.f32.partialorder %v3305, 0.0004427343
    %v3307 = vsel %vm3306, %v3304, %v3301
    %v3308 = vadd.f32 %v2950, 1.0
    %v3309 = vlog2.pop %v3308
    %v3310 = vmul.f32 %v3309, 0.6931472
    %v3311 = vmul.f32 -0.5, %v2950
    %v3312 = vadd.f32 %v3311, 1.0
    %v3313 = vmul.f32 %v3312, %v2950
    %v3314 = vand.u32 2147483647, %v2950
    %vm3315 = vcmp.lt.f32.partialorder %v3314, 0.0004427343
    %v3316 = vsel %vm3315, %v3313, %v3310
    %v3317 = vadd.f32 %v2952, 1.0
    %v3318 = vlog2.pop %v3317
    %v3319 = vmul.f32 %v3318, 0.6931472
    %v3320 = vmul.f32 -0.5, %v2952
    %v3321 = vadd.f32 %v3320, 1.0
    %v3322 = vmul.f32 %v3321, %v2952
    %v3323 = vand.u32 2147483647, %v2952
    %vm3324 = vcmp.lt.f32.partialorder %v3323, 0.0004427343
    %v3325 = vsel %vm3324, %v3322, %v3319
    %v3326 = vadd.f32 %v2954, 1.0
    %v3327 = vlog2.pop %v3326
    %v3328 = vmul.f32 %v3327, 0.6931472
    %v3329 = vmul.f32 -0.5, %v2954
    %v3330 = vadd.f32 %v3329, 1.0
    %v3331 = vmul.f32 %v3330, %v2954
    %v3332 = vand.u32 2147483647, %v2954
    %vm3333 = vcmp.lt.f32.partialorder %v3332, 0.0004427343
    %v3334 = vsel %vm3333, %v3331, %v3328
    %v3335 = vadd.f32 %v2956, 1.0
    %v3336 = vlog2.pop %v3335
    %v3337 = vmul.f32 %v3336, 0.6931472
    %v3338 = vmul.f32 -0.5, %v2956
    %v3339 = vadd.f32 %v3338, 1.0
    %v3340 = vmul.f32 %v3339, %v2956
    %v3341 = vand.u32 2147483647, %v2956
    %vm3342 = vcmp.lt.f32.partialorder %v3341, 0.0004427343
    %v3343 = vsel %vm3342, %v3340, %v3337
    %v3344 = vadd.f32 %v2958, 1.0
    %v3345 = vlog2.pop %v3344
    %v3346 = vmul.f32 %v3345, 0.6931472
    %v3347 = vmul.f32 -0.5, %v2958
    %v3348 = vadd.f32 %v3347, 1.0
    %v3349 = vmul.f32 %v3348, %v2958
    %v3350 = vand.u32 2147483647, %v2958
    %vm3351 = vcmp.lt.f32.partialorder %v3350, 0.0004427343
    %v3352 = vsel %vm3351, %v3349, %v3346
    %v3353 = vadd.f32 %v2960, 1.0
    %v3354 = vlog2.pop %v3353
    %v3355 = vmul.f32 %v3354, 0.6931472
    %v3356 = vmul.f32 -0.5, %v2960
    %v3357 = vadd.f32 %v3356, 1.0
    %v3358 = vmul.f32 %v3357, %v2960
    %v3359 = vand.u32 2147483647, %v2960
    %vm3360 = vcmp.lt.f32.partialorder %v3359, 0.0004427343
    %v3361 = vsel %vm3360, %v3358, %v3355
    %v3362 = vadd.f32 %v2962, 1.0
    %v3363 = vlog2.pop %v3362
    %v3364 = vmul.f32 %v3363, 0.6931472
    %v3365 = vmul.f32 -0.5, %v2962
    %v3366 = vadd.f32 %v3365, 1.0
    %v3367 = vmul.f32 %v3366, %v2962
    %v3368 = vand.u32 2147483647, %v2962
    %vm3369 = vcmp.lt.f32.partialorder %v3368, 0.0004427343
    %v3370 = vsel %vm3369, %v3367, %v3364
    %v3371 = vadd.f32 %v2964, 1.0
    %v3372 = vlog2.pop %v3371
    %v3373 = vmul.f32 %v3372, 0.6931472
    %v3374 = vmul.f32 -0.5, %v2964
    %v3375 = vadd.f32 %v3374, 1.0
    %v3376 = vmul.f32 %v3375, %v2964
    %v3377 = vand.u32 2147483647, %v2964
    %vm3378 = vcmp.lt.f32.partialorder %v3377, 0.0004427343
    %v3379 = vsel %vm3378, %v3376, %v3373
    %v3380 = vadd.f32 %v2966, 1.0
    %v3381 = vlog2.pop %v3380
    %v3382 = vmul.f32 %v3381, 0.6931472
    %v3383 = vmul.f32 -0.5, %v2966
    %v3384 = vadd.f32 %v3383, 1.0
    %v3385 = vmul.f32 %v3384, %v2966
    %v3386 = vand.u32 2147483647, %v2966
    %vm3387 = vcmp.lt.f32.partialorder %v3386, 0.0004427343
    %v3388 = vsel %vm3387, %v3385, %v3382
    %v3389 = vadd.f32 %v2968, 1.0
    %v3390 = vlog2.pop %v3389
    %v3391 = vmul.f32 %v3390, 0.6931472
    %v3392 = vmul.f32 -0.5, %v2968
    %v3393 = vadd.f32 %v3392, 1.0
    %v3394 = vmul.f32 %v3393, %v2968
    %v3395 = vand.u32 2147483647, %v2968
    %vm3396 = vcmp.lt.f32.partialorder %v3395, 0.0004427343
    %v3397 = vsel %vm3396, %v3394, %v3391
    %v3398 = vadd.f32 %v2970, 1.0
    %v3399 = vlog2.pop %v3398
    %v3400 = vmul.f32 %v3399, 0.6931472
    %v3401 = vmul.f32 -0.5, %v2970
    %v3402 = vadd.f32 %v3401, 1.0
    %v3403 = vmul.f32 %v3402, %v2970
    %v3404 = vand.u32 2147483647, %v2970
    %vm3405 = vcmp.lt.f32.partialorder %v3404, 0.0004427343
    %v3406 = vsel %vm3405, %v3403, %v3400
    %v3407 = vadd.f32 %v2972, 1.0
    %v3408 = vlog2.pop %v3407
    %v3409 = vmul.f32 %v3408, 0.6931472
    %v3410 = vmul.f32 -0.5, %v2972
    %v3411 = vadd.f32 %v3410, 1.0
    %v3412 = vmul.f32 %v3411, %v2972
    %v3413 = vand.u32 2147483647, %v2972
    %vm3414 = vcmp.lt.f32.partialorder %v3413, 0.0004427343
    %v3415 = vsel %vm3414, %v3412, %v3409
    %v3416 = vadd.f32 %v2974, 1.0
    %v3417 = vlog2.pop %v3416
    %v3418 = vmul.f32 %v3417, 0.6931472
    %v3419 = vmul.f32 -0.5, %v2974
    %v3420 = vadd.f32 %v3419, 1.0
    %v3421 = vmul.f32 %v3420, %v2974
    %v3422 = vand.u32 2147483647, %v2974
    %vm3423 = vcmp.lt.f32.partialorder %v3422, 0.0004427343
    %v3424 = vsel %vm3423, %v3421, %v3418
    %v3425 = vadd.f32 %v2976, 1.0
    %v3426 = vlog2.pop %v3425
    %v3427 = vmul.f32 %v3426, 0.6931472
    %v3428 = vmul.f32 -0.5, %v2976
    %v3429 = vadd.f32 %v3428, 1.0
    %v3430 = vmul.f32 %v3429, %v2976
    %v3431 = vand.u32 2147483647, %v2976
    %vm3432 = vcmp.lt.f32.partialorder %v3431, 0.0004427343
    %v3433 = vsel %vm3432, %v3430, %v3427
    %v3434 = vadd.f32 %v2978, 1.0
    %v3435 = vlog2.pop %v3434
    %v3436 = vmul.f32 %v3435, 0.6931472
    %v3437 = vmul.f32 -0.5, %v2978
    %v3438 = vadd.f32 %v3437, 1.0
    %v3439 = vmul.f32 %v3438, %v2978
    %v3440 = vand.u32 2147483647, %v2978
    %vm3441 = vcmp.lt.f32.partialorder %v3440, 0.0004427343
    %v3442 = vsel %vm3441, %v3439, %v3436
    %v3443 = vadd.f32 %v2980, 1.0
    %v3444 = vlog2.pop %v3443
    %v3445 = vmul.f32 %v3444, 0.6931472
    %v3446 = vmul.f32 -0.5, %v2980
    %v3447 = vadd.f32 %v3446, 1.0
    %v3448 = vmul.f32 %v3447, %v2980
    %v3449 = vand.u32 2147483647, %v2980
    %vm3450 = vcmp.lt.f32.partialorder %v3449, 0.0004427343
    %v3451 = vsel %vm3450, %v3448, %v3445
    %v3452 = vadd.f32 %v2982, 1.0
    %v3453 = vlog2.pop %v3452
    %v3454 = vmul.f32 %v3453, 0.6931472
    %v3455 = vmul.f32 -0.5, %v2982
    %v3456 = vadd.f32 %v3455, 1.0
    %v3457 = vmul.f32 %v3456, %v2982
    %v3458 = vand.u32 2147483647, %v2982
    %vm3459 = vcmp.lt.f32.partialorder %v3458, 0.0004427343
    %v3460 = vsel %vm3459, %v3457, %v3454
    %v3461 = vadd.f32 %v2984, 1.0
    %v3462 = vlog2.pop %v3461
    %v3463 = vmul.f32 %v3462, 0.6931472
    %v3464 = vmul.f32 -0.5, %v2984
    %v3465 = vadd.f32 %v3464, 1.0
    %v3466 = vmul.f32 %v3465, %v2984
    %v3467 = vand.u32 2147483647, %v2984
    %vm3468 = vcmp.lt.f32.partialorder %v3467, 0.0004427343
    %v3469 = vsel %vm3468, %v3466, %v3463
    %v3470 = vadd.f32 %v2986, 1.0
    %v3471 = vlog2.pop %v3470
    %v3472 = vmul.f32 %v3471, 0.6931472
    %v3473 = vmul.f32 -0.5, %v2986
    %v3474 = vadd.f32 %v3473, 1.0
    %v3475 = vmul.f32 %v3474, %v2986
    %v3476 = vand.u32 2147483647, %v2986
    %vm3477 = vcmp.lt.f32.partialorder %v3476, 0.0004427343
    %v3478 = vsel %vm3477, %v3475, %v3472
    %v3479 = vadd.f32 %v2988, 1.0
    %v3480 = vlog2.pop %v3479
    %v3481 = vmul.f32 %v3480, 0.6931472
    %v3482 = vmul.f32 -0.5, %v2988
    %v3483 = vadd.f32 %v3482, 1.0
    %v3484 = vmul.f32 %v3483, %v2988
    %v3485 = vand.u32 2147483647, %v2988
    %vm3486 = vcmp.lt.f32.partialorder %v3485, 0.0004427343
    %v3487 = vsel %vm3486, %v3484, %v3481
    %v3488 = vadd.f32 %v2990, 1.0
    %v3489 = vlog2.pop %v3488
    %v3490 = vmul.f32 %v3489, 0.6931472
    %v3491 = vmul.f32 -0.5, %v2990
    %v3492 = vadd.f32 %v3491, 1.0
    %v3493 = vmul.f32 %v3492, %v2990
    %v3494 = vand.u32 2147483647, %v2990
    %vm3495 = vcmp.lt.f32.partialorder %v3494, 0.0004427343
    %v3496 = vsel %vm3495, %v3493, %v3490
    %v3497 = vadd.f32 %v2992, 1.0
    %v3498 = vlog2.pop %v3497
    %v3499 = vmul.f32 %v3498, 0.6931472
    %v3500 = vmul.f32 -0.5, %v2992
    %v3501 = vadd.f32 %v3500, 1.0
    %v3502 = vmul.f32 %v3501, %v2992
    %v3503 = vand.u32 2147483647, %v2992
    %vm3504 = vcmp.lt.f32.partialorder %v3503, 0.0004427343
    %v3505 = vsel %vm3504, %v3502, %v3499
    %v3506 = vadd.f32 %v2994, 1.0
    %v3507 = vlog2.pop %v3506
    %v3508 = vmul.f32 %v3507, 0.6931472
    %v3509 = vmul.f32 -0.5, %v2994
    %v3510 = vadd.f32 %v3509, 1.0
    %v3511 = vmul.f32 %v3510, %v2994
    %v3512 = vand.u32 2147483647, %v2994
    %vm3513 = vcmp.lt.f32.partialorder %v3512, 0.0004427343
    %v3514 = vsel %vm3513, %v3511, %v3508
    %v3515 = vadd.f32 %v2996, 1.0
    %v3516 = vlog2.pop %v3515
    %v3517 = vmul.f32 %v3516, 0.6931472
    %v3518 = vmul.f32 -0.5, %v2996
    %v3519 = vadd.f32 %v3518, 1.0
    %v3520 = vmul.f32 %v3519, %v2996
    %v3521 = vand.u32 2147483647, %v2996
    %vm3522 = vcmp.lt.f32.partialorder %v3521, 0.0004427343
    %v3523 = vsel %vm3522, %v3520, %v3517
    %v3524 = vadd.f32 %v2998, 1.0
    %v3525 = vlog2.pop %v3524
    %v3526 = vmul.f32 %v3525, 0.6931472
    %v3527 = vmul.f32 -0.5, %v2998
    %v3528 = vadd.f32 %v3527, 1.0
    %v3529 = vmul.f32 %v3528, %v2998
    %v3530 = vand.u32 2147483647, %v2998
    %vm3531 = vcmp.lt.f32.partialorder %v3530, 0.0004427343
    %v3532 = vsel %vm3531, %v3529, %v3526
    %v3533 = vadd.f32 %v3000, 1.0
    %v3534 = vlog2.pop %v3533
    %v3535 = vmul.f32 %v3534, 0.6931472
    %v3536 = vmul.f32 -0.5, %v3000
    %v3537 = vadd.f32 %v3536, 1.0
    %v3538 = vmul.f32 %v3537, %v3000
    %v3539 = vand.u32 2147483647, %v3000
    %vm3540 = vcmp.lt.f32.partialorder %v3539, 0.0004427343
    %v3541 = vsel %vm3540, %v3538, %v3535
    %v3542 = vadd.f32 %v3002, 1.0
    %v3543 = vlog2.pop %v3542
    %v3544 = vmul.f32 %v3543, 0.6931472
    %v3545 = vmul.f32 -0.5, %v3002
    %v3546 = vadd.f32 %v3545, 1.0
    %v3547 = vmul.f32 %v3546, %v3002
    %v3548 = vand.u32 2147483647, %v3002
    %vm3549 = vcmp.lt.f32.partialorder %v3548, 0.0004427343
    %v3550 = vsel %vm3549, %v3547, %v3544
    %v3551 = vadd.f32 %v3004, 1.0
    %v3552 = vlog2.pop %v3551
    %v3553 = vmul.f32 %v3552, 0.6931472
    %v3554 = vmul.f32 -0.5, %v3004
    %v3555 = vadd.f32 %v3554, 1.0
    %v3556 = vmul.f32 %v3555, %v3004
    %v3557 = vand.u32 2147483647, %v3004
    %vm3558 = vcmp.lt.f32.partialorder %v3557, 0.0004427343
    %v3559 = vsel %vm3558, %v3556, %v3553
    %v3560 = vadd.f32 %v3006, 1.0
    %v3561 = vlog2.pop %v3560
    %v3562 = vmul.f32 %v3561, 0.6931472
    %v3563 = vmul.f32 -0.5, %v3006
    %v3564 = vadd.f32 %v3563, 1.0
    %v3565 = vmul.f32 %v3564, %v3006
    %v3566 = vand.u32 2147483647, %v3006
    %vm3567 = vcmp.lt.f32.partialorder %v3566, 0.0004427343
    %v3568 = vsel %vm3567, %v3565, %v3562
    %v3569 = vadd.f32 %v3008, 1.0
    %v3570 = vlog2.pop %v3569
    %v3571 = vmul.f32 %v3570, 0.6931472
    %v3572 = vmul.f32 -0.5, %v3008
    %v3573 = vadd.f32 %v3572, 1.0
    %v3574 = vmul.f32 %v3573, %v3008
    %v3575 = vand.u32 2147483647, %v3008
    %vm3576 = vcmp.lt.f32.partialorder %v3575, 0.0004427343
    %v3577 = vsel %vm3576, %v3574, %v3571
    %v3578 = vadd.f32 %v3010, 1.0
    %v3579 = vlog2.pop %v3578
    %v3580 = vmul.f32 %v3579, 0.6931472
    %v3581 = vmul.f32 -0.5, %v3010
    %v3582 = vadd.f32 %v3581, 1.0
    %v3583 = vmul.f32 %v3582, %v3010
    %v3584 = vand.u32 2147483647, %v3010
    %vm3585 = vcmp.lt.f32.partialorder %v3584, 0.0004427343
    %v3586 = vsel %vm3585, %v3583, %v3580
    %v3587 = vadd.f32 %v2691, %v3019
    %v3588 = vadd.f32 %v2692, %v3028
    %v3589 = vadd.f32 %v2693, %v3037
    %v3590 = vadd.f32 %v2694, %v3046
    %v3591 = vadd.f32 %v2695, %v3055
    %v3592 = vadd.f32 %v2696, %v3064
    %v3593 = vadd.f32 %v2697, %v3073
    %v3594 = vadd.f32 %v2698, %v3082
    %v3595 = vadd.f32 %v2699, %v3091
    %v3596 = vadd.f32 %v2700, %v3100
    %v3597 = vadd.f32 %v2701, %v3109
    %v3598 = vadd.f32 %v2702, %v3118
    %v3599 = vadd.f32 %v2703, %v3127
    %v3600 = vadd.f32 %v2704, %v3136
    %v3601 = vadd.f32 %v2705, %v3145
    %v3602 = vadd.f32 %v2706, %v3154
    %v3603 = vadd.f32 %v2707, %v3163
    %v3604 = vadd.f32 %v2708, %v3172
    %v3605 = vadd.f32 %v2709, %v3181
    %v3606 = vadd.f32 %v2710, %v3190
    %v3607 = vadd.f32 %v2711, %v3199
    %v3608 = vadd.f32 %v2712, %v3208
    %v3609 = vadd.f32 %v2713, %v3217
    %v3610 = vadd.f32 %v2714, %v3226
    %v3611 = vadd.f32 %v2715, %v3235
    %v3612 = vadd.f32 %v2716, %v3244
    %v3613 = vadd.f32 %v2717, %v3253
    %v3614 = vadd.f32 %v2718, %v3262
    %v3615 = vadd.f32 %v2719, %v3271
    %v3616 = vadd.f32 %v2720, %v3280
    %v3617 = vadd.f32 %v2721, %v3289
    %v3618 = vadd.f32 %v2722, %v3298
    %v3619 = vadd.f32 %v2723, %v3307
    %v3620 = vadd.f32 %v2724, %v3316
    %v3621 = vadd.f32 %v2725, %v3325
    %v3622 = vadd.f32 %v2726, %v3334
    %v3623 = vadd.f32 %v2727, %v3343
    %v3624 = vadd.f32 %v2728, %v3352
    %v3625 = vadd.f32 %v2729, %v3361
    %v3626 = vadd.f32 %v2730, %v3370
    %v3627 = vadd.f32 %v2731, %v3379
    %v3628 = vadd.f32 %v2732, %v3388
    %v3629 = vadd.f32 %v2733, %v3397
    %v3630 = vadd.f32 %v2734, %v3406
    %v3631 = vadd.f32 %v2735, %v3415
    %v3632 = vadd.f32 %v2736, %v3424
    %v3633 = vadd.f32 %v2737, %v3433
    %v3634 = vadd.f32 %v2738, %v3442
    %v3635 = vadd.f32 %v2739, %v3451
    %v3636 = vadd.f32 %v2740, %v3460
    %v3637 = vadd.f32 %v2741, %v3469
    %v3638 = vadd.f32 %v2742, %v3478
    %v3639 = vadd.f32 %v2743, %v3487
    %v3640 = vadd.f32 %v2744, %v3496
    %v3641 = vadd.f32 %v2745, %v3505
    %v3642 = vadd.f32 %v2746, %v3514
    %v3643 = vadd.f32 %v2747, %v3523
    %v3644 = vadd.f32 %v2748, %v3532
    %v3645 = vadd.f32 %v2749, %v3541
    %v3646 = vadd.f32 %v2750, %v3550
    %v3647 = vadd.f32 %v2751, %v3559
    %v3648 = vadd.f32 %v2752, %v3568
    %v3649 = vadd.f32 %v2753, %v3577
    %v3650 = vadd.f32 %v2754, %v3586
    %v3651 = vsel %vm2435, 1.0, 0.0
    %v3652 = vsel %vm2436, 1.0, 0.0
    %v3653 = vsel %vm2437, 1.0, 0.0
    %v3654 = vsel %vm2438, 1.0, 0.0
    %v3655 = vsel %vm2439, 1.0, 0.0
    %v3656 = vsel %vm2440, 1.0, 0.0
    %v3657 = vsel %vm2441, 1.0, 0.0
    %v3658 = vsel %vm2442, 1.0, 0.0
    %v3659 = vsel %vm2443, 1.0, 0.0
    %v3660 = vsel %vm2444, 1.0, 0.0
    %v3661 = vsel %vm2445, 1.0, 0.0
    %v3662 = vsel %vm2446, 1.0, 0.0
    %v3663 = vsel %vm2447, 1.0, 0.0
    %v3664 = vsel %vm2448, 1.0, 0.0
    %v3665 = vsel %vm2449, 1.0, 0.0
    %v3666 = vsel %vm2450, 1.0, 0.0
    %v3667 = vsel %vm2451, 1.0, 0.0
    %v3668 = vsel %vm2452, 1.0, 0.0
    %v3669 = vsel %vm2453, 1.0, 0.0
    %v3670 = vsel %vm2454, 1.0, 0.0
    %v3671 = vsel %vm2455, 1.0, 0.0
    %v3672 = vsel %vm2456, 1.0, 0.0
    %v3673 = vsel %vm2457, 1.0, 0.0
    %v3674 = vsel %vm2458, 1.0, 0.0
    %v3675 = vsel %vm2459, 1.0, 0.0
    %v3676 = vsel %vm2460, 1.0, 0.0
    %v3677 = vsel %vm2461, 1.0, 0.0
    %v3678 = vsel %vm2462, 1.0, 0.0
    %v3679 = vsel %vm2463, 1.0, 0.0
    %v3680 = vsel %vm2464, 1.0, 0.0
    %v3681 = vsel %vm2465, 1.0, 0.0
    %v3682 = vsel %vm2466, 1.0, 0.0
    %v3683 = vsel %vm2467, 1.0, 0.0
    %v3684 = vsel %vm2468, 1.0, 0.0
    %v3685 = vsel %vm2469, 1.0, 0.0
    %v3686 = vsel %vm2470, 1.0, 0.0
    %v3687 = vsel %vm2471, 1.0, 0.0
    %v3688 = vsel %vm2472, 1.0, 0.0
    %v3689 = vsel %vm2473, 1.0, 0.0
    %v3690 = vsel %vm2474, 1.0, 0.0
    %v3691 = vsel %vm2475, 1.0, 0.0
    %v3692 = vsel %vm2476, 1.0, 0.0
    %v3693 = vsel %vm2477, 1.0, 0.0
    %v3694 = vsel %vm2478, 1.0, 0.0
    %v3695 = vsel %vm2479, 1.0, 0.0
    %v3696 = vsel %vm2480, 1.0, 0.0
    %v3697 = vsel %vm2481, 1.0, 0.0
    %v3698 = vsel %vm2482, 1.0, 0.0
    %v3699 = vsel %vm2483, 1.0, 0.0
    %v3700 = vsel %vm2484, 1.0, 0.0
    %v3701 = vsel %vm2485, 1.0, 0.0
    %v3702 = vsel %vm2486, 1.0, 0.0
    %v3703 = vsel %vm2487, 1.0, 0.0
    %v3704 = vsel %vm2488, 1.0, 0.0
    %v3705 = vsel %vm2489, 1.0, 0.0
    %v3706 = vsel %vm2490, 1.0, 0.0
    %v3707 = vsel %vm2491, 1.0, 0.0
    %v3708 = vsel %vm2492, 1.0, 0.0
    %v3709 = vsel %vm2493, 1.0, 0.0
    %v3710 = vsel %vm2494, 1.0, 0.0
    %v3711 = vsel %vm2495, 1.0, 0.0
    %v3712 = vsel %vm2496, 1.0, 0.0
    %v3713 = vsel %vm2497, 1.0, 0.0
    %v3714 = vsel %vm2498, 1.0, 0.0
    %v3715 = vadd.f32 %v3651, %v3652
    %v3716 = vadd.f32 %v3715, %v3653
    %v3717 = vadd.f32 %v3716, %v3654
    %v3718 = vadd.f32 %v3717, %v3655
    %v3719 = vadd.f32 %v3718, %v3656
    %v3720 = vadd.f32 %v3719, %v3657
    %v3721 = vadd.f32 %v3720, %v3658
    %v3722 = vadd.f32 %v3721, %v3659
    %v3723 = vadd.f32 %v3722, %v3660
    %v3724 = vadd.f32 %v3723, %v3661
    %v3725 = vadd.f32 %v3724, %v3662
    %v3726 = vadd.f32 %v3725, %v3663
    %v3727 = vadd.f32 %v3726, %v3664
    %v3728 = vadd.f32 %v3727, %v3665
    %v3729 = vadd.f32 %v3728, %v3666
    %v3730 = vadd.f32 %v3729, %v3667
    %v3731 = vadd.f32 %v3730, %v3668
    %v3732 = vadd.f32 %v3731, %v3669
    %v3733 = vadd.f32 %v3732, %v3670
    %v3734 = vadd.f32 %v3733, %v3671
    %v3735 = vadd.f32 %v3734, %v3672
    %v3736 = vadd.f32 %v3735, %v3673
    %v3737 = vadd.f32 %v3736, %v3674
    %v3738 = vadd.f32 %v3737, %v3675
    %v3739 = vadd.f32 %v3738, %v3676
    %v3740 = vadd.f32 %v3739, %v3677
    %v3741 = vadd.f32 %v3740, %v3678
    %v3742 = vadd.f32 %v3741, %v3679
    %v3743 = vadd.f32 %v3742, %v3680
    %v3744 = vadd.f32 %v3743, %v3681
    %v3745 = vadd.f32 %v3744, %v3682
    %v3746 = vadd.f32 %v3745, %v3683
    %v3747 = vadd.f32 %v3746, %v3684
    %v3748 = vadd.f32 %v3747, %v3685
    %v3749 = vadd.f32 %v3748, %v3686
    %v3750 = vadd.f32 %v3749, %v3687
    %v3751 = vadd.f32 %v3750, %v3688
    %v3752 = vadd.f32 %v3751, %v3689
    %v3753 = vadd.f32 %v3752, %v3690
    %v3754 = vadd.f32 %v3753, %v3691
    %v3755 = vadd.f32 %v3754, %v3692
    %v3756 = vadd.f32 %v3755, %v3693
    %v3757 = vadd.f32 %v3756, %v3694
    %v3758 = vadd.f32 %v3757, %v3695
    %v3759 = vadd.f32 %v3758, %v3696
    %v3760 = vadd.f32 %v3759, %v3697
    %v3761 = vadd.f32 %v3760, %v3698
    %v3762 = vadd.f32 %v3761, %v3699
    %v3763 = vadd.f32 %v3762, %v3700
    %v3764 = vadd.f32 %v3763, %v3701
    %v3765 = vadd.f32 %v3764, %v3702
    %v3766 = vadd.f32 %v3765, %v3703
    %v3767 = vadd.f32 %v3766, %v3704
    %v3768 = vadd.f32 %v3767, %v3705
    %v3769 = vadd.f32 %v3768, %v3706
    %v3770 = vadd.f32 %v3769, %v3707
    %v3771 = vadd.f32 %v3770, %v3708
    %v3772 = vadd.f32 %v3771, %v3709
    %v3773 = vadd.f32 %v3772, %v3710
    %v3774 = vadd.f32 %v3773, %v3711
    %v3775 = vadd.f32 %v3774, %v3712
    %v3776 = vadd.f32 %v3775, %v3713
    %v3777 = vadd.f32 %v3776, %v3714
    %v3778 = vadd.f32 %v3777, 0.0
    %v3779 = vsel %vm2499, 1.0, 0.0
    %v3780 = vsel %vm2500, 1.0, 0.0
    %v3781 = vsel %vm2501, 1.0, 0.0
    %v3782 = vsel %vm2502, 1.0, 0.0
    %v3783 = vsel %vm2503, 1.0, 0.0
    %v3784 = vsel %vm2504, 1.0, 0.0
    %v3785 = vsel %vm2505, 1.0, 0.0
    %v3786 = vsel %vm2506, 1.0, 0.0
    %v3787 = vsel %vm2507, 1.0, 0.0
    %v3788 = vsel %vm2508, 1.0, 0.0
    %v3789 = vsel %vm2509, 1.0, 0.0
    %v3790 = vsel %vm2510, 1.0, 0.0
    %v3791 = vsel %vm2511, 1.0, 0.0
    %v3792 = vsel %vm2512, 1.0, 0.0
    %v3793 = vsel %vm2513, 1.0, 0.0
    %v3794 = vsel %vm2514, 1.0, 0.0
    %v3795 = vsel %vm2515, 1.0, 0.0
    %v3796 = vsel %vm2516, 1.0, 0.0
    %v3797 = vsel %vm2517, 1.0, 0.0
    %v3798 = vsel %vm2518, 1.0, 0.0
    %v3799 = vsel %vm2519, 1.0, 0.0
    %v3800 = vsel %vm2520, 1.0, 0.0
    %v3801 = vsel %vm2521, 1.0, 0.0
    %v3802 = vsel %vm2522, 1.0, 0.0
    %v3803 = vsel %vm2523, 1.0, 0.0
    %v3804 = vsel %vm2524, 1.0, 0.0
    %v3805 = vsel %vm2525, 1.0, 0.0
    %v3806 = vsel %vm2526, 1.0, 0.0
    %v3807 = vsel %vm2527, 1.0, 0.0
    %v3808 = vsel %vm2528, 1.0, 0.0
    %v3809 = vsel %vm2529, 1.0, 0.0
    %v3810 = vsel %vm2530, 1.0, 0.0
    %v3811 = vsel %vm2531, 1.0, 0.0
    %v3812 = vsel %vm2532, 1.0, 0.0
    %v3813 = vsel %vm2533, 1.0, 0.0
    %v3814 = vsel %vm2534, 1.0, 0.0
    %v3815 = vsel %vm2535, 1.0, 0.0
    %v3816 = vsel %vm2536, 1.0, 0.0
    %v3817 = vsel %vm2537, 1.0, 0.0
    %v3818 = vsel %vm2538, 1.0, 0.0
    %v3819 = vsel %vm2539, 1.0, 0.0
    %v3820 = vsel %vm2540, 1.0, 0.0
    %v3821 = vsel %vm2541, 1.0, 0.0
    %v3822 = vsel %vm2542, 1.0, 0.0
    %v3823 = vsel %vm2543, 1.0, 0.0
    %v3824 = vsel %vm2544, 1.0, 0.0
    %v3825 = vsel %vm2545, 1.0, 0.0
    %v3826 = vsel %vm2546, 1.0, 0.0
    %v3827 = vsel %vm2547, 1.0, 0.0
    %v3828 = vsel %vm2548, 1.0, 0.0
    %v3829 = vsel %vm2549, 1.0, 0.0
    %v3830 = vsel %vm2550, 1.0, 0.0
    %v3831 = vsel %vm2551, 1.0, 0.0
    %v3832 = vsel %vm2552, 1.0, 0.0
    %v3833 = vsel %vm2553, 1.0, 0.0
    %v3834 = vsel %vm2554, 1.0, 0.0
    %v3835 = vsel %vm2555, 1.0, 0.0
    %v3836 = vsel %vm2556, 1.0, 0.0
    %v3837 = vsel %vm2557, 1.0, 0.0
    %v3838 = vsel %vm2558, 1.0, 0.0
    %v3839 = vsel %vm2559, 1.0, 0.0
    %v3840 = vsel %vm2560, 1.0, 0.0
    %v3841 = vsel %vm2561, 1.0, 0.0
    %v3842 = vsel %vm2562, 1.0, 0.0
    %v3843 = vadd.f32 %v3779, %v3780
    %v3844 = vadd.f32 %v3843, %v3781
    %v3845 = vadd.f32 %v3844, %v3782
    %v3846 = vadd.f32 %v3845, %v3783
    %v3847 = vadd.f32 %v3846, %v3784
    %v3848 = vadd.f32 %v3847, %v3785
    %v3849 = vadd.f32 %v3848, %v3786
    %v3850 = vadd.f32 %v3849, %v3787
    %v3851 = vadd.f32 %v3850, %v3788
    %v3852 = vadd.f32 %v3851, %v3789
    %v3853 = vadd.f32 %v3852, %v3790
    %v3854 = vadd.f32 %v3853, %v3791
    %v3855 = vadd.f32 %v3854, %v3792
    %v3856 = vadd.f32 %v3855, %v3793
    %v3857 = vadd.f32 %v3856, %v3794
    %v3858 = vadd.f32 %v3857, %v3795
    %v3859 = vadd.f32 %v3858, %v3796
    %v3860 = vadd.f32 %v3859, %v3797
    %v3861 = vadd.f32 %v3860, %v3798
    %v3862 = vadd.f32 %v3861, %v3799
    %v3863 = vadd.f32 %v3862, %v3800
    %v3864 = vadd.f32 %v3863, %v3801
    %v3865 = vadd.f32 %v3864, %v3802
    %v3866 = vadd.f32 %v3865, %v3803
    %v3867 = vadd.f32 %v3866, %v3804
    %v3868 = vadd.f32 %v3867, %v3805
    %v3869 = vadd.f32 %v3868, %v3806
    %v3870 = vadd.f32 %v3869, %v3807
    %v3871 = vadd.f32 %v3870, %v3808
    %v3872 = vadd.f32 %v3871, %v3809
    %v3873 = vadd.f32 %v3872, %v3810
    %v3874 = vadd.f32 %v3873, %v3811
    %v3875 = vadd.f32 %v3874, %v3812
    %v3876 = vadd.f32 %v3875, %v3813
    %v3877 = vadd.f32 %v3876, %v3814
    %v3878 = vadd.f32 %v3877, %v3815
    %v3879 = vadd.f32 %v3878, %v3816
    %v3880 = vadd.f32 %v3879, %v3817
    %v3881 = vadd.f32 %v3880, %v3818
    %v3882 = vadd.f32 %v3881, %v3819
    %v3883 = vadd.f32 %v3882, %v3820
    %v3884 = vadd.f32 %v3883, %v3821
    %v3885 = vadd.f32 %v3884, %v3822
    %v3886 = vadd.f32 %v3885, %v3823
    %v3887 = vadd.f32 %v3886, %v3824
    %v3888 = vadd.f32 %v3887, %v3825
    %v3889 = vadd.f32 %v3888, %v3826
    %v3890 = vadd.f32 %v3889, %v3827
    %v3891 = vadd.f32 %v3890, %v3828
    %v3892 = vadd.f32 %v3891, %v3829
    %v3893 = vadd.f32 %v3892, %v3830
    %v3894 = vadd.f32 %v3893, %v3831
    %v3895 = vadd.f32 %v3894, %v3832
    %v3896 = vadd.f32 %v3895, %v3833
    %v3897 = vadd.f32 %v3896, %v3834
    %v3898 = vadd.f32 %v3897, %v3835
    %v3899 = vadd.f32 %v3898, %v3836
    %v3900 = vadd.f32 %v3899, %v3837
    %v3901 = vadd.f32 %v3900, %v3838
    %v3902 = vadd.f32 %v3901, %v3839
    %v3903 = vadd.f32 %v3902, %v3840
    %v3904 = vadd.f32 %v3903, %v3841
    %v3905 = vadd.f32 %v3904, %v3842
    %v3906 = vadd.f32 %v3905, 0.0
    %v3907 = vsel %vm2435, %v3587, 0.0
    %v3908 = vsel %vm2436, %v3588, 0.0
    %v3909 = vsel %vm2437, %v3589, 0.0
    %v3910 = vsel %vm2438, %v3590, 0.0
    %v3911 = vsel %vm2439, %v3591, 0.0
    %v3912 = vsel %vm2440, %v3592, 0.0
    %v3913 = vsel %vm2441, %v3593, 0.0
    %v3914 = vsel %vm2442, %v3594, 0.0
    %v3915 = vsel %vm2443, %v3595, 0.0
    %v3916 = vsel %vm2444, %v3596, 0.0
    %v3917 = vsel %vm2445, %v3597, 0.0
    %v3918 = vsel %vm2446, %v3598, 0.0
    %v3919 = vsel %vm2447, %v3599, 0.0
    %v3920 = vsel %vm2448, %v3600, 0.0
    %v3921 = vsel %vm2449, %v3601, 0.0
    %v3922 = vsel %vm2450, %v3602, 0.0
    %v3923 = vsel %vm2451, %v3603, 0.0
    %v3924 = vsel %vm2452, %v3604, 0.0
    %v3925 = vsel %vm2453, %v3605, 0.0
    %v3926 = vsel %vm2454, %v3606, 0.0
    %v3927 = vsel %vm2455, %v3607, 0.0
    %v3928 = vsel %vm2456, %v3608, 0.0
    %v3929 = vsel %vm2457, %v3609, 0.0
    %v3930 = vsel %vm2458, %v3610, 0.0
    %v3931 = vsel %vm2459, %v3611, 0.0
    %v3932 = vsel %vm2460, %v3612, 0.0
    %v3933 = vsel %vm2461, %v3613, 0.0
    %v3934 = vsel %vm2462, %v3614, 0.0
    %v3935 = vsel %vm2463, %v3615, 0.0
    %v3936 = vsel %vm2464, %v3616, 0.0
    %v3937 = vsel %vm2465, %v3617, 0.0
    %v3938 = vsel %vm2466, %v3618, 0.0
    %v3939 = vsel %vm2467, %v3619, 0.0
    %v3940 = vsel %vm2468, %v3620, 0.0
    %v3941 = vsel %vm2469, %v3621, 0.0
    %v3942 = vsel %vm2470, %v3622, 0.0
    %v3943 = vsel %vm2471, %v3623, 0.0
    %v3944 = vsel %vm2472, %v3624, 0.0
    %v3945 = vsel %vm2473, %v3625, 0.0
    %v3946 = vsel %vm2474, %v3626, 0.0
    %v3947 = vsel %vm2475, %v3627, 0.0
    %v3948 = vsel %vm2476, %v3628, 0.0
    %v3949 = vsel %vm2477, %v3629, 0.0
    %v3950 = vsel %vm2478, %v3630, 0.0
    %v3951 = vsel %vm2479, %v3631, 0.0
    %v3952 = vsel %vm2480, %v3632, 0.0
    %v3953 = vsel %vm2481, %v3633, 0.0
    %v3954 = vsel %vm2482, %v3634, 0.0
    %v3955 = vsel %vm2483, %v3635, 0.0
    %v3956 = vsel %vm2484, %v3636, 0.0
    %v3957 = vsel %vm2485, %v3637, 0.0
    %v3958 = vsel %vm2486, %v3638, 0.0
    %v3959 = vsel %vm2487, %v3639, 0.0
    %v3960 = vsel %vm2488, %v3640, 0.0
    %v3961 = vsel %vm2489, %v3641, 0.0
    %v3962 = vsel %vm2490, %v3642, 0.0
    %v3963 = vsel %vm2491, %v3643, 0.0
    %v3964 = vsel %vm2492, %v3644, 0.0
    %v3965 = vsel %vm2493, %v3645, 0.0
    %v3966 = vsel %vm2494, %v3646, 0.0
    %v3967 = vsel %vm2495, %v3647, 0.0
    %v3968 = vsel %vm2496, %v3648, 0.0
    %v3969 = vsel %vm2497, %v3649, 0.0
    %v3970 = vsel %vm2498, %v3650, 0.0
    %v3971 = vadd.f32 %v3907, %v3908
    %v3972 = vadd.f32 %v3971, %v3909
    %v3973 = vadd.f32 %v3972, %v3910
    %v3974 = vadd.f32 %v3973, %v3911
    %v3975 = vadd.f32 %v3974, %v3912
    %v3976 = vadd.f32 %v3975, %v3913
    %v3977 = vadd.f32 %v3976, %v3914
    %v3978 = vadd.f32 %v3977, %v3915
    %v3979 = vadd.f32 %v3978, %v3916
    %v3980 = vadd.f32 %v3979, %v3917
    %v3981 = vadd.f32 %v3980, %v3918
    %v3982 = vadd.f32 %v3981, %v3919
    %v3983 = vadd.f32 %v3982, %v3920
    %v3984 = vadd.f32 %v3983, %v3921
    %v3985 = vadd.f32 %v3984, %v3922
    %v3986 = vadd.f32 %v3985, %v3923
    %v3987 = vadd.f32 %v3986, %v3924
    %v3988 = vadd.f32 %v3987, %v3925
    %v3989 = vadd.f32 %v3988, %v3926
    %v3990 = vadd.f32 %v3989, %v3927
    %v3991 = vadd.f32 %v3990, %v3928
    %v3992 = vadd.f32 %v3991, %v3929
    %v3993 = vadd.f32 %v3992, %v3930
    %v3994 = vadd.f32 %v3993, %v3931
    %v3995 = vadd.f32 %v3994, %v3932
    %v3996 = vadd.f32 %v3995, %v3933
    %v3997 = vadd.f32 %v3996, %v3934
    %v3998 = vadd.f32 %v3997, %v3935
    %v3999 = vadd.f32 %v3998, %v3936
    %v4000 = vadd.f32 %v3999, %v3937
    %v4001 = vadd.f32 %v4000, %v3938
    %v4002 = vadd.f32 %v4001, %v3939
    %v4003 = vadd.f32 %v4002, %v3940
    %v4004 = vadd.f32 %v4003, %v3941
    %v4005 = vadd.f32 %v4004, %v3942
    %v4006 = vadd.f32 %v4005, %v3943
    %v4007 = vadd.f32 %v4006, %v3944
    %v4008 = vadd.f32 %v4007, %v3945
    %v4009 = vadd.f32 %v4008, %v3946
    %v4010 = vadd.f32 %v4009, %v3947
    %v4011 = vadd.f32 %v4010, %v3948
    %v4012 = vadd.f32 %v4011, %v3949
    %v4013 = vadd.f32 %v4012, %v3950
    %v4014 = vadd.f32 %v4013, %v3951
    %v4015 = vadd.f32 %v4014, %v3952
    %v4016 = vadd.f32 %v4015, %v3953
    %v4017 = vadd.f32 %v4016, %v3954
    %v4018 = vadd.f32 %v4017, %v3955
    %v4019 = vadd.f32 %v4018, %v3956
    %v4020 = vadd.f32 %v4019, %v3957
    %v4021 = vadd.f32 %v4020, %v3958
    %v4022 = vadd.f32 %v4021, %v3959
    %v4023 = vadd.f32 %v4022, %v3960
    %v4024 = vadd.f32 %v4023, %v3961
    %v4025 = vadd.f32 %v4024, %v3962
    %v4026 = vadd.f32 %v4025, %v3963
    %v4027 = vadd.f32 %v4026, %v3964
    %v4028 = vadd.f32 %v4027, %v3965
    %v4029 = vadd.f32 %v4028, %v3966
    %v4030 = vadd.f32 %v4029, %v3967
    %v4031 = vadd.f32 %v4030, %v3968
    %v4032 = vadd.f32 %v4031, %v3969
    %v4033 = vadd.f32 %v4032, %v3970
    %v4034 = vadd.f32 %v4033, 0.0
    %v4035 = vsel %vm2499, %v3587, 0.0
    %v4036 = vsel %vm2500, %v3588, 0.0
    %v4037 = vsel %vm2501, %v3589, 0.0
    %v4038 = vsel %vm2502, %v3590, 0.0
    %v4039 = vsel %vm2503, %v3591, 0.0
    %v4040 = vsel %vm2504, %v3592, 0.0
    %v4041 = vsel %vm2505, %v3593, 0.0
    %v4042 = vsel %vm2506, %v3594, 0.0
    %v4043 = vsel %vm2507, %v3595, 0.0
    %v4044 = vsel %vm2508, %v3596, 0.0
    %v4045 = vsel %vm2509, %v3597, 0.0
    %v4046 = vsel %vm2510, %v3598, 0.0
    %v4047 = vsel %vm2511, %v3599, 0.0
    %v4048 = vsel %vm2512, %v3600, 0.0
    %v4049 = vsel %vm2513, %v3601, 0.0
    %v4050 = vsel %vm2514, %v3602, 0.0
    %v4051 = vsel %vm2515, %v3603, 0.0
    %v4052 = vsel %vm2516, %v3604, 0.0
    %v4053 = vsel %vm2517, %v3605, 0.0
    %v4054 = vsel %vm2518, %v3606, 0.0
    %v4055 = vsel %vm2519, %v3607, 0.0
    %v4056 = vsel %vm2520, %v3608, 0.0
    %v4057 = vsel %vm2521, %v3609, 0.0
    %v4058 = vsel %vm2522, %v3610, 0.0
    %v4059 = vsel %vm2523, %v3611, 0.0
    %v4060 = vsel %vm2524, %v3612, 0.0
    %v4061 = vsel %vm2525, %v3613, 0.0
    %v4062 = vsel %vm2526, %v3614, 0.0
    %v4063 = vsel %vm2527, %v3615, 0.0
    %v4064 = vsel %vm2528, %v3616, 0.0
    %v4065 = vsel %vm2529, %v3617, 0.0
    %v4066 = vsel %vm2530, %v3618, 0.0
    %v4067 = vsel %vm2531, %v3619, 0.0
    %v4068 = vsel %vm2532, %v3620, 0.0
    %v4069 = vsel %vm2533, %v3621, 0.0
    %v4070 = vsel %vm2534, %v3622, 0.0
    %v4071 = vsel %vm2535, %v3623, 0.0
    %v4072 = vsel %vm2536, %v3624, 0.0
    %v4073 = vsel %vm2537, %v3625, 0.0
    %v4074 = vsel %vm2538, %v3626, 0.0
    %v4075 = vsel %vm2539, %v3627, 0.0
    %v4076 = vsel %vm2540, %v3628, 0.0
    %v4077 = vsel %vm2541, %v3629, 0.0
    %v4078 = vsel %vm2542, %v3630, 0.0
    %v4079 = vsel %vm2543, %v3631, 0.0
    %v4080 = vsel %vm2544, %v3632, 0.0
    %v4081 = vsel %vm2545, %v3633, 0.0
    %v4082 = vsel %vm2546, %v3634, 0.0
    %v4083 = vsel %vm2547, %v3635, 0.0
    %v4084 = vsel %vm2548, %v3636, 0.0
    %v4085 = vsel %vm2549, %v3637, 0.0
    %v4086 = vsel %vm2550, %v3638, 0.0
    %v4087 = vsel %vm2551, %v3639, 0.0
    %v4088 = vsel %vm2552, %v3640, 0.0
    %v4089 = vsel %vm2553, %v3641, 0.0
    %v4090 = vsel %vm2554, %v3642, 0.0
    %v4091 = vsel %vm2555, %v3643, 0.0
    %v4092 = vsel %vm2556, %v3644, 0.0
    %v4093 = vsel %vm2557, %v3645, 0.0
    %v4094 = vsel %vm2558, %v3646, 0.0
    %v4095 = vsel %vm2559, %v3647, 0.0
    %v4096 = vsel %vm2560, %v3648, 0.0
    %v4097 = vsel %vm2561, %v3649, 0.0
    %v4098 = vsel %vm2562, %v3650, 0.0
    %v4099 = vadd.f32 %v4035, %v4036
    %v4100 = vadd.f32 %v4099, %v4037
    %v4101 = vadd.f32 %v4100, %v4038
    %v4102 = vadd.f32 %v4101, %v4039
    %v4103 = vadd.f32 %v4102, %v4040
    %v4104 = vadd.f32 %v4103, %v4041
    %v4105 = vadd.f32 %v4104, %v4042
    %v4106 = vadd.f32 %v4105, %v4043
    %v4107 = vadd.f32 %v4106, %v4044
    %v4108 = vadd.f32 %v4107, %v4045
    %v4109 = vadd.f32 %v4108, %v4046
    %v4110 = vadd.f32 %v4109, %v4047
    %v4111 = vadd.f32 %v4110, %v4048
    %v4112 = vadd.f32 %v4111, %v4049
    %v4113 = vadd.f32 %v4112, %v4050
    %v4114 = vadd.f32 %v4113, %v4051
    %v4115 = vadd.f32 %v4114, %v4052
    %v4116 = vadd.f32 %v4115, %v4053
    %v4117 = vadd.f32 %v4116, %v4054
    %v4118 = vadd.f32 %v4117, %v4055
    %v4119 = vadd.f32 %v4118, %v4056
    %v4120 = vadd.f32 %v4119, %v4057
    %v4121 = vadd.f32 %v4120, %v4058
    %v4122 = vadd.f32 %v4121, %v4059
    %v4123 = vadd.f32 %v4122, %v4060
    %v4124 = vadd.f32 %v4123, %v4061
    %v4125 = vadd.f32 %v4124, %v4062
    %v4126 = vadd.f32 %v4125, %v4063
    %v4127 = vadd.f32 %v4126, %v4064
    %v4128 = vadd.f32 %v4127, %v4065
    %v4129 = vadd.f32 %v4128, %v4066
    %v4130 = vadd.f32 %v4129, %v4067
    %v4131 = vadd.f32 %v4130, %v4068
    %v4132 = vadd.f32 %v4131, %v4069
    %v4133 = vadd.f32 %v4132, %v4070
    %v4134 = vadd.f32 %v4133, %v4071
    %v4135 = vadd.f32 %v4134, %v4072
    %v4136 = vadd.f32 %v4135, %v4073
    %v4137 = vadd.f32 %v4136, %v4074
    %v4138 = vadd.f32 %v4137, %v4075
    %v4139 = vadd.f32 %v4138, %v4076
    %v4140 = vadd.f32 %v4139, %v4077
    %v4141 = vadd.f32 %v4140, %v4078
    %v4142 = vadd.f32 %v4141, %v4079
    %v4143 = vadd.f32 %v4142, %v4080
    %v4144 = vadd.f32 %v4143, %v4081
    %v4145 = vadd.f32 %v4144, %v4082
    %v4146 = vadd.f32 %v4145, %v4083
    %v4147 = vadd.f32 %v4146, %v4084
    %v4148 = vadd.f32 %v4147, %v4085
    %v4149 = vadd.f32 %v4148, %v4086
    %v4150 = vadd.f32 %v4149, %v4087
    %v4151 = vadd.f32 %v4150, %v4088
    %v4152 = vadd.f32 %v4151, %v4089
    %v4153 = vadd.f32 %v4152, %v4090
    %v4154 = vadd.f32 %v4153, %v4091
    %v4155 = vadd.f32 %v4154, %v4092
    %v4156 = vadd.f32 %v4155, %v4093
    %v4157 = vadd.f32 %v4156, %v4094
    %v4158 = vadd.f32 %v4157, %v4095
    %v4159 = vadd.f32 %v4158, %v4096
    %v4160 = vadd.f32 %v4159, %v4097
    %v4161 = vadd.f32 %v4160, %v4098
    %v4162 = vadd.f32 %v4161, 0.0
    %v4163 = vld [vmem:[%s2] sm:$0xff]
    %v4164 = vadd.f32 %v4163, %v3778
    %4165 = vst [vmem:[%s2] sm:$0xff] %v4164
    %s4166 = scalar_lea.vmem %s2, 8
    %v4167 = vld [vmem:[%s4166] sm:$0xff]
    %v4168 = vadd.f32 %v4167, %v3906
    %4169 = vst [vmem:[%s4166] sm:$0xff] %v4168
    %s4170 = scalar_lea.vmem %s2, 16
    %v4171 = vld [vmem:[%s4170] sm:$0xff]
    %v4172 = vadd.f32 %v4171, %v4034
    %4173 = vst [vmem:[%s4170] sm:$0xff] %v4172
    %s4174 = scalar_lea.vmem %s2, 24
    %v4175 = vld [vmem:[%s4174] sm:$0xff]
    %v4176 = vadd.f32 %v4175, %v4162
    %4177 = vst [vmem:[%s4174] sm:$0xff] %v4176
  $region21: #{boundary_loss.1} parent=0 // pred_fallthru
    _
  // Predicated region
  $region22: #{boundary_loss.1} parent=0 // pred_check
    _
  $region23: #{boundary_loss.1} parent=0 // pred_check_branch
    %4179 = sbr.rel (0) target = $region25
  $region24: #{boundary_loss.1} parent=0 // pred_region
    _
  $region25: #{boundary_loss.1} parent=0 // pred_fallthru
    _
  // Predicated region
  $region26: #{boundary_loss.1} parent=0 // pred_check
    _
  $region27: #{boundary_loss.1} parent=0 // pred_check_branch
    %4181 = sbr.rel (0) target = $region29
  $region28: #{boundary_loss.1} parent=0 // pred_region
    _
  $region29: #{boundary_loss.1} parent=0 // pred_fallthru
    _

</llo_original>
